<compile_context>
chip_gen: v7x
topology: tpu7x:2x2x1
jax: 0.10.0
libtpu: 0.0.40
codegen_flags: <defaults>
</compile_context>

<pallas_src>
import functools

import jax
import jax.numpy as jnp
from jax.experimental import pallas as pl
from jax.experimental.pallas import tpu as pltpu


def _round_up(x, m):
    return (x + m - 1) // m * m


# ---------------------------------------------------------------------------
# Kernels
# ---------------------------------------------------------------------------

def _make_matmul_act_kernel(act):
    """Fused (M,K)@(K,Cout) + activation, for the non-BatchNorm layers."""

    def kernel(x_ref, w_ref, o_ref):
        y = jnp.dot(x_ref[...], w_ref[...], preferred_element_type=jnp.float32)
        if act == "leakyrelu":
            y = jnp.where(y >= 0, y, 0.2 * y)
        elif act == "sig":
            y = 1.0 / (1.0 + jnp.exp(-y))       # exp on EUP, exact reciprocal
        o_ref[...] = y.astype(o_ref.dtype)

    return kernel


def _make_matmul_bn_lrelu_kernel(m_true):
    """Fused conv-matmul + BatchNorm2d (batch stats) + LeakyReLU(0.2).

    Two-phase grid (grid = (phase, M-tile)):
      phase 0: accumulate per-channel sum / sumsq over all M tiles into VMEM
               scratch (exact statistics even when M is tiled).
      phase 1: recompute the tile matmul, normalize + affine + LeakyReLU,
               store the lane-dense output tile.
    Zero-padded M rows / Cout lanes contribute zero to the sums, and we divide
    by the true (unpadded) M, so padding does not perturb the statistics.
    """
    inv_m = 1.0 / float(m_true)

    def kernel(x_ref, w_ref, gamma_ref, beta_ref, o_ref, sum_ref, ssq_ref):
        p = pl.program_id(0)
        i = pl.program_id(1)

        y = jnp.dot(x_ref[...], w_ref[...], preferred_element_type=jnp.float32)

        @pl.when(jnp.logical_and(p == 0, i == 0))
        def _():
            sum_ref[...] = jnp.zeros_like(sum_ref)
            ssq_ref[...] = jnp.zeros_like(ssq_ref)

        @pl.when(p == 0)
        def _():
            sum_ref[...] = sum_ref[...] + jnp.sum(y, axis=0, keepdims=True)
            ssq_ref[...] = ssq_ref[...] + jnp.sum(y * y, axis=0, keepdims=True)

        @pl.when(p == 1)
        def _():
            mean = sum_ref[...] * inv_m
            var = ssq_ref[...] * inv_m - mean * mean       # biased variance
            rstd = jax.lax.rsqrt(var + 1e-5)
            z = (y - mean) * (rstd * gamma_ref[...]) + beta_ref[...]
            z = jnp.where(z >= 0, z, 0.2 * z)              # LeakyReLU(0.2)
            o_ref[...] = z.astype(o_ref.dtype)

    return kernel


# ---------------------------------------------------------------------------
# Wrapper glue (plain JAX): NHWC im2col + padding + per-layer pallas_call
# ---------------------------------------------------------------------------

def _extract_patches_nhwc(x, k, stride, padding):
    """(N, H, W, C) -> ((N*Ho*Wo, k*k*C), Ho, Wo). K ordered (kh, kw, cin)."""
    N, H, W, C = x.shape
    xp = jnp.pad(x, ((0, 0), (padding, padding), (padding, padding), (0, 0)))
    Ho = (H + 2 * padding - k) // stride + 1
    Wo = (W + 2 * padding - k) // stride + 1
    cols = []
    for kh in range(k):
        for kw in range(k):
            cols.append(
                xp[:, kh:kh + stride * Ho:stride, kw:kw + stride * Wo:stride, :])
    patches = jnp.concatenate(cols, axis=-1)               # (N, Ho, Wo, k*k*C)
    return patches.reshape(N * Ho * Wo, k * k * C), Ho, Wo


def conv_block(x, w, gamma, beta, *, stride, padding, use_bn, act, block_m=512):
    """One __block(...) of the Discriminator. x is NHWC, w is (Cout, Cin, k, k)."""
    N = x.shape[0]
    Cout, Cin, k, _ = w.shape

    patches, Ho, Wo = _extract_patches_nhwc(x, k, stride, padding)
    M, K = patches.shape

    K_pad = _round_up(K, 128)                 # full MXU contraction passes
    C_pad = _round_up(Cout, 128)              # lane-dense output stores
    tm = min(block_m, _round_up(M, 8))
    M_pad = _round_up(M, tm)
    n_m = M_pad // tm

    # bf16 MXU operands; zero-pad contraction (K), lanes (Cout) and rows (M).
    patches = jnp.pad(patches.astype(jnp.bfloat16),
                      ((0, M_pad - M), (0, K_pad - K)))
    w2 = jnp.transpose(w, (2, 3, 1, 0)).reshape(K, Cout)   # (kh,kw,cin)-major
    w2 = jnp.pad(w2.astype(jnp.bfloat16), ((0, K_pad - K), (0, C_pad - Cout)))

    flops = 2 * M_pad * K_pad * C_pad
    bytes_accessed = patches.size * 2 + w2.size * 2 + M_pad * C_pad * 4
    compiler_params = pltpu.CompilerParams(
        dimension_semantics=("arbitrary", "arbitrary") if use_bn else ("parallel",),
        vmem_limit_bytes=32 * 1024 * 1024,
    )

    if use_bn:
        gamma2 = jnp.pad(gamma.astype(jnp.float32).reshape(1, Cout),
                         ((0, 0), (0, C_pad - Cout)), constant_values=1.0)
        beta2 = jnp.pad(beta.astype(jnp.float32).reshape(1, Cout),
                        ((0, 0), (0, C_pad - Cout)))
        out = pl.pallas_call(
            _make_matmul_bn_lrelu_kernel(M),
            out_shape=jax.ShapeDtypeStruct((M_pad, C_pad), jnp.float32),
            grid_spec=pltpu.PrefetchScalarGridSpec(
                num_scalar_prefetch=0,
                grid=(2, n_m),                              # (phase, M tile)
                in_specs=[
                    pl.BlockSpec((tm, K_pad), lambda p, i: (i, 0)),
                    pl.BlockSpec((K_pad, C_pad), lambda p, i: (0, 0)),
                    pl.BlockSpec((1, C_pad), lambda p, i: (0, 0)),
                    pl.BlockSpec((1, C_pad), lambda p, i: (0, 0)),
                ],
                # phase 0 parks on block 0 (never written); phase 1 writes tile i.
                out_specs=pl.BlockSpec((tm, C_pad), lambda p, i: (p * i, 0)),
                scratch_shapes=[pltpu.VMEM((1, C_pad), jnp.float32),
                                pltpu.VMEM((1, C_pad), jnp.float32)],
            ),
            compiler_params=compiler_params,
            cost_estimate=pl.CostEstimate(flops=2 * flops, transcendentals=0,
                                          bytes_accessed=2 * bytes_accessed),
        )(patches, w2, gamma2, beta2)
    else:
        transcendentals = M_pad * C_pad if act == "sig" else 0
        out = pl.pallas_call(
            _make_matmul_act_kernel(act),
            out_shape=jax.ShapeDtypeStruct((M_pad, C_pad), jnp.float32),
            grid_spec=pltpu.PrefetchScalarGridSpec(
                num_scalar_prefetch=0,
                grid=(n_m,),
                in_specs=[
                    pl.BlockSpec((tm, K_pad), lambda i: (i, 0)),
                    pl.BlockSpec((K_pad, C_pad), lambda i: (0, 0)),
                ],
                out_specs=pl.BlockSpec((tm, C_pad), lambda i: (i, 0)),
            ),
            compiler_params=compiler_params,
            cost_estimate=pl.CostEstimate(flops=flops,
                                          transcendentals=transcendentals,
                                          bytes_accessed=bytes_accessed),
        )(patches, w2)

    # Slice off row/lane padding and stay NHWC between layers.
    return out[:M, :Cout].reshape(N, Ho, Wo, Cout)


# ---------------------------------------------------------------------------
# Model: layer configs mirroring Discriminator.__init__
# ---------------------------------------------------------------------------

def _layer_cfgs(img_channels, features_d):
    fd = features_d
    return [
        dict(cin=img_channels, cout=fd,     stride=2, padding=1, bn=False, act="leakyrelu"),
        dict(cin=fd,           cout=fd * 2, stride=2, padding=1, bn=True,  act="leakyrelu"),
        dict(cin=fd * 2,       cout=fd * 4, stride=2, padding=1, bn=True,  act="leakyrelu"),
        dict(cin=fd * 4,       cout=fd * 8, stride=2, padding=1, bn=True,  act="leakyrelu"),
        dict(cin=fd * 8,       cout=1,      stride=2, padding=0, bn=False, act="sig"),
    ]


def init_params(key, img_channels, features_d):
    cfgs = _layer_cfgs(img_channels, features_d)
    keys = jax.random.split(key, len(cfgs))
    params = []
    for cfg, kk in zip(cfgs, keys):
        w = 0.02 * jax.random.normal(kk, (cfg["cout"], cfg["cin"], 4, 4), jnp.float32)
        if cfg["bn"]:
            gamma = jnp.ones((cfg["cout"],), jnp.float32)   # BatchNorm2d default weight
            beta = jnp.zeros((cfg["cout"],), jnp.float32)   # BatchNorm2d default bias
        else:
            gamma = beta = None          # no dead gamma/beta DMAs for non-BN layers
        params.append((w, gamma, beta))
    return params


def discriminator_forward(params, x, img_channels, features_d):
    """x: NCHW (PyTorch convention). Returns (N, 1, 1, 1) like the Sequential."""
    cfgs = _layer_cfgs(img_channels, features_d)
    h = jnp.transpose(x, (0, 2, 3, 1))                      # NCHW -> NHWC once
    for (w, gamma, beta), cfg in zip(params, cfgs):
        h = conv_block(h, w, gamma, beta,
                       stride=cfg["stride"], padding=cfg["padding"],
                       use_bn=cfg["bn"], act=cfg["act"])
    return jnp.transpose(h, (0, 3, 1, 2))                   # NHWC -> NCHW at exit


if __name__ == "__main__":
    img_channels = 3
    features_d = 8
    key = jax.random.PRNGKey(0)
    kp, kx = jax.random.split(key)

    params = init_params(kp, img_channels, features_d)
    # DCGAN discriminator geometry: 64x64 -> four stride-2 convs -> 4x4 -> 1x1.
    x = jax.random.normal(kx, (2, img_channels, 64, 64), dtype=jnp.float32)

    fwd = jax.jit(functools.partial(discriminator_forward,
                                    img_channels=img_channels,
                                    features_d=features_d))
    out = jax.block_until_ready(fwd(params, x))

    assert out.shape == (2, 1, 1, 1), out.shape
    assert bool(jnp.all((out >= 0.0) & (out <= 1.0)))       # sigmoid output range
    print("KERNEL_OK")
</pallas_src>

<mosaic_0001>
module attributes {stable_mosaic.version = 11 : i64} {
  func.func @kernel(%arg0: i32, %arg1: memref<512x128xbf16, #tpu.memory_space<vmem>>, %arg2: memref<128x128xbf16, #tpu.memory_space<vmem>>, %arg3: memref<512x128xf32, #tpu.memory_space<vmem>>) attributes {dimension_semantics = [#tpu.dimension_semantics<parallel>], iteration_bounds = array<i64: 4>, scalar_prefetch = 0 : i64, scratch_operands = 0 : i64, tpu.core_type = #tpu.core_type<tc>, window_params = [{transform_indices = @transform_0, window_bounds = array<i64: 512, 128>}, {pipeline_mode = #tpu.pipeline_mode<synchronous>, transform_indices = @transform_1, window_bounds = array<i64: 128, 128>}, {transform_indices = @transform_2, window_bounds = array<i64: 512, 128>}]} {
    %c0 = arith.constant 0 : index
    %c0_0 = arith.constant 0 : index
    %0 = vector.load %arg1[%c0, %c0_0] : memref<512x128xbf16, #tpu.memory_space<vmem>>, vector<512x128xbf16>
    %c0_1 = arith.constant 0 : index
    %c0_2 = arith.constant 0 : index
    %1 = vector.load %arg2[%c0_1, %c0_2] : memref<128x128xbf16, #tpu.memory_space<vmem>>, vector<128x128xbf16>
    %cst = arith.constant dense<0.000000e+00> : vector<512x128xf32>
    %2 = tpu.matmul %0, %1, %cst {dimension_numbers = #tpu.dot_dimension_numbers<[1], [0], [0], [1], [0, 0, 1, 1], [], []>} : vector<512x128xbf16>, vector<128x128xbf16>, vector<512x128xf32> -> vector<512x128xf32>
    %cst_3 = arith.constant 0.000000e+00 : f32
    %3 = vector.broadcast %cst_3 : f32 to vector<512x128xf32>
    %4 = arith.cmpf oge, %2, %3 : vector<512x128xf32>
    %cst_4 = arith.constant 2.000000e-01 : f32
    %5 = vector.broadcast %cst_4 : f32 to vector<512x128xf32>
    %6 = arith.mulf %5, %2 : vector<512x128xf32>
    %7 = arith.select %4, %2, %6 : vector<512x128xi1>, vector<512x128xf32>
    %c0_5 = arith.constant 0 : index
    %c0_6 = arith.constant 0 : index
    %8 = vector.load %arg3[%c0_5, %c0_6] : memref<512x128xf32, #tpu.memory_space<vmem>>, vector<512x128xf32>
    tpu.vector_store %arg3[%c0_5, %c0_6], %7 {strides = array<i32>} : memref<512x128xf32, #tpu.memory_space<vmem>>, vector<512x128xf32>,
    return
  }
  func.func @transform_0(%arg0: i32) -> (i32, i32) {
    %c0_i32 = arith.constant 0 : i32
    %c0_i32_0 = arith.constant 0 : i32
    return %arg0, %c0_i32 : i32, i32
  }
  func.func @transform_1(%arg0: i32) -> (i32, i32) {
    %c0_i32 = arith.constant 0 : i32
    %c0_i32_0 = arith.constant 0 : i32
    %c0_i32_1 = arith.constant 0 : i32
    return %c0_i32, %c0_i32_0 : i32, i32
  }
  func.func @transform_2(%arg0: i32) -> (i32, i32) {
    %c0_i32 = arith.constant 0 : i32
    %c0_i32_0 = arith.constant 0 : i32
    return %arg0, %c0_i32 : i32, i32
  }
}

module attributes {stable_mosaic.version = 11 : i64} {
  func.func @kernel(%arg0: i32, %arg1: i32, %arg2: memref<512x128xbf16, #tpu.memory_space<vmem>>, %arg3: memref<128x128xbf16, #tpu.memory_space<vmem>>, %arg4: memref<1x128xf32, #tpu.memory_space<vmem>>, %arg5: memref<1x128xf32, #tpu.memory_space<vmem>>, %arg6: memref<512x128xf32, #tpu.memory_space<vmem>>, %arg7: memref<1x128xf32, #tpu.memory_space<vmem>>, %arg8: memref<1x128xf32, #tpu.memory_space<vmem>>) attributes {dimension_semantics = [#tpu.dimension_semantics<arbitrary>, #tpu.dimension_semantics<arbitrary>], iteration_bounds = array<i64: 2, 1>, scalar_prefetch = 0 : i64, scratch_operands = 2 : i64, tpu.core_type = #tpu.core_type<tc>, window_params = [{transform_indices = @transform_0, window_bounds = array<i64: 512, 128>}, {pipeline_mode = #tpu.pipeline_mode<synchronous>, transform_indices = @transform_1, window_bounds = array<i64: 128, 128>}, {pipeline_mode = #tpu.pipeline_mode<synchronous>, transform_indices = @transform_2, window_bounds = array<i64: 1, 128>}, {pipeline_mode = #tpu.pipeline_mode<synchronous>, transform_indices = @transform_3, window_bounds = array<i64: 1, 128>}, {transform_indices = @transform_4, window_bounds = array<i64: 512, 128>}]} {
    %c0 = arith.constant 0 : index
    %c0_0 = arith.constant 0 : index
    %0 = vector.load %arg2[%c0, %c0_0] : memref<512x128xbf16, #tpu.memory_space<vmem>>, vector<512x128xbf16>
    %c0_1 = arith.constant 0 : index
    %c0_2 = arith.constant 0 : index
    %1 = vector.load %arg3[%c0_1, %c0_2] : memref<128x128xbf16, #tpu.memory_space<vmem>>, vector<128x128xbf16>
    %cst = arith.constant dense<0.000000e+00> : vector<512x128xf32>
    %2 = tpu.matmul %0, %1, %cst {dimension_numbers = #tpu.dot_dimension_numbers<[1], [0], [0], [1], [0, 0, 1, 1], [], []>} : vector<512x128xbf16>, vector<128x128xbf16>, vector<512x128xf32> -> vector<512x128xf32>
    %c0_i32 = arith.constant 0 : i32
    %3 = arith.cmpi eq, %arg0, %c0_i32 : i32
    %c0_i32_3 = arith.constant 0 : i32
    %4 = arith.cmpi eq, %arg1, %c0_i32_3 : i32
    %5 = arith.andi %3, %4 : i1
    %6 = arith.extui %5 : i1 to i32
    %c0_i32_4 = arith.constant 0 : i32
    %7 = arith.cmpi ne, %6, %c0_i32_4 : i32
    scf.if %7 {
      %cst_8 = arith.constant 0.000000e+00 : f32
      %14 = vector.broadcast %cst_8 : f32 to vector<1x128xf32>
      %c0_9 = arith.constant 0 : index
      %c0_10 = arith.constant 0 : index
      %15 = vector.load %arg7[%c0_9, %c0_10] : memref<1x128xf32, #tpu.memory_space<vmem>>, vector<1x128xf32>
      tpu.vector_store %arg7[%c0_9, %c0_10], %14 {strides = array<i32>} : memref<1x128xf32, #tpu.memory_space<vmem>>, vector<1x128xf32>,
      %cst_11 = arith.constant 0.000000e+00 : f32
      %16 = vector.broadcast %cst_11 : f32 to vector<1x128xf32>
      %c0_12 = arith.constant 0 : index
      %c0_13 = arith.constant 0 : index
      %17 = vector.load %arg8[%c0_12, %c0_13] : memref<1x128xf32, #tpu.memory_space<vmem>>, vector<1x128xf32>
      tpu.vector_store %arg8[%c0_12, %c0_13], %16 {strides = array<i32>} : memref<1x128xf32, #tpu.memory_space<vmem>>, vector<1x128xf32>,
    } else {
    }
    %c0_i32_5 = arith.constant 0 : i32
    %8 = arith.cmpi eq, %arg0, %c0_i32_5 : i32
    %9 = arith.extui %8 : i1 to i32
    %c0_i32_6 = arith.constant 0 : i32
    %10 = arith.cmpi ne, %9, %c0_i32_6 : i32
    scf.if %10 {
      %c0_8 = arith.constant 0 : index
      %c0_9 = arith.constant 0 : index
      %14 = vector.load %arg7[%c0_8, %c0_9] : memref<1x128xf32, #tpu.memory_space<vmem>>, vector<1x128xf32>
      %cst_10 = arith.constant dense<0.000000e+00> : vector<128xf32>
      %15 = vector.multi_reduction <add>, %2, %cst_10 [0] : vector<512x128xf32> to vector<128xf32>
      %16 = vector.shape_cast %15 : vector<128xf32> to vector<1x128xf32>
      %17 = arith.addf %14, %16 : vector<1x128xf32>
      %c0_11 = arith.constant 0 : index
      %c0_12 = arith.constant 0 : index
      %18 = vector.load %arg7[%c0_11, %c0_12] : memref<1x128xf32, #tpu.memory_space<vmem>>, vector<1x128xf32>
      tpu.vector_store %arg7[%c0_11, %c0_12], %17 {strides = array<i32>} : memref<1x128xf32, #tpu.memory_space<vmem>>, vector<1x128xf32>,
      %c0_13 = arith.constant 0 : index
      %c0_14 = arith.constant 0 : index
      %19 = vector.load %arg8[%c0_13, %c0_14] : memref<1x128xf32, #tpu.memory_space<vmem>>, vector<1x128xf32>
      %20 = arith.mulf %2, %2 : vector<512x128xf32>
      %cst_15 = arith.constant dense<0.000000e+00> : vector<128xf32>
      %21 = vector.multi_reduction <add>, %20, %cst_15 [0] : vector<512x128xf32> to vector<128xf32>
      %22 = vector.shape_cast %21 : vector<128xf32> to vector<1x128xf32>
      %23 = arith.addf %19, %22 : vector<1x128xf32>
      %c0_16 = arith.constant 0 : index
      %c0_17 = arith.constant 0 : index
      %24 = vector.load %arg8[%c0_16, %c0_17] : memref<1x128xf32, #tpu.memory_space<vmem>>, vector<1x128xf32>
      tpu.vector_store %arg8[%c0_16, %c0_17], %23 {strides = array<i32>} : memref<1x128xf32, #tpu.memory_space<vmem>>, vector<1x128xf32>,
    } else {
    }
    %c1_i32 = arith.constant 1 : i32
    %11 = arith.cmpi eq, %arg0, %c1_i32 : i32
    %12 = arith.extui %11 : i1 to i32
    %c0_i32_7 = arith.constant 0 : i32
    %13 = arith.cmpi ne, %12, %c0_i32_7 : i32
    scf.if %13 {
      %c0_8 = arith.constant 0 : index
      %c0_9 = arith.constant 0 : index
      %14 = vector.load %arg7[%c0_8, %c0_9] : memref<1x128xf32, #tpu.memory_space<vmem>>, vector<1x128xf32>
      %cst_10 = arith.constant 0.001953125 : f32
      %15 = vector.broadcast %cst_10 : f32 to vector<1x128xf32>
      %16 = arith.mulf %14, %15 : vector<1x128xf32>
      %c0_11 = arith.constant 0 : index
      %c0_12 = arith.constant 0 : index
      %17 = vector.load %arg8[%c0_11, %c0_12] : memref<1x128xf32, #tpu.memory_space<vmem>>, vector<1x128xf32>
      %cst_13 = arith.constant 0.001953125 : f32
      %18 = vector.broadcast %cst_13 : f32 to vector<1x128xf32>
      %19 = arith.mulf %17, %18 : vector<1x128xf32>
      %20 = arith.mulf %16, %16 : vector<1x128xf32>
      %21 = arith.subf %19, %20 : vector<1x128xf32>
      %cst_14 = arith.constant 9.99999974E-6 : f32
      %22 = vector.broadcast %cst_14 : f32 to vector<1x128xf32>
      %23 = arith.addf %21, %22 : vector<1x128xf32>
      %24 = math.rsqrt %23 : vector<1x128xf32>
      %25 = vector.broadcast %16 : vector<1x128xf32> to vector<512x128xf32>
      %26 = arith.subf %2, %25 : vector<512x128xf32>
      %c0_15 = arith.constant 0 : index
      %c0_16 = arith.constant 0 : index
      %27 = vector.load %arg4[%c0_15, %c0_16] : memref<1x128xf32, #tpu.memory_space<vmem>>, vector<1x128xf32>
      %28 = arith.mulf %24, %27 : vector<1x128xf32>
      %29 = vector.broadcast %28 : vector<1x128xf32> to vector<512x128xf32>
      %30 = arith.mulf %26, %29 : vector<512x128xf32>
      %c0_17 = arith.constant 0 : index
      %c0_18 = arith.constant 0 : index
      %31 = vector.load %arg5[%c0_17, %c0_18] : memref<1x128xf32, #tpu.memory_space<vmem>>, vector<1x128xf32>
      %32 = vector.broadcast %31 : vector<1x128xf32> to vector<512x128xf32>
      %33 = arith.addf %30, %32 : vector<512x128xf32>
      %cst_19 = arith.constant 0.000000e+00 : f32
      %34 = vector.broadcast %cst_19 : f32 to vector<512x128xf32>
      %35 = arith.cmpf oge, %33, %34 : vector<512x128xf32>
      %cst_20 = arith.constant 2.000000e-01 : f32
      %36 = vector.broadcast %cst_20 : f32 to vector<512x128xf32>
      %37 = arith.mulf %36, %33 : vector<512x128xf32>
      %38 = arith.select %35, %33, %37 : vector<512x128xi1>, vector<512x128xf32>
      %c0_21 = arith.constant 0 : index
      %c0_22 = arith.constant 0 : index
      %39 = vector.load %arg6[%c0_21, %c0_22] : memref<512x128xf32, #tpu.memory_space<vmem>>, vector<512x128xf32>
      tpu.vector_store %arg6[%c0_21, %c0_22], %38 {strides = array<i32>} : memref<512x128xf32, #tpu.memory_space<vmem>>, vector<512x128xf32>,
    } else {
    }
    return
  }
  func.func @transform_0(%arg0: i32, %arg1: i32) -> (i32, i32) {
    %c0_i32 = arith.constant 0 : i32
    %c0_i32_0 = arith.constant 0 : i32
    return %arg1, %c0_i32 : i32, i32
  }
  func.func @transform_1(%arg0: i32, %arg1: i32) -> (i32, i32) {
    %c0_i32 = arith.constant 0 : i32
    %c0_i32_0 = arith.constant 0 : i32
    %c0_i32_1 = arith.constant 0 : i32
    return %c0_i32, %c0_i32_0 : i32, i32
  }
  func.func @transform_2(%arg0: i32, %arg1: i32) -> (i32, i32) {
    %c0_i32 = arith.constant 0 : i32
    %c0_i32_0 = arith.constant 0 : i32
    %c0_i32_1 = arith.constant 0 : i32
    return %c0_i32, %c0_i32_0 : i32, i32
  }
  func.func @transform_3(%arg0: i32, %arg1: i32) -> (i32, i32) {
    %c0_i32 = arith.constant 0 : i32
    %c0_i32_0 = arith.constant 0 : i32
    %c0_i32_1 = arith.constant 0 : i32
    return %c0_i32, %c0_i32_0 : i32, i32
  }
  func.func @transform_4(%arg0: i32, %arg1: i32) -> (i32, i32) {
    %0 = arith.muli %arg0, %arg1 : i32
    %c0_i32 = arith.constant 0 : i32
    %c0_i32_0 = arith.constant 0 : i32
    return %0, %c0_i32 : i32, i32
  }
}

module attributes {stable_mosaic.version = 11 : i64} {
  func.func @kernel(%arg0: i32, %arg1: i32, %arg2: memref<128x256xbf16, #tpu.memory_space<vmem>>, %arg3: memref<256x128xbf16, #tpu.memory_space<vmem>>, %arg4: memref<1x128xf32, #tpu.memory_space<vmem>>, %arg5: memref<1x128xf32, #tpu.memory_space<vmem>>, %arg6: memref<128x128xf32, #tpu.memory_space<vmem>>, %arg7: memref<1x128xf32, #tpu.memory_space<vmem>>, %arg8: memref<1x128xf32, #tpu.memory_space<vmem>>) attributes {dimension_semantics = [#tpu.dimension_semantics<arbitrary>, #tpu.dimension_semantics<arbitrary>], iteration_bounds = array<i64: 2, 1>, scalar_prefetch = 0 : i64, scratch_operands = 2 : i64, tpu.core_type = #tpu.core_type<tc>, window_params = [{transform_indices = @transform_0, window_bounds = array<i64: 128, 256>}, {pipeline_mode = #tpu.pipeline_mode<synchronous>, transform_indices = @transform_1, window_bounds = array<i64: 256, 128>}, {pipeline_mode = #tpu.pipeline_mode<synchronous>, transform_indices = @transform_2, window_bounds = array<i64: 1, 128>}, {pipeline_mode = #tpu.pipeline_mode<synchronous>, transform_indices = @transform_3, window_bounds = array<i64: 1, 128>}, {transform_indices = @transform_4, window_bounds = array<i64: 128, 128>}]} {
    %c0 = arith.constant 0 : index
    %c0_0 = arith.constant 0 : index
    %0 = vector.load %arg2[%c0, %c0_0] : memref<128x256xbf16, #tpu.memory_space<vmem>>, vector<128x256xbf16>
    %c0_1 = arith.constant 0 : index
    %c0_2 = arith.constant 0 : index
    %1 = vector.load %arg3[%c0_1, %c0_2] : memref<256x128xbf16, #tpu.memory_space<vmem>>, vector<256x128xbf16>
    %cst = arith.constant dense<0.000000e+00> : vector<128x128xf32>
    %2 = tpu.matmul %0, %1, %cst {dimension_numbers = #tpu.dot_dimension_numbers<[1], [0], [0], [1], [0, 0, 1, 1], [], []>} : vector<128x256xbf16>, vector<256x128xbf16>, vector<128x128xf32> -> vector<128x128xf32>
    %c0_i32 = arith.constant 0 : i32
    %3 = arith.cmpi eq, %arg0, %c0_i32 : i32
    %c0_i32_3 = arith.constant 0 : i32
    %4 = arith.cmpi eq, %arg1, %c0_i32_3 : i32
    %5 = arith.andi %3, %4 : i1
    %6 = arith.extui %5 : i1 to i32
    %c0_i32_4 = arith.constant 0 : i32
    %7 = arith.cmpi ne, %6, %c0_i32_4 : i32
    scf.if %7 {
      %cst_8 = arith.constant 0.000000e+00 : f32
      %14 = vector.broadcast %cst_8 : f32 to vector<1x128xf32>
      %c0_9 = arith.constant 0 : index
      %c0_10 = arith.constant 0 : index
      %15 = vector.load %arg7[%c0_9, %c0_10] : memref<1x128xf32, #tpu.memory_space<vmem>>, vector<1x128xf32>
      tpu.vector_store %arg7[%c0_9, %c0_10], %14 {strides = array<i32>} : memref<1x128xf32, #tpu.memory_space<vmem>>, vector<1x128xf32>,
      %cst_11 = arith.constant 0.000000e+00 : f32
      %16 = vector.broadcast %cst_11 : f32 to vector<1x128xf32>
      %c0_12 = arith.constant 0 : index
      %c0_13 = arith.constant 0 : index
      %17 = vector.load %arg8[%c0_12, %c0_13] : memref<1x128xf32, #tpu.memory_space<vmem>>, vector<1x128xf32>
      tpu.vector_store %arg8[%c0_12, %c0_13], %16 {strides = array<i32>} : memref<1x128xf32, #tpu.memory_space<vmem>>, vector<1x128xf32>,
    } else {
    }
    %c0_i32_5 = arith.constant 0 : i32
    %8 = arith.cmpi eq, %arg0, %c0_i32_5 : i32
    %9 = arith.extui %8 : i1 to i32
    %c0_i32_6 = arith.constant 0 : i32
    %10 = arith.cmpi ne, %9, %c0_i32_6 : i32
    scf.if %10 {
      %c0_8 = arith.constant 0 : index
      %c0_9 = arith.constant 0 : index
      %14 = vector.load %arg7[%c0_8, %c0_9] : memref<1x128xf32, #tpu.memory_space<vmem>>, vector<1x128xf32>
      %cst_10 = arith.constant dense<0.000000e+00> : vector<128xf32>
      %15 = vector.multi_reduction <add>, %2, %cst_10 [0] : vector<128x128xf32> to vector<128xf32>
      %16 = vector.shape_cast %15 : vector<128xf32> to vector<1x128xf32>
      %17 = arith.addf %14, %16 : vector<1x128xf32>
      %c0_11 = arith.constant 0 : index
      %c0_12 = arith.constant 0 : index
      %18 = vector.load %arg7[%c0_11, %c0_12] : memref<1x128xf32, #tpu.memory_space<vmem>>, vector<1x128xf32>
      tpu.vector_store %arg7[%c0_11, %c0_12], %17 {strides = array<i32>} : memref<1x128xf32, #tpu.memory_space<vmem>>, vector<1x128xf32>,
      %c0_13 = arith.constant 0 : index
      %c0_14 = arith.constant 0 : index
      %19 = vector.load %arg8[%c0_13, %c0_14] : memref<1x128xf32, #tpu.memory_space<vmem>>, vector<1x128xf32>
      %20 = arith.mulf %2, %2 : vector<128x128xf32>
      %cst_15 = arith.constant dense<0.000000e+00> : vector<128xf32>
      %21 = vector.multi_reduction <add>, %20, %cst_15 [0] : vector<128x128xf32> to vector<128xf32>
      %22 = vector.shape_cast %21 : vector<128xf32> to vector<1x128xf32>
      %23 = arith.addf %19, %22 : vector<1x128xf32>
      %c0_16 = arith.constant 0 : index
      %c0_17 = arith.constant 0 : index
      %24 = vector.load %arg8[%c0_16, %c0_17] : memref<1x128xf32, #tpu.memory_space<vmem>>, vector<1x128xf32>
      tpu.vector_store %arg8[%c0_16, %c0_17], %23 {strides = array<i32>} : memref<1x128xf32, #tpu.memory_space<vmem>>, vector<1x128xf32>,
    } else {
    }
    %c1_i32 = arith.constant 1 : i32
    %11 = arith.cmpi eq, %arg0, %c1_i32 : i32
    %12 = arith.extui %11 : i1 to i32
    %c0_i32_7 = arith.constant 0 : i32
    %13 = arith.cmpi ne, %12, %c0_i32_7 : i32
    scf.if %13 {
      %c0_8 = arith.constant 0 : index
      %c0_9 = arith.constant 0 : index
      %14 = vector.load %arg7[%c0_8, %c0_9] : memref<1x128xf32, #tpu.memory_space<vmem>>, vector<1x128xf32>
      %cst_10 = arith.constant 7.812500e-03 : f32
      %15 = vector.broadcast %cst_10 : f32 to vector<1x128xf32>
      %16 = arith.mulf %14, %15 : vector<1x128xf32>
      %c0_11 = arith.constant 0 : index
      %c0_12 = arith.constant 0 : index
      %17 = vector.load %arg8[%c0_11, %c0_12] : memref<1x128xf32, #tpu.memory_space<vmem>>, vector<1x128xf32>
      %cst_13 = arith.constant 7.812500e-03 : f32
      %18 = vector.broadcast %cst_13 : f32 to vector<1x128xf32>
      %19 = arith.mulf %17, %18 : vector<1x128xf32>
      %20 = arith.mulf %16, %16 : vector<1x128xf32>
      %21 = arith.subf %19, %20 : vector<1x128xf32>
      %cst_14 = arith.constant 9.99999974E-6 : f32
      %22 = vector.broadcast %cst_14 : f32 to vector<1x128xf32>
      %23 = arith.addf %21, %22 : vector<1x128xf32>
      %24 = math.rsqrt %23 : vector<1x128xf32>
      %25 = vector.broadcast %16 : vector<1x128xf32> to vector<128x128xf32>
      %26 = arith.subf %2, %25 : vector<128x128xf32>
      %c0_15 = arith.constant 0 : index
      %c0_16 = arith.constant 0 : index
      %27 = vector.load %arg4[%c0_15, %c0_16] : memref<1x128xf32, #tpu.memory_space<vmem>>, vector<1x128xf32>
      %28 = arith.mulf %24, %27 : vector<1x128xf32>
      %29 = vector.broadcast %28 : vector<1x128xf32> to vector<128x128xf32>
      %30 = arith.mulf %26, %29 : vector<128x128xf32>
      %c0_17 = arith.constant 0 : index
      %c0_18 = arith.constant 0 : index
      %31 = vector.load %arg5[%c0_17, %c0_18] : memref<1x128xf32, #tpu.memory_space<vmem>>, vector<1x128xf32>
      %32 = vector.broadcast %31 : vector<1x128xf32> to vector<128x128xf32>
      %33 = arith.addf %30, %32 : vector<128x128xf32>
      %cst_19 = arith.constant 0.000000e+00 : f32
      %34 = vector.broadcast %cst_19 : f32 to vector<128x128xf32>
      %35 = arith.cmpf oge, %33, %34 : vector<128x128xf32>
      %cst_20 = arith.constant 2.000000e-01 : f32
      %36 = vector.broadcast %cst_20 : f32 to vector<128x128xf32>
      %37 = arith.mulf %36, %33 : vector<128x128xf32>
      %38 = arith.select %35, %33, %37 : vector<128x128xi1>, vector<128x128xf32>
      %c0_21 = arith.constant 0 : index
      %c0_22 = arith.constant 0 : index
      %39 = vector.load %arg6[%c0_21, %c0_22] : memref<128x128xf32, #tpu.memory_space<vmem>>, vector<128x128xf32>
      tpu.vector_store %arg6[%c0_21, %c0_22], %38 {strides = array<i32>} : memref<128x128xf32, #tpu.memory_space<vmem>>, vector<128x128xf32>,
    } else {
    }
    return
  }
  func.func @transform_0(%arg0: i32, %arg1: i32) -> (i32, i32) {
    %c0_i32 = arith.constant 0 : i32
    %c0_i32_0 = arith.constant 0 : i32
    return %arg1, %c0_i32 : i32, i32
  }
  func.func @transform_1(%arg0: i32, %arg1: i32) -> (i32, i32) {
    %c0_i32 = arith.constant 0 : i32
    %c0_i32_0 = arith.constant 0 : i32
    %c0_i32_1 = arith.constant 0 : i32
    return %c0_i32, %c0_i32_0 : i32, i32
  }
  func.func @transform_2(%arg0: i32, %arg1: i32) -> (i32, i32) {
    %c0_i32 = arith.constant 0 : i32
    %c0_i32_0 = arith.constant 0 : i32
    %c0_i32_1 = arith.constant 0 : i32
    return %c0_i32, %c0_i32_0 : i32, i32
  }
  func.func @transform_3(%arg0: i32, %arg1: i32) -> (i32, i32) {
    %c0_i32 = arith.constant 0 : i32
    %c0_i32_0 = arith.constant 0 : i32
    %c0_i32_1 = arith.constant 0 : i32
    return %c0_i32, %c0_i32_0 : i32, i32
  }
  func.func @transform_4(%arg0: i32, %arg1: i32) -> (i32, i32) {
    %0 = arith.muli %arg0, %arg1 : i32
    %c0_i32 = arith.constant 0 : i32
    %c0_i32_0 = arith.constant 0 : i32
    return %0, %c0_i32 : i32, i32
  }
}

module attributes {stable_mosaic.version = 11 : i64} {
  func.func @kernel(%arg0: i32, %arg1: i32, %arg2: memref<32x512xbf16, #tpu.memory_space<vmem>>, %arg3: memref<512x128xbf16, #tpu.memory_space<vmem>>, %arg4: memref<1x128xf32, #tpu.memory_space<vmem>>, %arg5: memref<1x128xf32, #tpu.memory_space<vmem>>, %arg6: memref<32x128xf32, #tpu.memory_space<vmem>>, %arg7: memref<1x128xf32, #tpu.memory_space<vmem>>, %arg8: memref<1x128xf32, #tpu.memory_space<vmem>>) attributes {dimension_semantics = [#tpu.dimension_semantics<arbitrary>, #tpu.dimension_semantics<arbitrary>], iteration_bounds = array<i64: 2, 1>, scalar_prefetch = 0 : i64, scratch_operands = 2 : i64, tpu.core_type = #tpu.core_type<tc>, window_params = [{transform_indices = @transform_0, window_bounds = array<i64: 32, 512>}, {pipeline_mode = #tpu.pipeline_mode<synchronous>, transform_indices = @transform_1, window_bounds = array<i64: 512, 128>}, {pipeline_mode = #tpu.pipeline_mode<synchronous>, transform_indices = @transform_2, window_bounds = array<i64: 1, 128>}, {pipeline_mode = #tpu.pipeline_mode<synchronous>, transform_indices = @transform_3, window_bounds = array<i64: 1, 128>}, {transform_indices = @transform_4, window_bounds = array<i64: 32, 128>}]} {
    %c0 = arith.constant 0 : index
    %c0_0 = arith.constant 0 : index
    %0 = vector.load %arg2[%c0, %c0_0] : memref<32x512xbf16, #tpu.memory_space<vmem>>, vector<32x512xbf16>
    %c0_1 = arith.constant 0 : index
    %c0_2 = arith.constant 0 : index
    %1 = vector.load %arg3[%c0_1, %c0_2] : memref<512x128xbf16, #tpu.memory_space<vmem>>, vector<512x128xbf16>
    %cst = arith.constant dense<0.000000e+00> : vector<32x128xf32>
    %2 = tpu.matmul %0, %1, %cst {dimension_numbers = #tpu.dot_dimension_numbers<[1], [0], [0], [1], [0, 0, 1, 1], [], []>} : vector<32x512xbf16>, vector<512x128xbf16>, vector<32x128xf32> -> vector<32x128xf32>
    %c0_i32 = arith.constant 0 : i32
    %3 = arith.cmpi eq, %arg0, %c0_i32 : i32
    %c0_i32_3 = arith.constant 0 : i32
    %4 = arith.cmpi eq, %arg1, %c0_i32_3 : i32
    %5 = arith.andi %3, %4 : i1
    %6 = arith.extui %5 : i1 to i32
    %c0_i32_4 = arith.constant 0 : i32
    %7 = arith.cmpi ne, %6, %c0_i32_4 : i32
    scf.if %7 {
      %cst_8 = arith.constant 0.000000e+00 : f32
      %14 = vector.broadcast %cst_8 : f32 to vector<1x128xf32>
      %c0_9 = arith.constant 0 : index
      %c0_10 = arith.constant 0 : index
      %15 = vector.load %arg7[%c0_9, %c0_10] : memref<1x128xf32, #tpu.memory_space<vmem>>, vector<1x128xf32>
      tpu.vector_store %arg7[%c0_9, %c0_10], %14 {strides = array<i32>} : memref<1x128xf32, #tpu.memory_space<vmem>>, vector<1x128xf32>,
      %cst_11 = arith.constant 0.000000e+00 : f32
      %16 = vector.broadcast %cst_11 : f32 to vector<1x128xf32>
      %c0_12 = arith.constant 0 : index
      %c0_13 = arith.constant 0 : index
      %17 = vector.load %arg8[%c0_12, %c0_13] : memref<1x128xf32, #tpu.memory_space<vmem>>, vector<1x128xf32>
      tpu.vector_store %arg8[%c0_12, %c0_13], %16 {strides = array<i32>} : memref<1x128xf32, #tpu.memory_space<vmem>>, vector<1x128xf32>,
    } else {
    }
    %c0_i32_5 = arith.constant 0 : i32
    %8 = arith.cmpi eq, %arg0, %c0_i32_5 : i32
    %9 = arith.extui %8 : i1 to i32
    %c0_i32_6 = arith.constant 0 : i32
    %10 = arith.cmpi ne, %9, %c0_i32_6 : i32
    scf.if %10 {
      %c0_8 = arith.constant 0 : index
      %c0_9 = arith.constant 0 : index
      %14 = vector.load %arg7[%c0_8, %c0_9] : memref<1x128xf32, #tpu.memory_space<vmem>>, vector<1x128xf32>
      %cst_10 = arith.constant dense<0.000000e+00> : vector<128xf32>
      %15 = vector.multi_reduction <add>, %2, %cst_10 [0] : vector<32x128xf32> to vector<128xf32>
      %16 = vector.shape_cast %15 : vector<128xf32> to vector<1x128xf32>
      %17 = arith.addf %14, %16 : vector<1x128xf32>
      %c0_11 = arith.constant 0 : index
      %c0_12 = arith.constant 0 : index
      %18 = vector.load %arg7[%c0_11, %c0_12] : memref<1x128xf32, #tpu.memory_space<vmem>>, vector<1x128xf32>
      tpu.vector_store %arg7[%c0_11, %c0_12], %17 {strides = array<i32>} : memref<1x128xf32, #tpu.memory_space<vmem>>, vector<1x128xf32>,
      %c0_13 = arith.constant 0 : index
      %c0_14 = arith.constant 0 : index
      %19 = vector.load %arg8[%c0_13, %c0_14] : memref<1x128xf32, #tpu.memory_space<vmem>>, vector<1x128xf32>
      %20 = arith.mulf %2, %2 : vector<32x128xf32>
      %cst_15 = arith.constant dense<0.000000e+00> : vector<128xf32>
      %21 = vector.multi_reduction <add>, %20, %cst_15 [0] : vector<32x128xf32> to vector<128xf32>
      %22 = vector.shape_cast %21 : vector<128xf32> to vector<1x128xf32>
      %23 = arith.addf %19, %22 : vector<1x128xf32>
      %c0_16 = arith.constant 0 : index
      %c0_17 = arith.constant 0 : index
      %24 = vector.load %arg8[%c0_16, %c0_17] : memref<1x128xf32, #tpu.memory_space<vmem>>, vector<1x128xf32>
      tpu.vector_store %arg8[%c0_16, %c0_17], %23 {strides = array<i32>} : memref<1x128xf32, #tpu.memory_space<vmem>>, vector<1x128xf32>,
    } else {
    }
    %c1_i32 = arith.constant 1 : i32
    %11 = arith.cmpi eq, %arg0, %c1_i32 : i32
    %12 = arith.extui %11 : i1 to i32
    %c0_i32_7 = arith.constant 0 : i32
    %13 = arith.cmpi ne, %12, %c0_i32_7 : i32
    scf.if %13 {
      %c0_8 = arith.constant 0 : index
      %c0_9 = arith.constant 0 : index
      %14 = vector.load %arg7[%c0_8, %c0_9] : memref<1x128xf32, #tpu.memory_space<vmem>>, vector<1x128xf32>
      %cst_10 = arith.constant 3.125000e-02 : f32
      %15 = vector.broadcast %cst_10 : f32 to vector<1x128xf32>
      %16 = arith.mulf %14, %15 : vector<1x128xf32>
      %c0_11 = arith.constant 0 : index
      %c0_12 = arith.constant 0 : index
      %17 = vector.load %arg8[%c0_11, %c0_12] : memref<1x128xf32, #tpu.memory_space<vmem>>, vector<1x128xf32>
      %cst_13 = arith.constant 3.125000e-02 : f32
      %18 = vector.broadcast %cst_13 : f32 to vector<1x128xf32>
      %19 = arith.mulf %17, %18 : vector<1x128xf32>
      %20 = arith.mulf %16, %16 : vector<1x128xf32>
      %21 = arith.subf %19, %20 : vector<1x128xf32>
      %cst_14 = arith.constant 9.99999974E-6 : f32
      %22 = vector.broadcast %cst_14 : f32 to vector<1x128xf32>
      %23 = arith.addf %21, %22 : vector<1x128xf32>
      %24 = math.rsqrt %23 : vector<1x128xf32>
      %25 = vector.broadcast %16 : vector<1x128xf32> to vector<32x128xf32>
      %26 = arith.subf %2, %25 : vector<32x128xf32>
      %c0_15 = arith.constant 0 : index
      %c0_16 = arith.constant 0 : index
      %27 = vector.load %arg4[%c0_15, %c0_16] : memref<1x128xf32, #tpu.memory_space<vmem>>, vector<1x128xf32>
      %28 = arith.mulf %24, %27 : vector<1x128xf32>
      %29 = vector.broadcast %28 : vector<1x128xf32> to vector<32x128xf32>
      %30 = arith.mulf %26, %29 : vector<32x128xf32>
      %c0_17 = arith.constant 0 : index
      %c0_18 = arith.constant 0 : index
      %31 = vector.load %arg5[%c0_17, %c0_18] : memref<1x128xf32, #tpu.memory_space<vmem>>, vector<1x128xf32>
      %32 = vector.broadcast %31 : vector<1x128xf32> to vector<32x128xf32>
      %33 = arith.addf %30, %32 : vector<32x128xf32>
      %cst_19 = arith.constant 0.000000e+00 : f32
      %34 = vector.broadcast %cst_19 : f32 to vector<32x128xf32>
      %35 = arith.cmpf oge, %33, %34 : vector<32x128xf32>
      %cst_20 = arith.constant 2.000000e-01 : f32
      %36 = vector.broadcast %cst_20 : f32 to vector<32x128xf32>
      %37 = arith.mulf %36, %33 : vector<32x128xf32>
      %38 = arith.select %35, %33, %37 : vector<32x128xi1>, vector<32x128xf32>
      %c0_21 = arith.constant 0 : index
      %c0_22 = arith.constant 0 : index
      %39 = vector.load %arg6[%c0_21, %c0_22] : memref<32x128xf32, #tpu.memory_space<vmem>>, vector<32x128xf32>
      tpu.vector_store %arg6[%c0_21, %c0_22], %38 {strides = array<i32>} : memref<32x128xf32, #tpu.memory_space<vmem>>, vector<32x128xf32>,
    } else {
    }
    return
  }
  func.func @transform_0(%arg0: i32, %arg1: i32) -> (i32, i32) {
    %c0_i32 = arith.constant 0 : i32
    %c0_i32_0 = arith.constant 0 : i32
    return %arg1, %c0_i32 : i32, i32
  }
  func.func @transform_1(%arg0: i32, %arg1: i32) -> (i32, i32) {
    %c0_i32 = arith.constant 0 : i32
    %c0_i32_0 = arith.constant 0 : i32
    %c0_i32_1 = arith.constant 0 : i32
    return %c0_i32, %c0_i32_0 : i32, i32
  }
  func.func @transform_2(%arg0: i32, %arg1: i32) -> (i32, i32) {
    %c0_i32 = arith.constant 0 : i32
    %c0_i32_0 = arith.constant 0 : i32
    %c0_i32_1 = arith.constant 0 : i32
    return %c0_i32, %c0_i32_0 : i32, i32
  }
  func.func @transform_3(%arg0: i32, %arg1: i32) -> (i32, i32) {
    %c0_i32 = arith.constant 0 : i32
    %c0_i32_0 = arith.constant 0 : i32
    %c0_i32_1 = arith.constant 0 : i32
    return %c0_i32, %c0_i32_0 : i32, i32
  }
  func.func @transform_4(%arg0: i32, %arg1: i32) -> (i32, i32) {
    %0 = arith.muli %arg0, %arg1 : i32
    %c0_i32 = arith.constant 0 : i32
    %c0_i32_0 = arith.constant 0 : i32
    return %0, %c0_i32 : i32, i32
  }
}

module attributes {stable_mosaic.version = 11 : i64} {
  func.func @kernel(%arg0: i32, %arg1: memref<8x1024xbf16, #tpu.memory_space<vmem>>, %arg2: memref<1024x128xbf16, #tpu.memory_space<vmem>>, %arg3: memref<8x128xf32, #tpu.memory_space<vmem>>) attributes {dimension_semantics = [#tpu.dimension_semantics<parallel>], iteration_bounds = array<i64: 1>, scalar_prefetch = 0 : i64, scratch_operands = 0 : i64, tpu.core_type = #tpu.core_type<tc>, window_params = [{transform_indices = @transform_0, window_bounds = array<i64: 8, 1024>}, {pipeline_mode = #tpu.pipeline_mode<synchronous>, transform_indices = @transform_1, window_bounds = array<i64: 1024, 128>}, {transform_indices = @transform_2, window_bounds = array<i64: 8, 128>}]} {
    %c0 = arith.constant 0 : index
    %c0_0 = arith.constant 0 : index
    %0 = vector.load %arg1[%c0, %c0_0] : memref<8x1024xbf16, #tpu.memory_space<vmem>>, vector<8x1024xbf16>
    %c0_1 = arith.constant 0 : index
    %c0_2 = arith.constant 0 : index
    %1 = vector.load %arg2[%c0_1, %c0_2] : memref<1024x128xbf16, #tpu.memory_space<vmem>>, vector<1024x128xbf16>
    %cst = arith.constant dense<0.000000e+00> : vector<8x128xf32>
    %2 = tpu.matmul %0, %1, %cst {dimension_numbers = #tpu.dot_dimension_numbers<[1], [0], [0], [1], [0, 0, 1, 1], [], []>} : vector<8x1024xbf16>, vector<1024x128xbf16>, vector<8x128xf32> -> vector<8x128xf32>
    %cst_3 = arith.constant 0.000000e+00 : f32
    %3 = vector.broadcast %cst_3 : f32 to vector<8x128xf32>
    %4 = arith.subf %3, %2 : vector<8x128xf32>
    %5 = math.exp %4 : vector<8x128xf32>
    %cst_4 = arith.constant 1.000000e+00 : f32
    %6 = vector.broadcast %cst_4 : f32 to vector<8x128xf32>
    %7 = arith.addf %6, %5 : vector<8x128xf32>
    %cst_5 = arith.constant 1.000000e+00 : f32
    %8 = vector.broadcast %cst_5 : f32 to vector<8x128xf32>
    %9 = arith.divf %8, %7 : vector<8x128xf32>
    %c0_6 = arith.constant 0 : index
    %c0_7 = arith.constant 0 : index
    %10 = vector.load %arg3[%c0_6, %c0_7] : memref<8x128xf32, #tpu.memory_space<vmem>>, vector<8x128xf32>
    tpu.vector_store %arg3[%c0_6, %c0_7], %9 {strides = array<i32>} : memref<8x128xf32, #tpu.memory_space<vmem>>, vector<8x128xf32>,
    return
  }
  func.func @transform_0(%arg0: i32) -> (i32, i32) {
    %c0_i32 = arith.constant 0 : i32
    %c0_i32_0 = arith.constant 0 : i32
    return %arg0, %c0_i32 : i32, i32
  }
  func.func @transform_1(%arg0: i32) -> (i32, i32) {
    %c0_i32 = arith.constant 0 : i32
    %c0_i32_0 = arith.constant 0 : i32
    %c0_i32_1 = arith.constant 0 : i32
    return %c0_i32, %c0_i32_0 : i32, i32
  }
  func.func @transform_2(%arg0: i32) -> (i32, i32) {
    %c0_i32 = arith.constant 0 : i32
    %c0_i32_0 = arith.constant 0 : i32
    return %arg0, %c0_i32 : i32, i32
  }
}

</mosaic_0001>

<llo_original>
// kernel: discriminator_forward.5
$region0: #{discriminator_forward.5}
  #allocation0 [shape = 'u32[]', space=smem, size = 0x4, offset = 0x4, fixed_abs, tag = 'smem constant byte address 0x4 - core index']
  #allocation1 [shape = 'u32[144,128]{1,0:T(1,128)}', space=vmem, size = 0x12000, scoped, tag = 'internal scratch']
  %s0 = inlined_call_operand.vmem [shape: bf16[2048,128], index: 0, kind: input, shape index: {}]
  %s1 = inlined_call_operand.vmem [shape: bf16[128,128], index: 1, kind: input, shape index: {}]
  %s2 = inlined_call_operand.vmem [shape: f32[2048,128], index: 2, kind: output, shape index: {}]
  %s3 = sld [smem:[#allocation0]]
  $region41: #{discriminator_forward.5} parent=0
    _
  %s5 = ssub.s32 1, %s3
  %s6 = scalar_select 0, %s5, %s3
  loop: start=0, step=1, limit=6
  $region2: #{discriminator_forward.5} parent=0 // loop_pre_header
    _
  $region3: #{discriminator_forward.5} parent=0 // loop_header
    %s8 = sphi 0, %s12
    %p9 = scmp.ge.s32.totalorder %s8, 6
    %s18 = sphi 0, %s20
    %s21 = sphi 0, %s18
    %s22 = sphi 0, %s21
    %s38 = sphi 0, %s22
    %s42 = sphi 0, %s42
    %s44 = sphi 0, %s42
    %s45 = sphi 0, %s44
    %s59 = sphi 0, %s45
    %s65 = sphi 0, %s67
    %s68 = sphi 0, %s65
    %s69 = sphi 0, %s68
    %s85 = sphi 0, %s69
  $region4: #{discriminator_forward.5} parent=0 // loop_header_branch
    %11 = sbr.rel (%p9) target = $region8
  $region5: #{discriminator_forward.5} parent=0 // loop_body
    %s13 = ssub.s32 %s8, 1
    %s14 = ssub.s32 %s8, 2
    %s15 = sadd.s32 %s8, 1
    %s16 = ssub.s32 %s8, %s15
    %p17 = scmp.eq.s32.totalorder %s16, 0
    %s19 = sadd.s32 %s18, 1
    %s20 = scalar_select %p17, %s18, %s19
    %p23 = pneg %p17
    %p24 = scmp.eq.s32.totalorder %s8, 3
    %p25 = por %p23, %p24
    %p26 = scmp.ne.s32.totalorder %s18, %s21
    %p27 = scmp.eq.s32.totalorder %s8, 0
    %p28 = por %p26, %p27
    %p29 = scmp.ne.s32.totalorder %s18, %s21
    %p30 = scmp.eq.s32.totalorder %s13, 3
    %p31 = por %p29, %p30
    %p32 = scmp.ne.s32.totalorder %s21, %s22
    %p33 = scmp.eq.s32.totalorder %s13, 0
    %p34 = por %p32, %p33
    %p35 = scmp.ne.s32.totalorder %s21, %s22
    %p36 = scmp.eq.s32.totalorder %s14, 3
    %p37 = por %p35, %p36
    %p39 = scmp.ne.s32.totalorder %s22, %s38
    %p40 = scmp.eq.s32.totalorder %s14, 0
    %p41 = por %p39, %p40
    %s43 = sadd.s32 %s42, 1
    %p46 = scmp.eq.s32.totalorder %s8, 3
    %p47 = scmp.ne.s32.totalorder %s42, %s44
    %p48 = scmp.eq.s32.totalorder %s8, 0
    %p49 = por %p47, %p48
    %p50 = scmp.ne.s32.totalorder %s42, %s44
    %p51 = scmp.eq.s32.totalorder %s13, 3
    %p52 = por %p50, %p51
    %p53 = scmp.ne.s32.totalorder %s44, %s45
    %p54 = scmp.eq.s32.totalorder %s13, 0
    %p55 = por %p53, %p54
    %p56 = scmp.ne.s32.totalorder %s44, %s45
    %p57 = scmp.eq.s32.totalorder %s14, 3
    %p58 = por %p56, %p57
    %p60 = scmp.ne.s32.totalorder %s45, %s59
    %p61 = scmp.eq.s32.totalorder %s14, 0
    %p62 = por %p60, %p61
    %s63 = ssub.s32 %s8, %s15
    %p64 = scmp.eq.s32.totalorder %s63, 0
    %s66 = sadd.s32 %s65, 1
    %s67 = scalar_select %p64, %s65, %s66
    %p70 = pneg %p64
    %p71 = scmp.eq.s32.totalorder %s8, 3
    %p72 = por %p70, %p71
    %p73 = scmp.ne.s32.totalorder %s65, %s68
    %p74 = scmp.eq.s32.totalorder %s8, 0
    %p75 = por %p73, %p74
    %p76 = scmp.ne.s32.totalorder %s65, %s68
    %p77 = scmp.eq.s32.totalorder %s13, 3
    %p78 = por %p76, %p77
    %p79 = scmp.ne.s32.totalorder %s68, %s69
    %p80 = scmp.eq.s32.totalorder %s13, 0
    %p81 = por %p79, %p80
    %p82 = scmp.ne.s32.totalorder %s68, %s69
    %p83 = scmp.eq.s32.totalorder %s14, 3
    %p84 = por %p82, %p83
    %p86 = scmp.ne.s32.totalorder %s69, %s85
    %p87 = scmp.eq.s32.totalorder %s14, 0
    %p88 = por %p86, %p87
    %p89 = scmp.le.s32.totalorder 1, %s8
    %p90 = scmp.lt.s32.totalorder %s8, 5
    %p91 = pnand %p89, %p90
    %p92 = pneg %p91
    // Predicated region
    $region9: #{discriminator_forward.5} parent=5 // pred_check
      _
    $region10: #{discriminator_forward.5} parent=5 // pred_check_branch
      %94 = sbr.rel (%p91) target = $region12
    $region11: #{discriminator_forward.5} parent=5 // pred_region
      %s95 = ssub.s32 %s8, 1
      // Predicated region
      $region13: #{discriminator_forward.5} parent=11 // pred_check
        %p96 = pneg %p55
      $region14: #{discriminator_forward.5} parent=11 // pred_check_branch
        %98 = sbr.rel (%p96) target = $region16
      $region15: #{discriminator_forward.5} parent=11 // pred_region
        _
      $region16: #{discriminator_forward.5} parent=11 // pred_fallthru
        _
    $region12: #{discriminator_forward.5} parent=5 // pred_fallthru
      _
    %p99 = scmp.lt.s32.totalorder %s8, 4
    // Predicated region
    $region17: #{discriminator_forward.5} parent=5 // pred_check
      %p100 = pneg %p99
    $region18: #{discriminator_forward.5} parent=5 // pred_check_branch
      %102 = sbr.rel (%p100) target = $region20
    $region19: #{discriminator_forward.5} parent=5 // pred_region
      // Predicated region
      $region21: #{discriminator_forward.5} parent=19 // pred_check
        %p103 = pneg %p28
      $region22: #{discriminator_forward.5} parent=19 // pred_check_branch
        %105 = sbr.rel (%p103) target = $region24
      $region23: #{discriminator_forward.5} parent=19 // pred_region
        %s106 = smul.u32 64, %s8
        %p107 = scmp.lt.s32.totalorder %s106, 255
        %s108 = scalar_select %p107, %s106, 255
        %s109 = smul.addr %s108, 4
        %s110 = scalar_lea.vmem %s0, %s109
        %s111 = smul.u32 64, %s8
      $region24: #{discriminator_forward.5} parent=19 // pred_fallthru
        _
    $region20: #{discriminator_forward.5} parent=5 // pred_fallthru
      _
    %p112 = scmp.le.s32.totalorder 1, %s8
    %p113 = scmp.lt.s32.totalorder %s8, 5
    %p114 = pnand %p112, %p113
    %p115 = pneg %p114
    // Predicated region
    $region25: #{discriminator_forward.5} parent=5 // pred_check
      _
    $region26: #{discriminator_forward.5} parent=5 // pred_check_branch
      %117 = sbr.rel (%p114) target = $region28
    $region27: #{discriminator_forward.5} parent=5 // pred_region
      %s118 = ssub.s32 %s8, 1
      %s119 = smul.u32 64, %s13
      %p120 = scmp.lt.s32.totalorder %s119, 255
      %s121 = scalar_select %p120, %s119, 255
      %s122 = smul.addr %s121, 4
      %s123 = scalar_lea.vmem %s0, %s122
      %p124 = pneg %p34
      %p125 = pneg %p31
      %p126 = pneg %p55
      %p127 = pneg %p52
      %p128 = pneg %p81
      %p129 = pneg %p78
      %s130 = smul.u32 64, %s13
      %p131 = scmp.lt.s32.totalorder %s130, 255
      %s132 = scalar_select %p131, %s130, 255
      %s133 = smul.addr %s132, 8
      %s134 = scalar_lea.vmem %s2, %s133
      %s135 = smul.u32 64, %s13
      %p136 = scmp.lt.s32.totalorder %s135, 255
      %s137 = scalar_select %p136, %s135, 255
      %s138 = smul.addr %s137, 4
      %s139 = scalar_lea.vmem %s0, %s138
      %s140 = smul.u32 64, %s13
      %s141 = smul.u32 64, %s13
      %p142 = scmp.lt.s32.totalorder %s141, 255
      %s143 = scalar_select %p142, %s141, 255
      %s144 = smul.addr %s143, 8
      %s145 = scalar_lea.vmem %s2, %s144
      %s146 = smul.u32 64, %s13
      %v148 = vld [vmem:[%s139] sm:$0xf]
      %v149 = vld [vmem:[%s139 + $0x4] sm:$0xf]
      %v150 = vld [vmem:[%s139 + $0x8] sm:$0xf]
      %v151 = vld [vmem:[%s139 + $0xc] sm:$0xf]
      %v152 = vld [vmem:[%s139 + $0x10] sm:$0xf]
      %v153 = vld [vmem:[%s139 + $0x14] sm:$0xf]
      %v154 = vld [vmem:[%s139 + $0x18] sm:$0xf]
      %v155 = vld [vmem:[%s139 + $0x1c] sm:$0xf]
      %v156 = vld [vmem:[%s139 + $0x20] sm:$0xf]
      %v157 = vld [vmem:[%s139 + $0x24] sm:$0xf]
      %v158 = vld [vmem:[%s139 + $0x28] sm:$0xf]
      %v159 = vld [vmem:[%s139 + $0x2c] sm:$0xf]
      %v160 = vld [vmem:[%s139 + $0x30] sm:$0xf]
      %v161 = vld [vmem:[%s139 + $0x34] sm:$0xf]
      %v162 = vld [vmem:[%s139 + $0x38] sm:$0xf]
      %v163 = vld [vmem:[%s139 + $0x3c] sm:$0xf]
      %v164 = vld [vmem:[%s139 + $0x40] sm:$0xf]
      %v165 = vld [vmem:[%s139 + $0x44] sm:$0xf]
      %v166 = vld [vmem:[%s139 + $0x48] sm:$0xf]
      %v167 = vld [vmem:[%s139 + $0x4c] sm:$0xf]
      %v168 = vld [vmem:[%s139 + $0x50] sm:$0xf]
      %v169 = vld [vmem:[%s139 + $0x54] sm:$0xf]
      %v170 = vld [vmem:[%s139 + $0x58] sm:$0xf]
      %v171 = vld [vmem:[%s139 + $0x5c] sm:$0xf]
      %v172 = vld [vmem:[%s139 + $0x60] sm:$0xf]
      %v173 = vld [vmem:[%s139 + $0x64] sm:$0xf]
      %v174 = vld [vmem:[%s139 + $0x68] sm:$0xf]
      %v175 = vld [vmem:[%s139 + $0x6c] sm:$0xf]
      %v176 = vld [vmem:[%s139 + $0x70] sm:$0xf]
      %v177 = vld [vmem:[%s139 + $0x74] sm:$0xf]
      %v178 = vld [vmem:[%s139 + $0x78] sm:$0xf]
      %v179 = vld [vmem:[%s139 + $0x7c] sm:$0xf]
      %v180 = vld [vmem:[%s139 + $0x80] sm:$0xf]
      %v181 = vld [vmem:[%s139 + $0x84] sm:$0xf]
      %v182 = vld [vmem:[%s139 + $0x88] sm:$0xf]
      %v183 = vld [vmem:[%s139 + $0x8c] sm:$0xf]
      %v184 = vld [vmem:[%s139 + $0x90] sm:$0xf]
      %v185 = vld [vmem:[%s139 + $0x94] sm:$0xf]
      %v186 = vld [vmem:[%s139 + $0x98] sm:$0xf]
      %v187 = vld [vmem:[%s139 + $0x9c] sm:$0xf]
      %v188 = vld [vmem:[%s139 + $0xa0] sm:$0xf]
      %v189 = vld [vmem:[%s139 + $0xa4] sm:$0xf]
      %v190 = vld [vmem:[%s139 + $0xa8] sm:$0xf]
      %v191 = vld [vmem:[%s139 + $0xac] sm:$0xf]
      %v192 = vld [vmem:[%s139 + $0xb0] sm:$0xf]
      %v193 = vld [vmem:[%s139 + $0xb4] sm:$0xf]
      %v194 = vld [vmem:[%s139 + $0xb8] sm:$0xf]
      %v195 = vld [vmem:[%s139 + $0xbc] sm:$0xf]
      %v196 = vld [vmem:[%s139 + $0xc0] sm:$0xf]
      %v197 = vld [vmem:[%s139 + $0xc4] sm:$0xf]
      %v198 = vld [vmem:[%s139 + $0xc8] sm:$0xf]
      %v199 = vld [vmem:[%s139 + $0xcc] sm:$0xf]
      %v200 = vld [vmem:[%s139 + $0xd0] sm:$0xf]
      %v201 = vld [vmem:[%s139 + $0xd4] sm:$0xf]
      %v202 = vld [vmem:[%s139 + $0xd8] sm:$0xf]
      %v203 = vld [vmem:[%s139 + $0xdc] sm:$0xf]
      %v204 = vld [vmem:[%s139 + $0xe0] sm:$0xf]
      %v205 = vld [vmem:[%s139 + $0xe4] sm:$0xf]
      %v206 = vld [vmem:[%s139 + $0xe8] sm:$0xf]
      %v207 = vld [vmem:[%s139 + $0xec] sm:$0xf]
      %v208 = vld [vmem:[%s139 + $0xf0] sm:$0xf]
      %v209 = vld [vmem:[%s139 + $0xf4] sm:$0xf]
      %v210 = vld [vmem:[%s139 + $0xf8] sm:$0xf]
      %v211 = vld [vmem:[%s139 + $0xfc] sm:$0xf]
      %v212 = vld [vmem:[%s1] sm:$0xf]
      %v213 = vld [vmem:[%s1 + $0x4] sm:$0xf]
      %v214 = vld [vmem:[%s1 + $0x8] sm:$0xf]
      %v215 = vld [vmem:[%s1 + $0xc] sm:$0xf]
      %v216 = vld [vmem:[%s1 + $0x10] sm:$0xf]
      %v217 = vld [vmem:[%s1 + $0x14] sm:$0xf]
      %v218 = vld [vmem:[%s1 + $0x18] sm:$0xf]
      %v219 = vld [vmem:[%s1 + $0x1c] sm:$0xf]
      %v220 = vld [vmem:[%s1 + $0x20] sm:$0xf]
      %v221 = vld [vmem:[%s1 + $0x24] sm:$0xf]
      %v222 = vld [vmem:[%s1 + $0x28] sm:$0xf]
      %v223 = vld [vmem:[%s1 + $0x2c] sm:$0xf]
      %v224 = vld [vmem:[%s1 + $0x30] sm:$0xf]
      %v225 = vld [vmem:[%s1 + $0x34] sm:$0xf]
      %v226 = vld [vmem:[%s1 + $0x38] sm:$0xf]
      %v227 = vld [vmem:[%s1 + $0x3c] sm:$0xf]
      %v292 = vunpack.c.l.b16 %v148
      %v293 = vunpack.c.l.b16 %v149
      %v294 = vunpack.c.l.b16 %v150
      %v295 = vunpack.c.l.b16 %v151
      %v296 = vunpack.c.l.b16 %v152
      %v297 = vunpack.c.l.b16 %v153
      %v298 = vunpack.c.l.b16 %v154
      %v299 = vunpack.c.l.b16 %v155
      %v300 = vunpack.c.l.b16 %v156
      %v301 = vunpack.c.l.b16 %v157
      %v302 = vunpack.c.l.b16 %v158
      %v303 = vunpack.c.l.b16 %v159
      %v304 = vunpack.c.l.b16 %v160
      %v305 = vunpack.c.l.b16 %v161
      %v306 = vunpack.c.l.b16 %v162
      %v307 = vunpack.c.l.b16 %v163
      %v308 = vunpack.c.l.b16 %v164
      %v309 = vunpack.c.l.b16 %v165
      %v310 = vunpack.c.l.b16 %v166
      %v311 = vunpack.c.l.b16 %v167
      %v312 = vunpack.c.l.b16 %v168
      %v313 = vunpack.c.l.b16 %v169
      %v314 = vunpack.c.l.b16 %v170
      %v315 = vunpack.c.l.b16 %v171
      %v316 = vunpack.c.l.b16 %v172
      %v317 = vunpack.c.l.b16 %v173
      %v318 = vunpack.c.l.b16 %v174
      %v319 = vunpack.c.l.b16 %v175
      %v320 = vunpack.c.l.b16 %v176
      %v321 = vunpack.c.l.b16 %v177
      %v322 = vunpack.c.l.b16 %v178
      %v323 = vunpack.c.l.b16 %v179
      %v324 = vunpack.c.l.b16 %v180
      %v325 = vunpack.c.l.b16 %v181
      %v326 = vunpack.c.l.b16 %v182
      %v327 = vunpack.c.l.b16 %v183
      %v328 = vunpack.c.l.b16 %v184
      %v329 = vunpack.c.l.b16 %v185
      %v330 = vunpack.c.l.b16 %v186
      %v331 = vunpack.c.l.b16 %v187
      %v332 = vunpack.c.l.b16 %v188
      %v333 = vunpack.c.l.b16 %v189
      %v334 = vunpack.c.l.b16 %v190
      %v335 = vunpack.c.l.b16 %v191
      %v336 = vunpack.c.l.b16 %v192
      %v337 = vunpack.c.l.b16 %v193
      %v338 = vunpack.c.l.b16 %v194
      %v339 = vunpack.c.l.b16 %v195
      %v340 = vunpack.c.l.b16 %v196
      %v341 = vunpack.c.l.b16 %v197
      %v342 = vunpack.c.l.b16 %v198
      %v343 = vunpack.c.l.b16 %v199
      %v344 = vunpack.c.l.b16 %v200
      %v345 = vunpack.c.l.b16 %v201
      %v346 = vunpack.c.l.b16 %v202
      %v347 = vunpack.c.l.b16 %v203
      %v348 = vunpack.c.l.b16 %v204
      %v349 = vunpack.c.l.b16 %v205
      %v350 = vunpack.c.l.b16 %v206
      %v351 = vunpack.c.l.b16 %v207
      %v352 = vunpack.c.l.b16 %v208
      %v353 = vunpack.c.l.b16 %v209
      %v354 = vunpack.c.l.b16 %v210
      %v355 = vunpack.c.l.b16 %v211
      %v356 = vpack.c.b16 %v293, %v292
      %v357 = vpack.c.b16 %v295, %v294
      %v358 = vpack.c.b16 %v297, %v296
      %v359 = vpack.c.b16 %v299, %v298
      %v360 = vpack.c.b16 %v301, %v300
      %v361 = vpack.c.b16 %v303, %v302
      %v362 = vpack.c.b16 %v305, %v304
      %v363 = vpack.c.b16 %v307, %v306
      %v364 = vpack.c.b16 %v309, %v308
      %v365 = vpack.c.b16 %v311, %v310
      %v366 = vpack.c.b16 %v313, %v312
      %v367 = vpack.c.b16 %v315, %v314
      %v368 = vpack.c.b16 %v317, %v316
      %v369 = vpack.c.b16 %v319, %v318
      %v370 = vpack.c.b16 %v321, %v320
      %v371 = vpack.c.b16 %v323, %v322
      %v372 = vpack.c.b16 %v325, %v324
      %v373 = vpack.c.b16 %v327, %v326
      %v374 = vpack.c.b16 %v329, %v328
      %v375 = vpack.c.b16 %v331, %v330
      %v376 = vpack.c.b16 %v333, %v332
      %v377 = vpack.c.b16 %v335, %v334
      %v378 = vpack.c.b16 %v337, %v336
      %v379 = vpack.c.b16 %v339, %v338
      %v380 = vpack.c.b16 %v341, %v340
      %v381 = vpack.c.b16 %v343, %v342
      %v382 = vpack.c.b16 %v345, %v344
      %v383 = vpack.c.b16 %v347, %v346
      %v384 = vpack.c.b16 %v349, %v348
      %v385 = vpack.c.b16 %v351, %v350
      %v386 = vpack.c.b16 %v353, %v352
      %v387 = vpack.c.b16 %v355, %v354
      %v436 = vunpack.c.l.b16 %v212
      %v437 = vunpack.c.l.b16 %v213
      %v438 = vunpack.c.l.b16 %v214
      %v439 = vunpack.c.l.b16 %v215
      %v440 = vunpack.c.l.b16 %v216
      %v441 = vunpack.c.l.b16 %v217
      %v442 = vunpack.c.l.b16 %v218
      %v443 = vunpack.c.l.b16 %v219
      %v444 = vunpack.c.l.b16 %v220
      %v445 = vunpack.c.l.b16 %v221
      %v446 = vunpack.c.l.b16 %v222
      %v447 = vunpack.c.l.b16 %v223
      %v448 = vunpack.c.l.b16 %v224
      %v449 = vunpack.c.l.b16 %v225
      %v450 = vunpack.c.l.b16 %v226
      %v451 = vunpack.c.l.b16 %v227
      %v452 = vpack.c.b16 %v437, %v436
      %v453 = vpack.c.b16 %v439, %v438
      %v454 = vpack.c.b16 %v441, %v440
      %v455 = vpack.c.b16 %v443, %v442
      %v456 = vpack.c.b16 %v445, %v444
      %v457 = vpack.c.b16 %v447, %v446
      %v458 = vpack.c.b16 %v449, %v448
      %v459 = vpack.c.b16 %v451, %v450
      %468 = vmatprep.subr.bf16.mxu0 0
      %469 = vmatpush1.bf16.msra.mxu0 %v452
      %470 = vmatprep.subr.bf16.mxu0 0
      %471 = vmatpush1.bf16.msra.mxu0 %v453
      %472 = vmatprep.subr.bf16.mxu0 0
      %473 = vmatpush1.bf16.msra.mxu0 %v454
      %474 = vmatprep.subr.bf16.mxu0 0
      %475 = vmatpush1.bf16.msra.mxu0 %v455
      %476 = vmatprep.subr.bf16.mxu0 0
      %477 = vmatpush1.bf16.msra.mxu0 %v456
      %478 = vmatprep.subr.bf16.mxu0 0
      %479 = vmatpush1.bf16.msra.mxu0 %v457
      %480 = vmatprep.subr.bf16.mxu0 0
      %481 = vmatpush1.bf16.msra.mxu0 %v458
      %482 = vmatprep.subr.bf16.mxu0 0
      %483 = vmatpush1.bf16.msra.mxu0 %v459
      %484 = vmatprep.subr.bf16.mxu0 0
      %485 = vmatpush1.bf16.msra.mxu0 0
      %486 = vmatprep.subr.bf16.mxu0 0
      %487 = vmatpush1.bf16.msra.mxu0 0
      %488 = vmatprep.subr.bf16.mxu0 0
      %489 = vmatpush1.bf16.msra.mxu0 0
      %490 = vmatprep.subr.bf16.mxu0 0
      %491 = vmatpush1.bf16.msra.mxu0 0
      %492 = vmatprep.subr.bf16.mxu0 0
      %493 = vmatpush1.bf16.msra.mxu0 0
      %494 = vmatprep.subr.bf16.mxu0 0
      %495 = vmatpush1.bf16.msra.mxu0 0
      %496 = vmatprep.subr.bf16.mxu0 0
      %497 = vmatpush1.bf16.msra.mxu0 0
      %498 = vmatprep.subr.bf16.mxu0 0
      %499 = vmatpush1.bf16.msra.mxu0 0
      %500 = vmatprep.mubr.bf16.mxu0 0
      %501 = vmatmul.mubr.bf16.gmra.mrb[0].mxu0 %v356
      %v502 = vpop.f32.mrb[0].mxu0
      %v503 = vadd.f32 0.0, %v502
      %v504 = vpop.f32.mrb[0].mxu0
      %v505 = vpop.f32.mrb[0].mxu0
      %v506 = vadd.f32 0.0, %v505
      %v507 = vpop.f32.mrb[0].mxu0
      %508 = vmatprep.mubr.bf16.mxu0 0
      %509 = vmatmul.mubr.bf16.gmra.mrb[0].mxu0 %v357
      %v510 = vpop.f32.mrb[0].mxu0
      %v511 = vadd.f32 0.0, %v510
      %v512 = vpop.f32.mrb[0].mxu0
      %v513 = vpop.f32.mrb[0].mxu0
      %v514 = vadd.f32 0.0, %v513
      %v515 = vpop.f32.mrb[0].mxu0
      %516 = vmatprep.mubr.bf16.mxu0 0
      %517 = vmatmul.mubr.bf16.gmra.mrb[0].mxu0 %v358
      %v518 = vpop.f32.mrb[0].mxu0
      %v519 = vadd.f32 0.0, %v518
      %v520 = vpop.f32.mrb[0].mxu0
      %v521 = vpop.f32.mrb[0].mxu0
      %v522 = vadd.f32 0.0, %v521
      %v523 = vpop.f32.mrb[0].mxu0
      %524 = vmatprep.mubr.bf16.mxu0 0
      %525 = vmatmul.mubr.bf16.gmra.mrb[0].mxu0 %v359
      %v526 = vpop.f32.mrb[0].mxu0
      %v527 = vadd.f32 0.0, %v526
      %v528 = vpop.f32.mrb[0].mxu0
      %v529 = vpop.f32.mrb[0].mxu0
      %v530 = vadd.f32 0.0, %v529
      %v531 = vpop.f32.mrb[0].mxu0
      %532 = vmatprep.mubr.bf16.mxu0 0
      %533 = vmatmul.mubr.bf16.gmra.mrb[0].mxu0 %v360
      %v534 = vpop.f32.mrb[0].mxu0
      %v535 = vadd.f32 0.0, %v534
      %v536 = vpop.f32.mrb[0].mxu0
      %v537 = vpop.f32.mrb[0].mxu0
      %v538 = vadd.f32 0.0, %v537
      %v539 = vpop.f32.mrb[0].mxu0
      %540 = vmatprep.mubr.bf16.mxu0 0
      %541 = vmatmul.mubr.bf16.gmra.mrb[0].mxu0 %v361
      %v542 = vpop.f32.mrb[0].mxu0
      %v543 = vadd.f32 0.0, %v542
      %v544 = vpop.f32.mrb[0].mxu0
      %v545 = vpop.f32.mrb[0].mxu0
      %v546 = vadd.f32 0.0, %v545
      %v547 = vpop.f32.mrb[0].mxu0
      %548 = vmatprep.mubr.bf16.mxu0 0
      %549 = vmatmul.mubr.bf16.gmra.mrb[0].mxu0 %v362
      %v550 = vpop.f32.mrb[0].mxu0
      %v551 = vadd.f32 0.0, %v550
      %v552 = vpop.f32.mrb[0].mxu0
      %v553 = vpop.f32.mrb[0].mxu0
      %v554 = vadd.f32 0.0, %v553
      %v555 = vpop.f32.mrb[0].mxu0
      %556 = vmatprep.mubr.bf16.mxu0 0
      %557 = vmatmul.mubr.bf16.gmra.mrb[0].mxu0 %v363
      %v558 = vpop.f32.mrb[0].mxu0
      %v559 = vadd.f32 0.0, %v558
      %v560 = vpop.f32.mrb[0].mxu0
      %v561 = vpop.f32.mrb[0].mxu0
      %v562 = vadd.f32 0.0, %v561
      %v563 = vpop.f32.mrb[0].mxu0
      %564 = vmatprep.mubr.bf16.mxu0 0
      %565 = vmatmul.mubr.bf16.gmra.mrb[0].mxu0 %v364
      %v566 = vpop.f32.mrb[0].mxu0
      %v567 = vadd.f32 0.0, %v566
      %v568 = vpop.f32.mrb[0].mxu0
      %v569 = vpop.f32.mrb[0].mxu0
      %v570 = vadd.f32 0.0, %v569
      %v571 = vpop.f32.mrb[0].mxu0
      %572 = vmatprep.mubr.bf16.mxu0 0
      %573 = vmatmul.mubr.bf16.gmra.mrb[0].mxu0 %v365
      %v574 = vpop.f32.mrb[0].mxu0
      %v575 = vadd.f32 0.0, %v574
      %v576 = vpop.f32.mrb[0].mxu0
      %v577 = vpop.f32.mrb[0].mxu0
      %v578 = vadd.f32 0.0, %v577
      %v579 = vpop.f32.mrb[0].mxu0
      %580 = vmatprep.mubr.bf16.mxu0 0
      %581 = vmatmul.mubr.bf16.gmra.mrb[0].mxu0 %v366
      %v582 = vpop.f32.mrb[0].mxu0
      %v583 = vadd.f32 0.0, %v582
      %v584 = vpop.f32.mrb[0].mxu0
      %v585 = vpop.f32.mrb[0].mxu0
      %v586 = vadd.f32 0.0, %v585
      %v587 = vpop.f32.mrb[0].mxu0
      %588 = vmatprep.mubr.bf16.mxu0 0
      %589 = vmatmul.mubr.bf16.gmra.mrb[0].mxu0 %v367
      %v590 = vpop.f32.mrb[0].mxu0
      %v591 = vadd.f32 0.0, %v590
      %v592 = vpop.f32.mrb[0].mxu0
      %v593 = vpop.f32.mrb[0].mxu0
      %v594 = vadd.f32 0.0, %v593
      %v595 = vpop.f32.mrb[0].mxu0
      %596 = vmatprep.mubr.bf16.mxu0 0
      %597 = vmatmul.mubr.bf16.gmra.mrb[0].mxu0 %v368
      %v598 = vpop.f32.mrb[0].mxu0
      %v599 = vadd.f32 0.0, %v598
      %v600 = vpop.f32.mrb[0].mxu0
      %v601 = vpop.f32.mrb[0].mxu0
      %v602 = vadd.f32 0.0, %v601
      %v603 = vpop.f32.mrb[0].mxu0
      %604 = vmatprep.mubr.bf16.mxu0 0
      %605 = vmatmul.mubr.bf16.gmra.mrb[0].mxu0 %v369
      %v606 = vpop.f32.mrb[0].mxu0
      %v607 = vadd.f32 0.0, %v606
      %v608 = vpop.f32.mrb[0].mxu0
      %v609 = vpop.f32.mrb[0].mxu0
      %v610 = vadd.f32 0.0, %v609
      %v611 = vpop.f32.mrb[0].mxu0
      %612 = vmatprep.mubr.bf16.mxu0 0
      %613 = vmatmul.mubr.bf16.gmra.mrb[0].mxu0 %v370
      %v614 = vpop.f32.mrb[0].mxu0
      %v615 = vadd.f32 0.0, %v614
      %v616 = vpop.f32.mrb[0].mxu0
      %v617 = vpop.f32.mrb[0].mxu0
      %v618 = vadd.f32 0.0, %v617
      %v619 = vpop.f32.mrb[0].mxu0
      %620 = vmatprep.mubr.bf16.mxu0 0
      %621 = vmatmul.mubr.bf16.gmra.mrb[0].mxu0 %v371
      %v622 = vpop.f32.mrb[0].mxu0
      %v623 = vadd.f32 0.0, %v622
      %v624 = vpop.f32.mrb[0].mxu0
      %v625 = vpop.f32.mrb[0].mxu0
      %v626 = vadd.f32 0.0, %v625
      %v627 = vpop.f32.mrb[0].mxu0
      %628 = vmatprep.mubr.bf16.mxu0 0
      %629 = vmatmul.mubr.bf16.gmra.mrb[0].mxu0 %v372
      %v630 = vpop.f32.mrb[0].mxu0
      %v631 = vadd.f32 0.0, %v630
      %v632 = vpop.f32.mrb[0].mxu0
      %v633 = vpop.f32.mrb[0].mxu0
      %v634 = vadd.f32 0.0, %v633
      %v635 = vpop.f32.mrb[0].mxu0
      %636 = vmatprep.mubr.bf16.mxu0 0
      %637 = vmatmul.mubr.bf16.gmra.mrb[0].mxu0 %v373
      %v638 = vpop.f32.mrb[0].mxu0
      %v639 = vadd.f32 0.0, %v638
      %v640 = vpop.f32.mrb[0].mxu0
      %v641 = vpop.f32.mrb[0].mxu0
      %v642 = vadd.f32 0.0, %v641
      %v643 = vpop.f32.mrb[0].mxu0
      %644 = vmatprep.mubr.bf16.mxu0 0
      %645 = vmatmul.mubr.bf16.gmra.mrb[0].mxu0 %v374
      %v646 = vpop.f32.mrb[0].mxu0
      %v647 = vadd.f32 0.0, %v646
      %v648 = vpop.f32.mrb[0].mxu0
      %v649 = vpop.f32.mrb[0].mxu0
      %v650 = vadd.f32 0.0, %v649
      %v651 = vpop.f32.mrb[0].mxu0
      %652 = vmatprep.mubr.bf16.mxu0 0
      %653 = vmatmul.mubr.bf16.gmra.mrb[0].mxu0 %v375
      %v654 = vpop.f32.mrb[0].mxu0
      %v655 = vadd.f32 0.0, %v654
      %v656 = vpop.f32.mrb[0].mxu0
      %v657 = vpop.f32.mrb[0].mxu0
      %v658 = vadd.f32 0.0, %v657
      %v659 = vpop.f32.mrb[0].mxu0
      %660 = vmatprep.mubr.bf16.mxu0 0
      %661 = vmatmul.mubr.bf16.gmra.mrb[0].mxu0 %v376
      %v662 = vpop.f32.mrb[0].mxu0
      %v663 = vadd.f32 0.0, %v662
      %v664 = vpop.f32.mrb[0].mxu0
      %v665 = vpop.f32.mrb[0].mxu0
      %v666 = vadd.f32 0.0, %v665
      %v667 = vpop.f32.mrb[0].mxu0
      %668 = vmatprep.mubr.bf16.mxu0 0
      %669 = vmatmul.mubr.bf16.gmra.mrb[0].mxu0 %v377
      %v670 = vpop.f32.mrb[0].mxu0
      %v671 = vadd.f32 0.0, %v670
      %v672 = vpop.f32.mrb[0].mxu0
      %v673 = vpop.f32.mrb[0].mxu0
      %v674 = vadd.f32 0.0, %v673
      %v675 = vpop.f32.mrb[0].mxu0
      %676 = vmatprep.mubr.bf16.mxu0 0
      %677 = vmatmul.mubr.bf16.gmra.mrb[0].mxu0 %v378
      %v678 = vpop.f32.mrb[0].mxu0
      %v679 = vadd.f32 0.0, %v678
      %v680 = vpop.f32.mrb[0].mxu0
      %v681 = vpop.f32.mrb[0].mxu0
      %v682 = vadd.f32 0.0, %v681
      %v683 = vpop.f32.mrb[0].mxu0
      %684 = vmatprep.mubr.bf16.mxu0 0
      %685 = vmatmul.mubr.bf16.gmra.mrb[0].mxu0 %v379
      %v686 = vpop.f32.mrb[0].mxu0
      %v687 = vadd.f32 0.0, %v686
      %v688 = vpop.f32.mrb[0].mxu0
      %v689 = vpop.f32.mrb[0].mxu0
      %v690 = vadd.f32 0.0, %v689
      %v691 = vpop.f32.mrb[0].mxu0
      %692 = vmatprep.mubr.bf16.mxu0 0
      %693 = vmatmul.mubr.bf16.gmra.mrb[0].mxu0 %v380
      %v694 = vpop.f32.mrb[0].mxu0
      %v695 = vadd.f32 0.0, %v694
      %v696 = vpop.f32.mrb[0].mxu0
      %v697 = vpop.f32.mrb[0].mxu0
      %v698 = vadd.f32 0.0, %v697
      %v699 = vpop.f32.mrb[0].mxu0
      %700 = vmatprep.mubr.bf16.mxu0 0
      %701 = vmatmul.mubr.bf16.gmra.mrb[0].mxu0 %v381
      %v702 = vpop.f32.mrb[0].mxu0
      %v703 = vadd.f32 0.0, %v702
      %v704 = vpop.f32.mrb[0].mxu0
      %v705 = vpop.f32.mrb[0].mxu0
      %v706 = vadd.f32 0.0, %v705
      %v707 = vpop.f32.mrb[0].mxu0
      %708 = vmatprep.mubr.bf16.mxu0 0
      %709 = vmatmul.mubr.bf16.gmra.mrb[0].mxu0 %v382
      %v710 = vpop.f32.mrb[0].mxu0
      %v711 = vadd.f32 0.0, %v710
      %v712 = vpop.f32.mrb[0].mxu0
      %v713 = vpop.f32.mrb[0].mxu0
      %v714 = vadd.f32 0.0, %v713
      %v715 = vpop.f32.mrb[0].mxu0
      %716 = vmatprep.mubr.bf16.mxu0 0
      %717 = vmatmul.mubr.bf16.gmra.mrb[0].mxu0 %v383
      %v718 = vpop.f32.mrb[0].mxu0
      %v719 = vadd.f32 0.0, %v718
      %v720 = vpop.f32.mrb[0].mxu0
      %v721 = vpop.f32.mrb[0].mxu0
      %v722 = vadd.f32 0.0, %v721
      %v723 = vpop.f32.mrb[0].mxu0
      %724 = vmatprep.mubr.bf16.mxu0 0
      %725 = vmatmul.mubr.bf16.gmra.mrb[0].mxu0 %v384
      %v726 = vpop.f32.mrb[0].mxu0
      %v727 = vadd.f32 0.0, %v726
      %v728 = vpop.f32.mrb[0].mxu0
      %v729 = vpop.f32.mrb[0].mxu0
      %v730 = vadd.f32 0.0, %v729
      %v731 = vpop.f32.mrb[0].mxu0
      %732 = vmatprep.mubr.bf16.mxu0 0
      %733 = vmatmul.mubr.bf16.gmra.mrb[0].mxu0 %v385
      %v734 = vpop.f32.mrb[0].mxu0
      %v735 = vadd.f32 0.0, %v734
      %v736 = vpop.f32.mrb[0].mxu0
      %v737 = vpop.f32.mrb[0].mxu0
      %v738 = vadd.f32 0.0, %v737
      %v739 = vpop.f32.mrb[0].mxu0
      %740 = vmatprep.mubr.bf16.mxu0 0
      %741 = vmatmul.mubr.bf16.gmra.mrb[0].mxu0 %v386
      %v742 = vpop.f32.mrb[0].mxu0
      %v743 = vadd.f32 0.0, %v742
      %v744 = vpop.f32.mrb[0].mxu0
      %v745 = vpop.f32.mrb[0].mxu0
      %v746 = vadd.f32 0.0, %v745
      %v747 = vpop.f32.mrb[0].mxu0
      %748 = vmatprep.mubr.bf16.mxu0 0
      %749 = vmatmul.mubr.bf16.gmra.mrb[0].mxu0 %v387
      %v750 = vpop.f32.mrb[0].mxu0
      %v751 = vadd.f32 0.0, %v750
      %v752 = vpop.f32.mrb[0].mxu0
      %v753 = vpop.f32.mrb[0].mxu0
      %v754 = vadd.f32 0.0, %v753
      %v755 = vpop.f32.mrb[0].mxu0
      %756 = vdwg.mxu0
      %vm757 = vcmp.ge.f32.partialorder %v503, 0.0
      %vm758 = vcmp.ge.f32.partialorder %v506, 0.0
      %vm759 = vcmp.ge.f32.partialorder %v511, 0.0
      %vm760 = vcmp.ge.f32.partialorder %v514, 0.0
      %vm761 = vcmp.ge.f32.partialorder %v519, 0.0
      %vm762 = vcmp.ge.f32.partialorder %v522, 0.0
      %vm763 = vcmp.ge.f32.partialorder %v527, 0.0
      %vm764 = vcmp.ge.f32.partialorder %v530, 0.0
      %vm765 = vcmp.ge.f32.partialorder %v535, 0.0
      %vm766 = vcmp.ge.f32.partialorder %v538, 0.0
      %vm767 = vcmp.ge.f32.partialorder %v543, 0.0
      %vm768 = vcmp.ge.f32.partialorder %v546, 0.0
      %vm769 = vcmp.ge.f32.partialorder %v551, 0.0
      %vm770 = vcmp.ge.f32.partialorder %v554, 0.0
      %vm771 = vcmp.ge.f32.partialorder %v559, 0.0
      %vm772 = vcmp.ge.f32.partialorder %v562, 0.0
      %vm773 = vcmp.ge.f32.partialorder %v567, 0.0
      %vm774 = vcmp.ge.f32.partialorder %v570, 0.0
      %vm775 = vcmp.ge.f32.partialorder %v575, 0.0
      %vm776 = vcmp.ge.f32.partialorder %v578, 0.0
      %vm777 = vcmp.ge.f32.partialorder %v583, 0.0
      %vm778 = vcmp.ge.f32.partialorder %v586, 0.0
      %vm779 = vcmp.ge.f32.partialorder %v591, 0.0
      %vm780 = vcmp.ge.f32.partialorder %v594, 0.0
      %vm781 = vcmp.ge.f32.partialorder %v599, 0.0
      %vm782 = vcmp.ge.f32.partialorder %v602, 0.0
      %vm783 = vcmp.ge.f32.partialorder %v607, 0.0
      %vm784 = vcmp.ge.f32.partialorder %v610, 0.0
      %vm785 = vcmp.ge.f32.partialorder %v615, 0.0
      %vm786 = vcmp.ge.f32.partialorder %v618, 0.0
      %vm787 = vcmp.ge.f32.partialorder %v623, 0.0
      %vm788 = vcmp.ge.f32.partialorder %v626, 0.0
      %vm789 = vcmp.ge.f32.partialorder %v631, 0.0
      %vm790 = vcmp.ge.f32.partialorder %v634, 0.0
      %vm791 = vcmp.ge.f32.partialorder %v639, 0.0
      %vm792 = vcmp.ge.f32.partialorder %v642, 0.0
      %vm793 = vcmp.ge.f32.partialorder %v647, 0.0
      %vm794 = vcmp.ge.f32.partialorder %v650, 0.0
      %vm795 = vcmp.ge.f32.partialorder %v655, 0.0
      %vm796 = vcmp.ge.f32.partialorder %v658, 0.0
      %vm797 = vcmp.ge.f32.partialorder %v663, 0.0
      %vm798 = vcmp.ge.f32.partialorder %v666, 0.0
      %vm799 = vcmp.ge.f32.partialorder %v671, 0.0
      %vm800 = vcmp.ge.f32.partialorder %v674, 0.0
      %vm801 = vcmp.ge.f32.partialorder %v679, 0.0
      %vm802 = vcmp.ge.f32.partialorder %v682, 0.0
      %vm803 = vcmp.ge.f32.partialorder %v687, 0.0
      %vm804 = vcmp.ge.f32.partialorder %v690, 0.0
      %vm805 = vcmp.ge.f32.partialorder %v695, 0.0
      %vm806 = vcmp.ge.f32.partialorder %v698, 0.0
      %vm807 = vcmp.ge.f32.partialorder %v703, 0.0
      %vm808 = vcmp.ge.f32.partialorder %v706, 0.0
      %vm809 = vcmp.ge.f32.partialorder %v711, 0.0
      %vm810 = vcmp.ge.f32.partialorder %v714, 0.0
      %vm811 = vcmp.ge.f32.partialorder %v719, 0.0
      %vm812 = vcmp.ge.f32.partialorder %v722, 0.0
      %vm813 = vcmp.ge.f32.partialorder %v727, 0.0
      %vm814 = vcmp.ge.f32.partialorder %v730, 0.0
      %vm815 = vcmp.ge.f32.partialorder %v735, 0.0
      %vm816 = vcmp.ge.f32.partialorder %v738, 0.0
      %vm817 = vcmp.ge.f32.partialorder %v743, 0.0
      %vm818 = vcmp.ge.f32.partialorder %v746, 0.0
      %vm819 = vcmp.ge.f32.partialorder %v751, 0.0
      %vm820 = vcmp.ge.f32.partialorder %v754, 0.0
      %v821 = vmul.f32 %v503, 0.2
      %v822 = vmul.f32 %v506, 0.2
      %v823 = vmul.f32 %v511, 0.2
      %v824 = vmul.f32 %v514, 0.2
      %v825 = vmul.f32 %v519, 0.2
      %v826 = vmul.f32 %v522, 0.2
      %v827 = vmul.f32 %v527, 0.2
      %v828 = vmul.f32 %v530, 0.2
      %v829 = vmul.f32 %v535, 0.2
      %v830 = vmul.f32 %v538, 0.2
      %v831 = vmul.f32 %v543, 0.2
      %v832 = vmul.f32 %v546, 0.2
      %v833 = vmul.f32 %v551, 0.2
      %v834 = vmul.f32 %v554, 0.2
      %v835 = vmul.f32 %v559, 0.2
      %v836 = vmul.f32 %v562, 0.2
      %v837 = vmul.f32 %v567, 0.2
      %v838 = vmul.f32 %v570, 0.2
      %v839 = vmul.f32 %v575, 0.2
      %v840 = vmul.f32 %v578, 0.2
      %v841 = vmul.f32 %v583, 0.2
      %v842 = vmul.f32 %v586, 0.2
      %v843 = vmul.f32 %v591, 0.2
      %v844 = vmul.f32 %v594, 0.2
      %v845 = vmul.f32 %v599, 0.2
      %v846 = vmul.f32 %v602, 0.2
      %v847 = vmul.f32 %v607, 0.2
      %v848 = vmul.f32 %v610, 0.2
      %v849 = vmul.f32 %v615, 0.2
      %v850 = vmul.f32 %v618, 0.2
      %v851 = vmul.f32 %v623, 0.2
      %v852 = vmul.f32 %v626, 0.2
      %v853 = vmul.f32 %v631, 0.2
      %v854 = vmul.f32 %v634, 0.2
      %v855 = vmul.f32 %v639, 0.2
      %v856 = vmul.f32 %v642, 0.2
      %v857 = vmul.f32 %v647, 0.2
      %v858 = vmul.f32 %v650, 0.2
      %v859 = vmul.f32 %v655, 0.2
      %v860 = vmul.f32 %v658, 0.2
      %v861 = vmul.f32 %v663, 0.2
      %v862 = vmul.f32 %v666, 0.2
      %v863 = vmul.f32 %v671, 0.2
      %v864 = vmul.f32 %v674, 0.2
      %v865 = vmul.f32 %v679, 0.2
      %v866 = vmul.f32 %v682, 0.2
      %v867 = vmul.f32 %v687, 0.2
      %v868 = vmul.f32 %v690, 0.2
      %v869 = vmul.f32 %v695, 0.2
      %v870 = vmul.f32 %v698, 0.2
      %v871 = vmul.f32 %v703, 0.2
      %v872 = vmul.f32 %v706, 0.2
      %v873 = vmul.f32 %v711, 0.2
      %v874 = vmul.f32 %v714, 0.2
      %v875 = vmul.f32 %v719, 0.2
      %v876 = vmul.f32 %v722, 0.2
      %v877 = vmul.f32 %v727, 0.2
      %v878 = vmul.f32 %v730, 0.2
      %v879 = vmul.f32 %v735, 0.2
      %v880 = vmul.f32 %v738, 0.2
      %v881 = vmul.f32 %v743, 0.2
      %v882 = vmul.f32 %v746, 0.2
      %v883 = vmul.f32 %v751, 0.2
      %v884 = vmul.f32 %v754, 0.2
      %v885 = vsel %vm757, %v503, %v821
      %v886 = vsel %vm758, %v506, %v822
      %v887 = vsel %vm759, %v511, %v823
      %v888 = vsel %vm760, %v514, %v824
      %v889 = vsel %vm761, %v519, %v825
      %v890 = vsel %vm762, %v522, %v826
      %v891 = vsel %vm763, %v527, %v827
      %v892 = vsel %vm764, %v530, %v828
      %v893 = vsel %vm765, %v535, %v829
      %v894 = vsel %vm766, %v538, %v830
      %v895 = vsel %vm767, %v543, %v831
      %v896 = vsel %vm768, %v546, %v832
      %v897 = vsel %vm769, %v551, %v833
      %v898 = vsel %vm770, %v554, %v834
      %v899 = vsel %vm771, %v559, %v835
      %v900 = vsel %vm772, %v562, %v836
      %v901 = vsel %vm773, %v567, %v837
      %v902 = vsel %vm774, %v570, %v838
      %v903 = vsel %vm775, %v575, %v839
      %v904 = vsel %vm776, %v578, %v840
      %v905 = vsel %vm777, %v583, %v841
      %v906 = vsel %vm778, %v586, %v842
      %v907 = vsel %vm779, %v591, %v843
      %v908 = vsel %vm780, %v594, %v844
      %v909 = vsel %vm781, %v599, %v845
      %v910 = vsel %vm782, %v602, %v846
      %v911 = vsel %vm783, %v607, %v847
      %v912 = vsel %vm784, %v610, %v848
      %v913 = vsel %vm785, %v615, %v849
      %v914 = vsel %vm786, %v618, %v850
      %v915 = vsel %vm787, %v623, %v851
      %v916 = vsel %vm788, %v626, %v852
      %v917 = vsel %vm789, %v631, %v853
      %v918 = vsel %vm790, %v634, %v854
      %v919 = vsel %vm791, %v639, %v855
      %v920 = vsel %vm792, %v642, %v856
      %v921 = vsel %vm793, %v647, %v857
      %v922 = vsel %vm794, %v650, %v858
      %v923 = vsel %vm795, %v655, %v859
      %v924 = vsel %vm796, %v658, %v860
      %v925 = vsel %vm797, %v663, %v861
      %v926 = vsel %vm798, %v666, %v862
      %v927 = vsel %vm799, %v671, %v863
      %v928 = vsel %vm800, %v674, %v864
      %v929 = vsel %vm801, %v679, %v865
      %v930 = vsel %vm802, %v682, %v866
      %v931 = vsel %vm803, %v687, %v867
      %v932 = vsel %vm804, %v690, %v868
      %v933 = vsel %vm805, %v695, %v869
      %v934 = vsel %vm806, %v698, %v870
      %v935 = vsel %vm807, %v703, %v871
      %v936 = vsel %vm808, %v706, %v872
      %v937 = vsel %vm809, %v711, %v873
      %v938 = vsel %vm810, %v714, %v874
      %v939 = vsel %vm811, %v719, %v875
      %v940 = vsel %vm812, %v722, %v876
      %v941 = vsel %vm813, %v727, %v877
      %v942 = vsel %vm814, %v730, %v878
      %v943 = vsel %vm815, %v735, %v879
      %v944 = vsel %vm816, %v738, %v880
      %v945 = vsel %vm817, %v743, %v881
      %v946 = vsel %vm818, %v746, %v882
      %v947 = vsel %vm819, %v751, %v883
      %v948 = vsel %vm820, %v754, %v884
      %949 = vst [vmem:[%s145] sm:$0xff] %v885
      %950 = vst [vmem:[%s145 + $0x8] sm:$0xff] %v886
      %951 = vst [vmem:[%s145 + $0x10] sm:$0xff] %v887
      %952 = vst [vmem:[%s145 + $0x18] sm:$0xff] %v888
      %953 = vst [vmem:[%s145 + $0x20] sm:$0xff] %v889
      %954 = vst [vmem:[%s145 + $0x28] sm:$0xff] %v890
      %955 = vst [vmem:[%s145 + $0x30] sm:$0xff] %v891
      %956 = vst [vmem:[%s145 + $0x38] sm:$0xff] %v892
      %957 = vst [vmem:[%s145 + $0x40] sm:$0xff] %v893
      %958 = vst [vmem:[%s145 + $0x48] sm:$0xff] %v894
      %959 = vst [vmem:[%s145 + $0x50] sm:$0xff] %v895
      %960 = vst [vmem:[%s145 + $0x58] sm:$0xff] %v896
      %961 = vst [vmem:[%s145 + $0x60] sm:$0xff] %v897
      %962 = vst [vmem:[%s145 + $0x68] sm:$0xff] %v898
      %963 = vst [vmem:[%s145 + $0x70] sm:$0xff] %v899
      %964 = vst [vmem:[%s145 + $0x78] sm:$0xff] %v900
      %965 = vst [vmem:[%s145 + $0x80] sm:$0xff] %v901
      %966 = vst [vmem:[%s145 + $0x88] sm:$0xff] %v902
      %967 = vst [vmem:[%s145 + $0x90] sm:$0xff] %v903
      %968 = vst [vmem:[%s145 + $0x98] sm:$0xff] %v904
      %969 = vst [vmem:[%s145 + $0xa0] sm:$0xff] %v905
      %970 = vst [vmem:[%s145 + $0xa8] sm:$0xff] %v906
      %971 = vst [vmem:[%s145 + $0xb0] sm:$0xff] %v907
      %972 = vst [vmem:[%s145 + $0xb8] sm:$0xff] %v908
      %973 = vst [vmem:[%s145 + $0xc0] sm:$0xff] %v909
      %974 = vst [vmem:[%s145 + $0xc8] sm:$0xff] %v910
      %975 = vst [vmem:[%s145 + $0xd0] sm:$0xff] %v911
      %976 = vst [vmem:[%s145 + $0xd8] sm:$0xff] %v912
      %977 = vst [vmem:[%s145 + $0xe0] sm:$0xff] %v913
      %978 = vst [vmem:[%s145 + $0xe8] sm:$0xff] %v914
      %979 = vst [vmem:[%s145 + $0xf0] sm:$0xff] %v915
      %980 = vst [vmem:[%s145 + $0xf8] sm:$0xff] %v916
      %981 = vst [vmem:[%s145 + $0x100] sm:$0xff] %v917
      %982 = vst [vmem:[%s145 + $0x108] sm:$0xff] %v918
      %983 = vst [vmem:[%s145 + $0x110] sm:$0xff] %v919
      %984 = vst [vmem:[%s145 + $0x118] sm:$0xff] %v920
      %985 = vst [vmem:[%s145 + $0x120] sm:$0xff] %v921
      %986 = vst [vmem:[%s145 + $0x128] sm:$0xff] %v922
      %987 = vst [vmem:[%s145 + $0x130] sm:$0xff] %v923
      %988 = vst [vmem:[%s145 + $0x138] sm:$0xff] %v924
      %989 = vst [vmem:[%s145 + $0x140] sm:$0xff] %v925
      %990 = vst [vmem:[%s145 + $0x148] sm:$0xff] %v926
      %991 = vst [vmem:[%s145 + $0x150] sm:$0xff] %v927
      %992 = vst [vmem:[%s145 + $0x158] sm:$0xff] %v928
      %993 = vst [vmem:[%s145 + $0x160] sm:$0xff] %v929
      %994 = vst [vmem:[%s145 + $0x168] sm:$0xff] %v930
      %995 = vst [vmem:[%s145 + $0x170] sm:$0xff] %v931
      %996 = vst [vmem:[%s145 + $0x178] sm:$0xff] %v932
      %997 = vst [vmem:[%s145 + $0x180] sm:$0xff] %v933
      %998 = vst [vmem:[%s145 + $0x188] sm:$0xff] %v934
      %999 = vst [vmem:[%s145 + $0x190] sm:$0xff] %v935
      %1000 = vst [vmem:[%s145 + $0x198] sm:$0xff] %v936
      %1001 = vst [vmem:[%s145 + $0x1a0] sm:$0xff] %v937
      %1002 = vst [vmem:[%s145 + $0x1a8] sm:$0xff] %v938
      %1003 = vst [vmem:[%s145 + $0x1b0] sm:$0xff] %v939
      %1004 = vst [vmem:[%s145 + $0x1b8] sm:$0xff] %v940
      %1005 = vst [vmem:[%s145 + $0x1c0] sm:$0xff] %v941
      %1006 = vst [vmem:[%s145 + $0x1c8] sm:$0xff] %v942
      %1007 = vst [vmem:[%s145 + $0x1d0] sm:$0xff] %v943
      %1008 = vst [vmem:[%s145 + $0x1d8] sm:$0xff] %v944
      %1009 = vst [vmem:[%s145 + $0x1e0] sm:$0xff] %v945
      %1010 = vst [vmem:[%s145 + $0x1e8] sm:$0xff] %v946
      %1011 = vst [vmem:[%s145 + $0x1f0] sm:$0xff] %v947
      %1012 = vst [vmem:[%s145 + $0x1f8] sm:$0xff] %v948
      %s1013 = smul.u32 64, %s13
      %p1014 = scmp.lt.s32.totalorder %s1013, 255
      %s1015 = scalar_select %p1014, %s1013, 255
      %s1016 = smul.addr %s1015, 8
      %s1017 = scalar_lea.vmem %s2, %s1016
      // Predicated region
      $region29: #{discriminator_forward.5} parent=27 // pred_check
        %p1018 = pneg %p78
      $region30: #{discriminator_forward.5} parent=27 // pred_check_branch
        %1020 = sbr.rel (%p1018) target = $region32
      $region31: #{discriminator_forward.5} parent=27 // pred_region
        %s1021 = smul.u32 64, %s13
      $region32: #{discriminator_forward.5} parent=27 // pred_fallthru
        _
    $region28: #{discriminator_forward.5} parent=5 // pred_fallthru
      _
    %p1022 = scmp.le.s32.totalorder 2, %s8
    // Predicated region
    $region33: #{discriminator_forward.5} parent=5 // pred_check
      %p1023 = pneg %p1022
    $region34: #{discriminator_forward.5} parent=5 // pred_check_branch
      %1025 = sbr.rel (%p1023) target = $region36
    $region35: #{discriminator_forward.5} parent=5 // pred_region
      %s1026 = ssub.s32 %s8, 2
      // Predicated region
      $region37: #{discriminator_forward.5} parent=35 // pred_check
        %p1027 = pneg %p84
      $region38: #{discriminator_forward.5} parent=35 // pred_check_branch
        %1029 = sbr.rel (%p1027) target = $region40
      $region39: #{discriminator_forward.5} parent=35 // pred_region
        %s1030 = smul.u32 64, %s14
        %p1031 = scmp.lt.s32.totalorder %s1030, 255
        %s1032 = scalar_select %p1031, %s1030, 255
        %s1033 = smul.addr %s1032, 8
        %s1034 = scalar_lea.vmem %s2, %s1033
      $region40: #{discriminator_forward.5} parent=35 // pred_fallthru
        _
    $region36: #{discriminator_forward.5} parent=5 // pred_fallthru
      _
  $region6: #{discriminator_forward.5} parent=0 // loop_footer
    %s12 = sadd.s32 1, %s8
  $region7: #{discriminator_forward.5} parent=0 // loop_footer_branch
    %7 = sbr.rel target = $region3
  $region8: #{discriminator_forward.5} parent=0 // loop_exit
    _

// kernel: discriminator_forward.6
$region0: #{discriminator_forward.6}
  #allocation0 [shape = 'u32[]', space=smem, size = 0x4, offset = 0x4, fixed_abs, tag = 'smem constant byte address 0x4 - core index']
  #allocation1 [shape = 'u32[144,128]{1,0:T(1,128)}', space=vmem, size = 0x12000, scoped, tag = 'internal scratch']
  #allocation2 [shape = 'f32[1,128]{1,0:T(1,128)}', space=vmem, size = 0x200, scoped, tag = 'scratch operand']
  #allocation3 [shape = 'f32[1,128]{1,0:T(1,128)}', space=vmem, size = 0x200, scoped, tag = 'scratch operand']
  %s0 = inlined_call_operand.vmem [shape: bf16[512,128], index: 0, kind: input, shape index: {}]
  %s1 = inlined_call_operand.vmem [shape: bf16[128,128], index: 1, kind: input, shape index: {}]
  %s2 = inlined_call_operand.vmem [shape: f32[1,128], index: 2, kind: input, shape index: {}]
  %s3 = inlined_call_operand.vmem [shape: f32[1,128], index: 3, kind: input, shape index: {}]
  %s4 = inlined_call_operand.vmem [shape: f32[512,128], index: 4, kind: output, shape index: {}]
  %s5 = sld [smem:[#allocation0]]
  $region61: #{discriminator_forward.6} parent=0
    _
  %s7 = ssub.s32 1, %s5
  %s8 = scalar_select 0, %s7, %s5
  loop: start=0, step=1, limit=4
  $region2: #{discriminator_forward.6} parent=0 // loop_pre_header
    _
  $region3: #{discriminator_forward.6} parent=0 // loop_header
    %s10 = sphi 0, %s14
    %p11 = scmp.ge.s32.totalorder %s10, 4
    %s17 = sphi 0, %s29
    %s18 = sphi 0, %s25
    %s19 = sphi 0, %s17
    %s20 = sphi 0, %s18
    %s21 = sphi 0, %s19
    %s22 = sphi 0, %s20
    %s32 = sphi 0, %s34
    %s35 = sphi 0, %s32
    %s36 = sphi 0, %s35
    %s52 = sphi 0, %s36
    %s56 = sphi 0, %s56
    %s58 = sphi 0, %s56
    %s59 = sphi 0, %s58
    %s73 = sphi 0, %s59
    %s77 = sphi 0, %s77
    %s79 = sphi 0, %s77
    %s80 = sphi 0, %s79
    %s94 = sphi 0, %s80
    %s98 = sphi 0, %s98
    %s100 = sphi 0, %s98
    %s101 = sphi 0, %s100
    %s115 = sphi 0, %s101
    %s123 = sphi 0, %s125
    %s126 = sphi 0, %s123
    %s127 = sphi 0, %s126
    %s143 = sphi 0, %s127
  $region4: #{discriminator_forward.6} parent=0 // loop_header_branch
    %13 = sbr.rel (%p11) target = $region8
  $region5: #{discriminator_forward.6} parent=0 // loop_body
    %s15 = ssub.s32 %s10, 1
    %s16 = ssub.s32 %s10, 2
    %s23 = sadd.s32 1, %s18
    %p24 = scmp.ge.s32.totalorder %s23, 1
    %s25 = scalar_select %p24, 0, %s23
    %s26 = sadd.s32 1, %s17
    %s27 = scalar_select %p24, %s26, %s17
    %p28 = scmp.ge.s32.totalorder %s27, 2
    %s29 = scalar_select %p28, 0, %s27
    %s30 = ssub.s32 %s18, %s25
    %p31 = scmp.eq.s32.totalorder %s30, 0
    %s33 = sadd.s32 %s32, 1
    %s34 = scalar_select %p31, %s32, %s33
    %p37 = pneg %p31
    %p38 = scmp.eq.s32.totalorder %s10, 1
    %p39 = por %p37, %p38
    %p40 = scmp.ne.s32.totalorder %s32, %s35
    %p41 = scmp.eq.s32.totalorder %s10, 0
    %p42 = por %p40, %p41
    %p43 = scmp.ne.s32.totalorder %s32, %s35
    %p44 = scmp.eq.s32.totalorder %s15, 1
    %p45 = por %p43, %p44
    %p46 = scmp.ne.s32.totalorder %s35, %s36
    %p47 = scmp.eq.s32.totalorder %s15, 0
    %p48 = por %p46, %p47
    %p49 = scmp.ne.s32.totalorder %s35, %s36
    %p50 = scmp.eq.s32.totalorder %s16, 1
    %p51 = por %p49, %p50
    %p53 = scmp.ne.s32.totalorder %s36, %s52
    %p54 = scmp.eq.s32.totalorder %s16, 0
    %p55 = por %p53, %p54
    %s57 = sadd.s32 %s56, 1
    %p60 = scmp.eq.s32.totalorder %s10, 1
    %p61 = scmp.ne.s32.totalorder %s56, %s58
    %p62 = scmp.eq.s32.totalorder %s10, 0
    %p63 = por %p61, %p62
    %p64 = scmp.ne.s32.totalorder %s56, %s58
    %p65 = scmp.eq.s32.totalorder %s15, 1
    %p66 = por %p64, %p65
    %p67 = scmp.ne.s32.totalorder %s58, %s59
    %p68 = scmp.eq.s32.totalorder %s15, 0
    %p69 = por %p67, %p68
    %p70 = scmp.ne.s32.totalorder %s58, %s59
    %p71 = scmp.eq.s32.totalorder %s16, 1
    %p72 = por %p70, %p71
    %p74 = scmp.ne.s32.totalorder %s59, %s73
    %p75 = scmp.eq.s32.totalorder %s16, 0
    %p76 = por %p74, %p75
    %s78 = sadd.s32 %s77, 1
    %p81 = scmp.eq.s32.totalorder %s10, 1
    %p82 = scmp.ne.s32.totalorder %s77, %s79
    %p83 = scmp.eq.s32.totalorder %s10, 0
    %p84 = por %p82, %p83
    %p85 = scmp.ne.s32.totalorder %s77, %s79
    %p86 = scmp.eq.s32.totalorder %s15, 1
    %p87 = por %p85, %p86
    %p88 = scmp.ne.s32.totalorder %s79, %s80
    %p89 = scmp.eq.s32.totalorder %s15, 0
    %p90 = por %p88, %p89
    %p91 = scmp.ne.s32.totalorder %s79, %s80
    %p92 = scmp.eq.s32.totalorder %s16, 1
    %p93 = por %p91, %p92
    %p95 = scmp.ne.s32.totalorder %s80, %s94
    %p96 = scmp.eq.s32.totalorder %s16, 0
    %p97 = por %p95, %p96
    %s99 = sadd.s32 %s98, 1
    %p102 = scmp.eq.s32.totalorder %s10, 1
    %p103 = scmp.ne.s32.totalorder %s98, %s100
    %p104 = scmp.eq.s32.totalorder %s10, 0
    %p105 = por %p103, %p104
    %p106 = scmp.ne.s32.totalorder %s98, %s100
    %p107 = scmp.eq.s32.totalorder %s15, 1
    %p108 = por %p106, %p107
    %p109 = scmp.ne.s32.totalorder %s100, %s101
    %p110 = scmp.eq.s32.totalorder %s15, 0
    %p111 = por %p109, %p110
    %p112 = scmp.ne.s32.totalorder %s100, %s101
    %p113 = scmp.eq.s32.totalorder %s16, 1
    %p114 = por %p112, %p113
    %p116 = scmp.ne.s32.totalorder %s101, %s115
    %p117 = scmp.eq.s32.totalorder %s16, 0
    %p118 = por %p116, %p117
    %s119 = smul.u32 %s17, %s18
    %s120 = smul.u32 %s29, %s25
    %s121 = ssub.s32 %s119, %s120
    %p122 = scmp.eq.s32.totalorder %s121, 0
    %s124 = sadd.s32 %s123, 1
    %s125 = scalar_select %p122, %s123, %s124
    %p128 = pneg %p122
    %p129 = scmp.eq.s32.totalorder %s10, 1
    %p130 = por %p128, %p129
    %p131 = scmp.ne.s32.totalorder %s123, %s126
    %p132 = scmp.eq.s32.totalorder %s10, 0
    %p133 = por %p131, %p132
    %p134 = scmp.ne.s32.totalorder %s123, %s126
    %p135 = scmp.eq.s32.totalorder %s15, 1
    %p136 = por %p134, %p135
    %p137 = scmp.ne.s32.totalorder %s126, %s127
    %p138 = scmp.eq.s32.totalorder %s15, 0
    %p139 = por %p137, %p138
    %p140 = scmp.ne.s32.totalorder %s126, %s127
    %p141 = scmp.eq.s32.totalorder %s16, 1
    %p142 = por %p140, %p141
    %p144 = scmp.ne.s32.totalorder %s127, %s143
    %p145 = scmp.eq.s32.totalorder %s16, 0
    %p146 = por %p144, %p145
    %p147 = scmp.le.s32.totalorder 1, %s10
    %p148 = scmp.lt.s32.totalorder %s10, 3
    %p149 = pnand %p147, %p148
    %p150 = pneg %p149
    // Predicated region
    $region9: #{discriminator_forward.6} parent=5 // pred_check
      _
    $region10: #{discriminator_forward.6} parent=5 // pred_check_branch
      %152 = sbr.rel (%p149) target = $region12
    $region11: #{discriminator_forward.6} parent=5 // pred_region
      %s153 = ssub.s32 %s10, 1
      // Predicated region
      $region13: #{discriminator_forward.6} parent=11 // pred_check
        %p154 = pneg %p48
      $region14: #{discriminator_forward.6} parent=11 // pred_check_branch
        %156 = sbr.rel (%p154) target = $region16
      $region15: #{discriminator_forward.6} parent=11 // pred_region
        %s157 = smul.u32 64, %s20
        %p158 = scmp.lt.s32.totalorder %s157, 63
        %s159 = scalar_select %p158, %s157, 63
        %s160 = smul.addr %s159, 4
        %s161 = scalar_lea.vmem %s0, %s160
        %s162 = smul.u32 64, %s20
      $region16: #{discriminator_forward.6} parent=11 // pred_fallthru
        _
      // Predicated region
      $region17: #{discriminator_forward.6} parent=11 // pred_check
        %p163 = pneg %p69
      $region18: #{discriminator_forward.6} parent=11 // pred_check_branch
        %165 = sbr.rel (%p163) target = $region20
      $region19: #{discriminator_forward.6} parent=11 // pred_region
        _
      $region20: #{discriminator_forward.6} parent=11 // pred_fallthru
        _
      // Predicated region
      $region21: #{discriminator_forward.6} parent=11 // pred_check
        %p166 = pneg %p90
      $region22: #{discriminator_forward.6} parent=11 // pred_check_branch
        %168 = sbr.rel (%p166) target = $region24
      $region23: #{discriminator_forward.6} parent=11 // pred_region
        _
      $region24: #{discriminator_forward.6} parent=11 // pred_fallthru
        _
      // Predicated region
      $region25: #{discriminator_forward.6} parent=11 // pred_check
        %p169 = pneg %p111
      $region26: #{discriminator_forward.6} parent=11 // pred_check_branch
        %171 = sbr.rel (%p169) target = $region28
      $region27: #{discriminator_forward.6} parent=11 // pred_region
        _
      $region28: #{discriminator_forward.6} parent=11 // pred_fallthru
        _
    $region12: #{discriminator_forward.6} parent=5 // pred_fallthru
      _
    %p172 = scmp.lt.s32.totalorder %s10, 2
    // Predicated region
    $region29: #{discriminator_forward.6} parent=5 // pred_check
      %p173 = pneg %p172
    $region30: #{discriminator_forward.6} parent=5 // pred_check_branch
      %175 = sbr.rel (%p173) target = $region32
    $region31: #{discriminator_forward.6} parent=5 // pred_region
      _
    $region32: #{discriminator_forward.6} parent=5 // pred_fallthru
      _
    %p176 = scmp.le.s32.totalorder 1, %s10
    %p177 = scmp.lt.s32.totalorder %s10, 3
    %p178 = pnand %p176, %p177
    %p179 = pneg %p178
    // Predicated region
    $region33: #{discriminator_forward.6} parent=5 // pred_check
      _
    $region34: #{discriminator_forward.6} parent=5 // pred_check_branch
      %181 = sbr.rel (%p178) target = $region36
    $region35: #{discriminator_forward.6} parent=5 // pred_region
      %s182 = ssub.s32 %s10, 1
      %s183 = smul.u32 64, %s20
      %p184 = scmp.lt.s32.totalorder %s183, 63
      %s185 = scalar_select %p184, %s183, 63
      %s186 = smul.addr %s185, 4
      %s187 = scalar_lea.vmem %s0, %s186
      %p188 = pneg %p48
      %p189 = pneg %p45
      %p190 = pneg %p69
      %p191 = pneg %p66
      %p192 = pneg %p90
      %p193 = pneg %p87
      %p194 = pneg %p111
      %p195 = pneg %p108
      %p196 = pneg %p139
      %p197 = pneg %p136
      %s198 = smul.u32 %s19, %s20
      %s199 = smul.u32 64, %s198
      %p200 = scmp.lt.s32.totalorder %s199, 63
      %s201 = scalar_select %p200, %s199, 63
      %s202 = smul.addr %s201, 8
      %s203 = scalar_lea.vmem %s4, %s202
      %s204 = smul.u32 64, %s20
      %p205 = scmp.lt.s32.totalorder %s204, 63
      %s206 = scalar_select %p205, %s204, 63
      %s207 = smul.addr %s206, 4
      %s208 = scalar_lea.vmem %s0, %s207
      %s209 = smul.u32 64, %s20
      %s210 = smul.u32 %s19, %s20
      %s211 = smul.u32 64, %s210
      %p212 = scmp.lt.s32.totalorder %s211, 63
      %s213 = scalar_select %p212, %s211, 63
      %s214 = smul.addr %s213, 8
      %s215 = scalar_lea.vmem %s4, %s214
      %s216 = smul.u32 %s19, %s20
      %s217 = smul.u32 64, %s216
      %v219 = vld [vmem:[%s208] sm:$0xf]
      %v220 = vld [vmem:[%s208 + $0x4] sm:$0xf]
      %v221 = vld [vmem:[%s208 + $0x8] sm:$0xf]
      %v222 = vld [vmem:[%s208 + $0xc] sm:$0xf]
      %v223 = vld [vmem:[%s208 + $0x10] sm:$0xf]
      %v224 = vld [vmem:[%s208 + $0x14] sm:$0xf]
      %v225 = vld [vmem:[%s208 + $0x18] sm:$0xf]
      %v226 = vld [vmem:[%s208 + $0x1c] sm:$0xf]
      %v227 = vld [vmem:[%s208 + $0x20] sm:$0xf]
      %v228 = vld [vmem:[%s208 + $0x24] sm:$0xf]
      %v229 = vld [vmem:[%s208 + $0x28] sm:$0xf]
      %v230 = vld [vmem:[%s208 + $0x2c] sm:$0xf]
      %v231 = vld [vmem:[%s208 + $0x30] sm:$0xf]
      %v232 = vld [vmem:[%s208 + $0x34] sm:$0xf]
      %v233 = vld [vmem:[%s208 + $0x38] sm:$0xf]
      %v234 = vld [vmem:[%s208 + $0x3c] sm:$0xf]
      %v235 = vld [vmem:[%s208 + $0x40] sm:$0xf]
      %v236 = vld [vmem:[%s208 + $0x44] sm:$0xf]
      %v237 = vld [vmem:[%s208 + $0x48] sm:$0xf]
      %v238 = vld [vmem:[%s208 + $0x4c] sm:$0xf]
      %v239 = vld [vmem:[%s208 + $0x50] sm:$0xf]
      %v240 = vld [vmem:[%s208 + $0x54] sm:$0xf]
      %v241 = vld [vmem:[%s208 + $0x58] sm:$0xf]
      %v242 = vld [vmem:[%s208 + $0x5c] sm:$0xf]
      %v243 = vld [vmem:[%s208 + $0x60] sm:$0xf]
      %v244 = vld [vmem:[%s208 + $0x64] sm:$0xf]
      %v245 = vld [vmem:[%s208 + $0x68] sm:$0xf]
      %v246 = vld [vmem:[%s208 + $0x6c] sm:$0xf]
      %v247 = vld [vmem:[%s208 + $0x70] sm:$0xf]
      %v248 = vld [vmem:[%s208 + $0x74] sm:$0xf]
      %v249 = vld [vmem:[%s208 + $0x78] sm:$0xf]
      %v250 = vld [vmem:[%s208 + $0x7c] sm:$0xf]
      %v251 = vld [vmem:[%s208 + $0x80] sm:$0xf]
      %v252 = vld [vmem:[%s208 + $0x84] sm:$0xf]
      %v253 = vld [vmem:[%s208 + $0x88] sm:$0xf]
      %v254 = vld [vmem:[%s208 + $0x8c] sm:$0xf]
      %v255 = vld [vmem:[%s208 + $0x90] sm:$0xf]
      %v256 = vld [vmem:[%s208 + $0x94] sm:$0xf]
      %v257 = vld [vmem:[%s208 + $0x98] sm:$0xf]
      %v258 = vld [vmem:[%s208 + $0x9c] sm:$0xf]
      %v259 = vld [vmem:[%s208 + $0xa0] sm:$0xf]
      %v260 = vld [vmem:[%s208 + $0xa4] sm:$0xf]
      %v261 = vld [vmem:[%s208 + $0xa8] sm:$0xf]
      %v262 = vld [vmem:[%s208 + $0xac] sm:$0xf]
      %v263 = vld [vmem:[%s208 + $0xb0] sm:$0xf]
      %v264 = vld [vmem:[%s208 + $0xb4] sm:$0xf]
      %v265 = vld [vmem:[%s208 + $0xb8] sm:$0xf]
      %v266 = vld [vmem:[%s208 + $0xbc] sm:$0xf]
      %v267 = vld [vmem:[%s208 + $0xc0] sm:$0xf]
      %v268 = vld [vmem:[%s208 + $0xc4] sm:$0xf]
      %v269 = vld [vmem:[%s208 + $0xc8] sm:$0xf]
      %v270 = vld [vmem:[%s208 + $0xcc] sm:$0xf]
      %v271 = vld [vmem:[%s208 + $0xd0] sm:$0xf]
      %v272 = vld [vmem:[%s208 + $0xd4] sm:$0xf]
      %v273 = vld [vmem:[%s208 + $0xd8] sm:$0xf]
      %v274 = vld [vmem:[%s208 + $0xdc] sm:$0xf]
      %v275 = vld [vmem:[%s208 + $0xe0] sm:$0xf]
      %v276 = vld [vmem:[%s208 + $0xe4] sm:$0xf]
      %v277 = vld [vmem:[%s208 + $0xe8] sm:$0xf]
      %v278 = vld [vmem:[%s208 + $0xec] sm:$0xf]
      %v279 = vld [vmem:[%s208 + $0xf0] sm:$0xf]
      %v280 = vld [vmem:[%s208 + $0xf4] sm:$0xf]
      %v281 = vld [vmem:[%s208 + $0xf8] sm:$0xf]
      %v282 = vld [vmem:[%s208 + $0xfc] sm:$0xf]
      %v283 = vld [vmem:[%s1] sm:$0xf]
      %v284 = vld [vmem:[%s1 + $0x4] sm:$0xf]
      %v285 = vld [vmem:[%s1 + $0x8] sm:$0xf]
      %v286 = vld [vmem:[%s1 + $0xc] sm:$0xf]
      %v287 = vld [vmem:[%s1 + $0x10] sm:$0xf]
      %v288 = vld [vmem:[%s1 + $0x14] sm:$0xf]
      %v289 = vld [vmem:[%s1 + $0x18] sm:$0xf]
      %v290 = vld [vmem:[%s1 + $0x1c] sm:$0xf]
      %v291 = vld [vmem:[%s1 + $0x20] sm:$0xf]
      %v292 = vld [vmem:[%s1 + $0x24] sm:$0xf]
      %v293 = vld [vmem:[%s1 + $0x28] sm:$0xf]
      %v294 = vld [vmem:[%s1 + $0x2c] sm:$0xf]
      %v295 = vld [vmem:[%s1 + $0x30] sm:$0xf]
      %v296 = vld [vmem:[%s1 + $0x34] sm:$0xf]
      %v297 = vld [vmem:[%s1 + $0x38] sm:$0xf]
      %v298 = vld [vmem:[%s1 + $0x3c] sm:$0xf]
      %v363 = vunpack.c.l.b16 %v219
      %v364 = vunpack.c.l.b16 %v220
      %v365 = vunpack.c.l.b16 %v221
      %v366 = vunpack.c.l.b16 %v222
      %v367 = vunpack.c.l.b16 %v223
      %v368 = vunpack.c.l.b16 %v224
      %v369 = vunpack.c.l.b16 %v225
      %v370 = vunpack.c.l.b16 %v226
      %v371 = vunpack.c.l.b16 %v227
      %v372 = vunpack.c.l.b16 %v228
      %v373 = vunpack.c.l.b16 %v229
      %v374 = vunpack.c.l.b16 %v230
      %v375 = vunpack.c.l.b16 %v231
      %v376 = vunpack.c.l.b16 %v232
      %v377 = vunpack.c.l.b16 %v233
      %v378 = vunpack.c.l.b16 %v234
      %v379 = vunpack.c.l.b16 %v235
      %v380 = vunpack.c.l.b16 %v236
      %v381 = vunpack.c.l.b16 %v237
      %v382 = vunpack.c.l.b16 %v238
      %v383 = vunpack.c.l.b16 %v239
      %v384 = vunpack.c.l.b16 %v240
      %v385 = vunpack.c.l.b16 %v241
      %v386 = vunpack.c.l.b16 %v242
      %v387 = vunpack.c.l.b16 %v243
      %v388 = vunpack.c.l.b16 %v244
      %v389 = vunpack.c.l.b16 %v245
      %v390 = vunpack.c.l.b16 %v246
      %v391 = vunpack.c.l.b16 %v247
      %v392 = vunpack.c.l.b16 %v248
      %v393 = vunpack.c.l.b16 %v249
      %v394 = vunpack.c.l.b16 %v250
      %v395 = vunpack.c.l.b16 %v251
      %v396 = vunpack.c.l.b16 %v252
      %v397 = vunpack.c.l.b16 %v253
      %v398 = vunpack.c.l.b16 %v254
      %v399 = vunpack.c.l.b16 %v255
      %v400 = vunpack.c.l.b16 %v256
      %v401 = vunpack.c.l.b16 %v257
      %v402 = vunpack.c.l.b16 %v258
      %v403 = vunpack.c.l.b16 %v259
      %v404 = vunpack.c.l.b16 %v260
      %v405 = vunpack.c.l.b16 %v261
      %v406 = vunpack.c.l.b16 %v262
      %v407 = vunpack.c.l.b16 %v263
      %v408 = vunpack.c.l.b16 %v264
      %v409 = vunpack.c.l.b16 %v265
      %v410 = vunpack.c.l.b16 %v266
      %v411 = vunpack.c.l.b16 %v267
      %v412 = vunpack.c.l.b16 %v268
      %v413 = vunpack.c.l.b16 %v269
      %v414 = vunpack.c.l.b16 %v270
      %v415 = vunpack.c.l.b16 %v271
      %v416 = vunpack.c.l.b16 %v272
      %v417 = vunpack.c.l.b16 %v273
      %v418 = vunpack.c.l.b16 %v274
      %v419 = vunpack.c.l.b16 %v275
      %v420 = vunpack.c.l.b16 %v276
      %v421 = vunpack.c.l.b16 %v277
      %v422 = vunpack.c.l.b16 %v278
      %v423 = vunpack.c.l.b16 %v279
      %v424 = vunpack.c.l.b16 %v280
      %v425 = vunpack.c.l.b16 %v281
      %v426 = vunpack.c.l.b16 %v282
      %v427 = vpack.c.b16 %v364, %v363
      %v428 = vpack.c.b16 %v366, %v365
      %v429 = vpack.c.b16 %v368, %v367
      %v430 = vpack.c.b16 %v370, %v369
      %v431 = vpack.c.b16 %v372, %v371
      %v432 = vpack.c.b16 %v374, %v373
      %v433 = vpack.c.b16 %v376, %v375
      %v434 = vpack.c.b16 %v378, %v377
      %v435 = vpack.c.b16 %v380, %v379
      %v436 = vpack.c.b16 %v382, %v381
      %v437 = vpack.c.b16 %v384, %v383
      %v438 = vpack.c.b16 %v386, %v385
      %v439 = vpack.c.b16 %v388, %v387
      %v440 = vpack.c.b16 %v390, %v389
      %v441 = vpack.c.b16 %v392, %v391
      %v442 = vpack.c.b16 %v394, %v393
      %v443 = vpack.c.b16 %v396, %v395
      %v444 = vpack.c.b16 %v398, %v397
      %v445 = vpack.c.b16 %v400, %v399
      %v446 = vpack.c.b16 %v402, %v401
      %v447 = vpack.c.b16 %v404, %v403
      %v448 = vpack.c.b16 %v406, %v405
      %v449 = vpack.c.b16 %v408, %v407
      %v450 = vpack.c.b16 %v410, %v409
      %v451 = vpack.c.b16 %v412, %v411
      %v452 = vpack.c.b16 %v414, %v413
      %v453 = vpack.c.b16 %v416, %v415
      %v454 = vpack.c.b16 %v418, %v417
      %v455 = vpack.c.b16 %v420, %v419
      %v456 = vpack.c.b16 %v422, %v421
      %v457 = vpack.c.b16 %v424, %v423
      %v458 = vpack.c.b16 %v426, %v425
      %v507 = vunpack.c.l.b16 %v283
      %v508 = vunpack.c.l.b16 %v284
      %v509 = vunpack.c.l.b16 %v285
      %v510 = vunpack.c.l.b16 %v286
      %v511 = vunpack.c.l.b16 %v287
      %v512 = vunpack.c.l.b16 %v288
      %v513 = vunpack.c.l.b16 %v289
      %v514 = vunpack.c.l.b16 %v290
      %v515 = vunpack.c.l.b16 %v291
      %v516 = vunpack.c.l.b16 %v292
      %v517 = vunpack.c.l.b16 %v293
      %v518 = vunpack.c.l.b16 %v294
      %v519 = vunpack.c.l.b16 %v295
      %v520 = vunpack.c.l.b16 %v296
      %v521 = vunpack.c.l.b16 %v297
      %v522 = vunpack.c.l.b16 %v298
      %v523 = vpack.c.b16 %v508, %v507
      %v524 = vpack.c.b16 %v510, %v509
      %v525 = vpack.c.b16 %v512, %v511
      %v526 = vpack.c.b16 %v514, %v513
      %v527 = vpack.c.b16 %v516, %v515
      %v528 = vpack.c.b16 %v518, %v517
      %v529 = vpack.c.b16 %v520, %v519
      %v530 = vpack.c.b16 %v522, %v521
      %539 = vmatprep.subr.bf16.mxu0 0
      %540 = vmatpush1.bf16.msra.mxu0 %v523
      %541 = vmatprep.subr.bf16.mxu0 0
      %542 = vmatpush1.bf16.msra.mxu0 %v524
      %543 = vmatprep.subr.bf16.mxu0 0
      %544 = vmatpush1.bf16.msra.mxu0 %v525
      %545 = vmatprep.subr.bf16.mxu0 0
      %546 = vmatpush1.bf16.msra.mxu0 %v526
      %547 = vmatprep.subr.bf16.mxu0 0
      %548 = vmatpush1.bf16.msra.mxu0 %v527
      %549 = vmatprep.subr.bf16.mxu0 0
      %550 = vmatpush1.bf16.msra.mxu0 %v528
      %551 = vmatprep.subr.bf16.mxu0 0
      %552 = vmatpush1.bf16.msra.mxu0 %v529
      %553 = vmatprep.subr.bf16.mxu0 0
      %554 = vmatpush1.bf16.msra.mxu0 %v530
      %555 = vmatprep.subr.bf16.mxu0 0
      %556 = vmatpush1.bf16.msra.mxu0 0
      %557 = vmatprep.subr.bf16.mxu0 0
      %558 = vmatpush1.bf16.msra.mxu0 0
      %559 = vmatprep.subr.bf16.mxu0 0
      %560 = vmatpush1.bf16.msra.mxu0 0
      %561 = vmatprep.subr.bf16.mxu0 0
      %562 = vmatpush1.bf16.msra.mxu0 0
      %563 = vmatprep.subr.bf16.mxu0 0
      %564 = vmatpush1.bf16.msra.mxu0 0
      %565 = vmatprep.subr.bf16.mxu0 0
      %566 = vmatpush1.bf16.msra.mxu0 0
      %567 = vmatprep.subr.bf16.mxu0 0
      %568 = vmatpush1.bf16.msra.mxu0 0
      %569 = vmatprep.subr.bf16.mxu0 0
      %570 = vmatpush1.bf16.msra.mxu0 0
      %571 = vmatprep.mubr.bf16.mxu0 0
      %572 = vmatmul.mubr.bf16.gmra.mrb[0].mxu0 %v427
      %v573 = vpop.f32.mrb[0].mxu0
      %v574 = vadd.f32 0.0, %v573
      %v575 = vpop.f32.mrb[0].mxu0
      %v576 = vpop.f32.mrb[0].mxu0
      %v577 = vadd.f32 0.0, %v576
      %v578 = vpop.f32.mrb[0].mxu0
      %579 = vmatprep.mubr.bf16.mxu0 0
      %580 = vmatmul.mubr.bf16.gmra.mrb[0].mxu0 %v428
      %v581 = vpop.f32.mrb[0].mxu0
      %v582 = vadd.f32 0.0, %v581
      %v583 = vpop.f32.mrb[0].mxu0
      %v584 = vpop.f32.mrb[0].mxu0
      %v585 = vadd.f32 0.0, %v584
      %v586 = vpop.f32.mrb[0].mxu0
      %587 = vmatprep.mubr.bf16.mxu0 0
      %588 = vmatmul.mubr.bf16.gmra.mrb[0].mxu0 %v429
      %v589 = vpop.f32.mrb[0].mxu0
      %v590 = vadd.f32 0.0, %v589
      %v591 = vpop.f32.mrb[0].mxu0
      %v592 = vpop.f32.mrb[0].mxu0
      %v593 = vadd.f32 0.0, %v592
      %v594 = vpop.f32.mrb[0].mxu0
      %595 = vmatprep.mubr.bf16.mxu0 0
      %596 = vmatmul.mubr.bf16.gmra.mrb[0].mxu0 %v430
      %v597 = vpop.f32.mrb[0].mxu0
      %v598 = vadd.f32 0.0, %v597
      %v599 = vpop.f32.mrb[0].mxu0
      %v600 = vpop.f32.mrb[0].mxu0
      %v601 = vadd.f32 0.0, %v600
      %v602 = vpop.f32.mrb[0].mxu0
      %603 = vmatprep.mubr.bf16.mxu0 0
      %604 = vmatmul.mubr.bf16.gmra.mrb[0].mxu0 %v431
      %v605 = vpop.f32.mrb[0].mxu0
      %v606 = vadd.f32 0.0, %v605
      %v607 = vpop.f32.mrb[0].mxu0
      %v608 = vpop.f32.mrb[0].mxu0
      %v609 = vadd.f32 0.0, %v608
      %v610 = vpop.f32.mrb[0].mxu0
      %611 = vmatprep.mubr.bf16.mxu0 0
      %612 = vmatmul.mubr.bf16.gmra.mrb[0].mxu0 %v432
      %v613 = vpop.f32.mrb[0].mxu0
      %v614 = vadd.f32 0.0, %v613
      %v615 = vpop.f32.mrb[0].mxu0
      %v616 = vpop.f32.mrb[0].mxu0
      %v617 = vadd.f32 0.0, %v616
      %v618 = vpop.f32.mrb[0].mxu0
      %619 = vmatprep.mubr.bf16.mxu0 0
      %620 = vmatmul.mubr.bf16.gmra.mrb[0].mxu0 %v433
      %v621 = vpop.f32.mrb[0].mxu0
      %v622 = vadd.f32 0.0, %v621
      %v623 = vpop.f32.mrb[0].mxu0
      %v624 = vpop.f32.mrb[0].mxu0
      %v625 = vadd.f32 0.0, %v624
      %v626 = vpop.f32.mrb[0].mxu0
      %627 = vmatprep.mubr.bf16.mxu0 0
      %628 = vmatmul.mubr.bf16.gmra.mrb[0].mxu0 %v434
      %v629 = vpop.f32.mrb[0].mxu0
      %v630 = vadd.f32 0.0, %v629
      %v631 = vpop.f32.mrb[0].mxu0
      %v632 = vpop.f32.mrb[0].mxu0
      %v633 = vadd.f32 0.0, %v632
      %v634 = vpop.f32.mrb[0].mxu0
      %635 = vmatprep.mubr.bf16.mxu0 0
      %636 = vmatmul.mubr.bf16.gmra.mrb[0].mxu0 %v435
      %v637 = vpop.f32.mrb[0].mxu0
      %v638 = vadd.f32 0.0, %v637
      %v639 = vpop.f32.mrb[0].mxu0
      %v640 = vpop.f32.mrb[0].mxu0
      %v641 = vadd.f32 0.0, %v640
      %v642 = vpop.f32.mrb[0].mxu0
      %643 = vmatprep.mubr.bf16.mxu0 0
      %644 = vmatmul.mubr.bf16.gmra.mrb[0].mxu0 %v436
      %v645 = vpop.f32.mrb[0].mxu0
      %v646 = vadd.f32 0.0, %v645
      %v647 = vpop.f32.mrb[0].mxu0
      %v648 = vpop.f32.mrb[0].mxu0
      %v649 = vadd.f32 0.0, %v648
      %v650 = vpop.f32.mrb[0].mxu0
      %651 = vmatprep.mubr.bf16.mxu0 0
      %652 = vmatmul.mubr.bf16.gmra.mrb[0].mxu0 %v437
      %v653 = vpop.f32.mrb[0].mxu0
      %v654 = vadd.f32 0.0, %v653
      %v655 = vpop.f32.mrb[0].mxu0
      %v656 = vpop.f32.mrb[0].mxu0
      %v657 = vadd.f32 0.0, %v656
      %v658 = vpop.f32.mrb[0].mxu0
      %659 = vmatprep.mubr.bf16.mxu0 0
      %660 = vmatmul.mubr.bf16.gmra.mrb[0].mxu0 %v438
      %v661 = vpop.f32.mrb[0].mxu0
      %v662 = vadd.f32 0.0, %v661
      %v663 = vpop.f32.mrb[0].mxu0
      %v664 = vpop.f32.mrb[0].mxu0
      %v665 = vadd.f32 0.0, %v664
      %v666 = vpop.f32.mrb[0].mxu0
      %667 = vmatprep.mubr.bf16.mxu0 0
      %668 = vmatmul.mubr.bf16.gmra.mrb[0].mxu0 %v439
      %v669 = vpop.f32.mrb[0].mxu0
      %v670 = vadd.f32 0.0, %v669
      %v671 = vpop.f32.mrb[0].mxu0
      %v672 = vpop.f32.mrb[0].mxu0
      %v673 = vadd.f32 0.0, %v672
      %v674 = vpop.f32.mrb[0].mxu0
      %675 = vmatprep.mubr.bf16.mxu0 0
      %676 = vmatmul.mubr.bf16.gmra.mrb[0].mxu0 %v440
      %v677 = vpop.f32.mrb[0].mxu0
      %v678 = vadd.f32 0.0, %v677
      %v679 = vpop.f32.mrb[0].mxu0
      %v680 = vpop.f32.mrb[0].mxu0
      %v681 = vadd.f32 0.0, %v680
      %v682 = vpop.f32.mrb[0].mxu0
      %683 = vmatprep.mubr.bf16.mxu0 0
      %684 = vmatmul.mubr.bf16.gmra.mrb[0].mxu0 %v441
      %v685 = vpop.f32.mrb[0].mxu0
      %v686 = vadd.f32 0.0, %v685
      %v687 = vpop.f32.mrb[0].mxu0
      %v688 = vpop.f32.mrb[0].mxu0
      %v689 = vadd.f32 0.0, %v688
      %v690 = vpop.f32.mrb[0].mxu0
      %691 = vmatprep.mubr.bf16.mxu0 0
      %692 = vmatmul.mubr.bf16.gmra.mrb[0].mxu0 %v442
      %v693 = vpop.f32.mrb[0].mxu0
      %v694 = vadd.f32 0.0, %v693
      %v695 = vpop.f32.mrb[0].mxu0
      %v696 = vpop.f32.mrb[0].mxu0
      %v697 = vadd.f32 0.0, %v696
      %v698 = vpop.f32.mrb[0].mxu0
      %699 = vmatprep.mubr.bf16.mxu0 0
      %700 = vmatmul.mubr.bf16.gmra.mrb[0].mxu0 %v443
      %v701 = vpop.f32.mrb[0].mxu0
      %v702 = vadd.f32 0.0, %v701
      %v703 = vpop.f32.mrb[0].mxu0
      %v704 = vpop.f32.mrb[0].mxu0
      %v705 = vadd.f32 0.0, %v704
      %v706 = vpop.f32.mrb[0].mxu0
      %707 = vmatprep.mubr.bf16.mxu0 0
      %708 = vmatmul.mubr.bf16.gmra.mrb[0].mxu0 %v444
      %v709 = vpop.f32.mrb[0].mxu0
      %v710 = vadd.f32 0.0, %v709
      %v711 = vpop.f32.mrb[0].mxu0
      %v712 = vpop.f32.mrb[0].mxu0
      %v713 = vadd.f32 0.0, %v712
      %v714 = vpop.f32.mrb[0].mxu0
      %715 = vmatprep.mubr.bf16.mxu0 0
      %716 = vmatmul.mubr.bf16.gmra.mrb[0].mxu0 %v445
      %v717 = vpop.f32.mrb[0].mxu0
      %v718 = vadd.f32 0.0, %v717
      %v719 = vpop.f32.mrb[0].mxu0
      %v720 = vpop.f32.mrb[0].mxu0
      %v721 = vadd.f32 0.0, %v720
      %v722 = vpop.f32.mrb[0].mxu0
      %723 = vmatprep.mubr.bf16.mxu0 0
      %724 = vmatmul.mubr.bf16.gmra.mrb[0].mxu0 %v446
      %v725 = vpop.f32.mrb[0].mxu0
      %v726 = vadd.f32 0.0, %v725
      %v727 = vpop.f32.mrb[0].mxu0
      %v728 = vpop.f32.mrb[0].mxu0
      %v729 = vadd.f32 0.0, %v728
      %v730 = vpop.f32.mrb[0].mxu0
      %731 = vmatprep.mubr.bf16.mxu0 0
      %732 = vmatmul.mubr.bf16.gmra.mrb[0].mxu0 %v447
      %v733 = vpop.f32.mrb[0].mxu0
      %v734 = vadd.f32 0.0, %v733
      %v735 = vpop.f32.mrb[0].mxu0
      %v736 = vpop.f32.mrb[0].mxu0
      %v737 = vadd.f32 0.0, %v736
      %v738 = vpop.f32.mrb[0].mxu0
      %739 = vmatprep.mubr.bf16.mxu0 0
      %740 = vmatmul.mubr.bf16.gmra.mrb[0].mxu0 %v448
      %v741 = vpop.f32.mrb[0].mxu0
      %v742 = vadd.f32 0.0, %v741
      %v743 = vpop.f32.mrb[0].mxu0
      %v744 = vpop.f32.mrb[0].mxu0
      %v745 = vadd.f32 0.0, %v744
      %v746 = vpop.f32.mrb[0].mxu0
      %747 = vmatprep.mubr.bf16.mxu0 0
      %748 = vmatmul.mubr.bf16.gmra.mrb[0].mxu0 %v449
      %v749 = vpop.f32.mrb[0].mxu0
      %v750 = vadd.f32 0.0, %v749
      %v751 = vpop.f32.mrb[0].mxu0
      %v752 = vpop.f32.mrb[0].mxu0
      %v753 = vadd.f32 0.0, %v752
      %v754 = vpop.f32.mrb[0].mxu0
      %755 = vmatprep.mubr.bf16.mxu0 0
      %756 = vmatmul.mubr.bf16.gmra.mrb[0].mxu0 %v450
      %v757 = vpop.f32.mrb[0].mxu0
      %v758 = vadd.f32 0.0, %v757
      %v759 = vpop.f32.mrb[0].mxu0
      %v760 = vpop.f32.mrb[0].mxu0
      %v761 = vadd.f32 0.0, %v760
      %v762 = vpop.f32.mrb[0].mxu0
      %763 = vmatprep.mubr.bf16.mxu0 0
      %764 = vmatmul.mubr.bf16.gmra.mrb[0].mxu0 %v451
      %v765 = vpop.f32.mrb[0].mxu0
      %v766 = vadd.f32 0.0, %v765
      %v767 = vpop.f32.mrb[0].mxu0
      %v768 = vpop.f32.mrb[0].mxu0
      %v769 = vadd.f32 0.0, %v768
      %v770 = vpop.f32.mrb[0].mxu0
      %771 = vmatprep.mubr.bf16.mxu0 0
      %772 = vmatmul.mubr.bf16.gmra.mrb[0].mxu0 %v452
      %v773 = vpop.f32.mrb[0].mxu0
      %v774 = vadd.f32 0.0, %v773
      %v775 = vpop.f32.mrb[0].mxu0
      %v776 = vpop.f32.mrb[0].mxu0
      %v777 = vadd.f32 0.0, %v776
      %v778 = vpop.f32.mrb[0].mxu0
      %779 = vmatprep.mubr.bf16.mxu0 0
      %780 = vmatmul.mubr.bf16.gmra.mrb[0].mxu0 %v453
      %v781 = vpop.f32.mrb[0].mxu0
      %v782 = vadd.f32 0.0, %v781
      %v783 = vpop.f32.mrb[0].mxu0
      %v784 = vpop.f32.mrb[0].mxu0
      %v785 = vadd.f32 0.0, %v784
      %v786 = vpop.f32.mrb[0].mxu0
      %787 = vmatprep.mubr.bf16.mxu0 0
      %788 = vmatmul.mubr.bf16.gmra.mrb[0].mxu0 %v454
      %v789 = vpop.f32.mrb[0].mxu0
      %v790 = vadd.f32 0.0, %v789
      %v791 = vpop.f32.mrb[0].mxu0
      %v792 = vpop.f32.mrb[0].mxu0
      %v793 = vadd.f32 0.0, %v792
      %v794 = vpop.f32.mrb[0].mxu0
      %795 = vmatprep.mubr.bf16.mxu0 0
      %796 = vmatmul.mubr.bf16.gmra.mrb[0].mxu0 %v455
      %v797 = vpop.f32.mrb[0].mxu0
      %v798 = vadd.f32 0.0, %v797
      %v799 = vpop.f32.mrb[0].mxu0
      %v800 = vpop.f32.mrb[0].mxu0
      %v801 = vadd.f32 0.0, %v800
      %v802 = vpop.f32.mrb[0].mxu0
      %803 = vmatprep.mubr.bf16.mxu0 0
      %804 = vmatmul.mubr.bf16.gmra.mrb[0].mxu0 %v456
      %v805 = vpop.f32.mrb[0].mxu0
      %v806 = vadd.f32 0.0, %v805
      %v807 = vpop.f32.mrb[0].mxu0
      %v808 = vpop.f32.mrb[0].mxu0
      %v809 = vadd.f32 0.0, %v808
      %v810 = vpop.f32.mrb[0].mxu0
      %811 = vmatprep.mubr.bf16.mxu0 0
      %812 = vmatmul.mubr.bf16.gmra.mrb[0].mxu0 %v457
      %v813 = vpop.f32.mrb[0].mxu0
      %v814 = vadd.f32 0.0, %v813
      %v815 = vpop.f32.mrb[0].mxu0
      %v816 = vpop.f32.mrb[0].mxu0
      %v817 = vadd.f32 0.0, %v816
      %v818 = vpop.f32.mrb[0].mxu0
      %819 = vmatprep.mubr.bf16.mxu0 0
      %820 = vmatmul.mubr.bf16.gmra.mrb[0].mxu0 %v458
      %v821 = vpop.f32.mrb[0].mxu0
      %v822 = vadd.f32 0.0, %v821
      %v823 = vpop.f32.mrb[0].mxu0
      %v824 = vpop.f32.mrb[0].mxu0
      %v825 = vadd.f32 0.0, %v824
      %v826 = vpop.f32.mrb[0].mxu0
      %827 = vdwg.mxu0
      %p828 = scmp.eq.s32.totalorder %s19, 0
      %p829 = scmp.eq.s32.totalorder %s20, 0
      %p830 = pnand %p828, %p829
      %p831 = pneg %p830
      // Predicated region
      $region37: #{discriminator_forward.6} parent=35 // pred_check
        _
      $region38: #{discriminator_forward.6} parent=35 // pred_check_branch
        %833 = sbr.rel (%p830) target = $region40
      $region39: #{discriminator_forward.6} parent=35 // pred_region
        %834 = vst [vmem:[#allocation2] sm:$0x1] 0.0
        %835 = vst [vmem:[#allocation3] sm:$0x1] 0.0
      $region40: #{discriminator_forward.6} parent=35 // pred_fallthru
        _
      // Predicated region
      $region41: #{discriminator_forward.6} parent=35 // pred_check
        %p836 = pneg %p828
      $region42: #{discriminator_forward.6} parent=35 // pred_check_branch
        %838 = sbr.rel (%p836) target = $region44
      $region43: #{discriminator_forward.6} parent=35 // pred_region
        %v839 = vld [vmem:[#allocation2] sm:$0x1]
        %v840 = vadd.f32 %v574, %v577
        %v841 = vadd.f32 %v840, %v582
        %v842 = vadd.f32 %v841, %v585
        %v843 = vadd.f32 %v842, %v590
        %v844 = vadd.f32 %v843, %v593
        %v845 = vadd.f32 %v844, %v598
        %v846 = vadd.f32 %v845, %v601
        %v847 = vadd.f32 %v846, %v606
        %v848 = vadd.f32 %v847, %v609
        %v849 = vadd.f32 %v848, %v614
        %v850 = vadd.f32 %v849, %v617
        %v851 = vadd.f32 %v850, %v622
        %v852 = vadd.f32 %v851, %v625
        %v853 = vadd.f32 %v852, %v630
        %v854 = vadd.f32 %v853, %v633
        %v855 = vadd.f32 %v854, %v638
        %v856 = vadd.f32 %v855, %v641
        %v857 = vadd.f32 %v856, %v646
        %v858 = vadd.f32 %v857, %v649
        %v859 = vadd.f32 %v858, %v654
        %v860 = vadd.f32 %v859, %v657
        %v861 = vadd.f32 %v860, %v662
        %v862 = vadd.f32 %v861, %v665
        %v863 = vadd.f32 %v862, %v670
        %v864 = vadd.f32 %v863, %v673
        %v865 = vadd.f32 %v864, %v678
        %v866 = vadd.f32 %v865, %v681
        %v867 = vadd.f32 %v866, %v686
        %v868 = vadd.f32 %v867, %v689
        %v869 = vadd.f32 %v868, %v694
        %v870 = vadd.f32 %v869, %v697
        %v871 = vadd.f32 %v870, %v702
        %v872 = vadd.f32 %v871, %v705
        %v873 = vadd.f32 %v872, %v710
        %v874 = vadd.f32 %v873, %v713
        %v875 = vadd.f32 %v874, %v718
        %v876 = vadd.f32 %v875, %v721
        %v877 = vadd.f32 %v876, %v726
        %v878 = vadd.f32 %v877, %v729
        %v879 = vadd.f32 %v878, %v734
        %v880 = vadd.f32 %v879, %v737
        %v881 = vadd.f32 %v880, %v742
        %v882 = vadd.f32 %v881, %v745
        %v883 = vadd.f32 %v882, %v750
        %v884 = vadd.f32 %v883, %v753
        %v885 = vadd.f32 %v884, %v758
        %v886 = vadd.f32 %v885, %v761
        %v887 = vadd.f32 %v886, %v766
        %v888 = vadd.f32 %v887, %v769
        %v889 = vadd.f32 %v888, %v774
        %v890 = vadd.f32 %v889, %v777
        %v891 = vadd.f32 %v890, %v782
        %v892 = vadd.f32 %v891, %v785
        %v893 = vadd.f32 %v892, %v790
        %v894 = vadd.f32 %v893, %v793
        %v895 = vadd.f32 %v894, %v798
        %v896 = vadd.f32 %v895, %v801
        %v897 = vadd.f32 %v896, %v806
        %v898 = vadd.f32 %v897, %v809
        %v899 = vadd.f32 %v898, %v814
        %v900 = vadd.f32 %v899, %v817
        %v901 = vadd.f32 %v900, %v822
        %v902 = vadd.f32 %v901, %v825
        %v903 = vrot.slane %v902, 4
        %v904 = vadd.f32 %v902, %v903
        %v905 = vrot.slane %v904, 2
        %v906 = vadd.f32 %v904, %v905
        %v907 = vrot.slane %v906, 1
        %v908 = vadd.f32 %v906, %v907
        %v909 = vadd.f32 %v839, %v908
        %910 = vst [vmem:[#allocation2] sm:$0x1] %v909
        %v911 = vld [vmem:[#allocation3] sm:$0x1]
        %v912 = vmul.f32 %v574, %v574
        %v913 = vmul.f32 %v577, %v577
        %v914 = vmul.f32 %v582, %v582
        %v915 = vmul.f32 %v585, %v585
        %v916 = vmul.f32 %v590, %v590
        %v917 = vmul.f32 %v593, %v593
        %v918 = vmul.f32 %v598, %v598
        %v919 = vmul.f32 %v601, %v601
        %v920 = vmul.f32 %v606, %v606
        %v921 = vmul.f32 %v609, %v609
        %v922 = vmul.f32 %v614, %v614
        %v923 = vmul.f32 %v617, %v617
        %v924 = vmul.f32 %v622, %v622
        %v925 = vmul.f32 %v625, %v625
        %v926 = vmul.f32 %v630, %v630
        %v927 = vmul.f32 %v633, %v633
        %v928 = vmul.f32 %v638, %v638
        %v929 = vmul.f32 %v641, %v641
        %v930 = vmul.f32 %v646, %v646
        %v931 = vmul.f32 %v649, %v649
        %v932 = vmul.f32 %v654, %v654
        %v933 = vmul.f32 %v657, %v657
        %v934 = vmul.f32 %v662, %v662
        %v935 = vmul.f32 %v665, %v665
        %v936 = vmul.f32 %v670, %v670
        %v937 = vmul.f32 %v673, %v673
        %v938 = vmul.f32 %v678, %v678
        %v939 = vmul.f32 %v681, %v681
        %v940 = vmul.f32 %v686, %v686
        %v941 = vmul.f32 %v689, %v689
        %v942 = vmul.f32 %v694, %v694
        %v943 = vmul.f32 %v697, %v697
        %v944 = vmul.f32 %v702, %v702
        %v945 = vmul.f32 %v705, %v705
        %v946 = vmul.f32 %v710, %v710
        %v947 = vmul.f32 %v713, %v713
        %v948 = vmul.f32 %v718, %v718
        %v949 = vmul.f32 %v721, %v721
        %v950 = vmul.f32 %v726, %v726
        %v951 = vmul.f32 %v729, %v729
        %v952 = vmul.f32 %v734, %v734
        %v953 = vmul.f32 %v737, %v737
        %v954 = vmul.f32 %v742, %v742
        %v955 = vmul.f32 %v745, %v745
        %v956 = vmul.f32 %v750, %v750
        %v957 = vmul.f32 %v753, %v753
        %v958 = vmul.f32 %v758, %v758
        %v959 = vmul.f32 %v761, %v761
        %v960 = vmul.f32 %v766, %v766
        %v961 = vmul.f32 %v769, %v769
        %v962 = vmul.f32 %v774, %v774
        %v963 = vmul.f32 %v777, %v777
        %v964 = vmul.f32 %v782, %v782
        %v965 = vmul.f32 %v785, %v785
        %v966 = vmul.f32 %v790, %v790
        %v967 = vmul.f32 %v793, %v793
        %v968 = vmul.f32 %v798, %v798
        %v969 = vmul.f32 %v801, %v801
        %v970 = vmul.f32 %v806, %v806
        %v971 = vmul.f32 %v809, %v809
        %v972 = vmul.f32 %v814, %v814
        %v973 = vmul.f32 %v817, %v817
        %v974 = vmul.f32 %v822, %v822
        %v975 = vmul.f32 %v825, %v825
        %v976 = vadd.f32 %v912, %v913
        %v977 = vadd.f32 %v976, %v914
        %v978 = vadd.f32 %v977, %v915
        %v979 = vadd.f32 %v978, %v916
        %v980 = vadd.f32 %v979, %v917
        %v981 = vadd.f32 %v980, %v918
        %v982 = vadd.f32 %v981, %v919
        %v983 = vadd.f32 %v982, %v920
        %v984 = vadd.f32 %v983, %v921
        %v985 = vadd.f32 %v984, %v922
        %v986 = vadd.f32 %v985, %v923
        %v987 = vadd.f32 %v986, %v924
        %v988 = vadd.f32 %v987, %v925
        %v989 = vadd.f32 %v988, %v926
        %v990 = vadd.f32 %v989, %v927
        %v991 = vadd.f32 %v990, %v928
        %v992 = vadd.f32 %v991, %v929
        %v993 = vadd.f32 %v992, %v930
        %v994 = vadd.f32 %v993, %v931
        %v995 = vadd.f32 %v994, %v932
        %v996 = vadd.f32 %v995, %v933
        %v997 = vadd.f32 %v996, %v934
        %v998 = vadd.f32 %v997, %v935
        %v999 = vadd.f32 %v998, %v936
        %v1000 = vadd.f32 %v999, %v937
        %v1001 = vadd.f32 %v1000, %v938
        %v1002 = vadd.f32 %v1001, %v939
        %v1003 = vadd.f32 %v1002, %v940
        %v1004 = vadd.f32 %v1003, %v941
        %v1005 = vadd.f32 %v1004, %v942
        %v1006 = vadd.f32 %v1005, %v943
        %v1007 = vadd.f32 %v1006, %v944
        %v1008 = vadd.f32 %v1007, %v945
        %v1009 = vadd.f32 %v1008, %v946
        %v1010 = vadd.f32 %v1009, %v947
        %v1011 = vadd.f32 %v1010, %v948
        %v1012 = vadd.f32 %v1011, %v949
        %v1013 = vadd.f32 %v1012, %v950
        %v1014 = vadd.f32 %v1013, %v951
        %v1015 = vadd.f32 %v1014, %v952
        %v1016 = vadd.f32 %v1015, %v953
        %v1017 = vadd.f32 %v1016, %v954
        %v1018 = vadd.f32 %v1017, %v955
        %v1019 = vadd.f32 %v1018, %v956
        %v1020 = vadd.f32 %v1019, %v957
        %v1021 = vadd.f32 %v1020, %v958
        %v1022 = vadd.f32 %v1021, %v959
        %v1023 = vadd.f32 %v1022, %v960
        %v1024 = vadd.f32 %v1023, %v961
        %v1025 = vadd.f32 %v1024, %v962
        %v1026 = vadd.f32 %v1025, %v963
        %v1027 = vadd.f32 %v1026, %v964
        %v1028 = vadd.f32 %v1027, %v965
        %v1029 = vadd.f32 %v1028, %v966
        %v1030 = vadd.f32 %v1029, %v967
        %v1031 = vadd.f32 %v1030, %v968
        %v1032 = vadd.f32 %v1031, %v969
        %v1033 = vadd.f32 %v1032, %v970
        %v1034 = vadd.f32 %v1033, %v971
        %v1035 = vadd.f32 %v1034, %v972
        %v1036 = vadd.f32 %v1035, %v973
        %v1037 = vadd.f32 %v1036, %v974
        %v1038 = vadd.f32 %v1037, %v975
        %v1039 = vrot.slane %v1038, 4
        %v1040 = vadd.f32 %v1038, %v1039
        %v1041 = vrot.slane %v1040, 2
        %v1042 = vadd.f32 %v1040, %v1041
        %v1043 = vrot.slane %v1042, 1
        %v1044 = vadd.f32 %v1042, %v1043
        %v1045 = vadd.f32 %v911, %v1044
        %1046 = vst [vmem:[#allocation3] sm:$0x1] %v1045
      $region44: #{discriminator_forward.6} parent=35 // pred_fallthru
        _
      %p1047 = scmp.eq.s32.totalorder %s19, 1
      // Predicated region
      $region45: #{discriminator_forward.6} parent=35 // pred_check
        %p1048 = pneg %p1047
      $region46: #{discriminator_forward.6} parent=35 // pred_check_branch
        %1050 = sbr.rel (%p1048) target = $region48
      $region47: #{discriminator_forward.6} parent=35 // pred_region
        %v1051 = vld [vmem:[#allocation2] sm:$0x1]
        %v1052 = vmul.f32 %v1051, 0.001953125
        %v1053 = vld [vmem:[#allocation3] sm:$0x1]
        %v1054 = vmul.f32 %v1053, 0.001953125
        %v1055 = vmul.f32 %v1052, %v1052
        %v1056 = vsub.f32 %v1054, %v1055
        %v1057 = vadd.f32 %v1056, 1e-05
        %v1058 = vrsqrt.pop %v1057
        %v1060 = vlaneseq
        %v1061 = vshrl.u32 %v1060, 7
        %v1062 = vsub.s32 0, %v1061
        %v1063 = vrot.slane %v1052, %v1062
        %v1065 = vsub.f32 %v574, %v1063
        %v1066 = vsub.f32 %v577, %v1063
        %v1067 = vsub.f32 %v582, %v1063
        %v1068 = vsub.f32 %v585, %v1063
        %v1069 = vsub.f32 %v590, %v1063
        %v1070 = vsub.f32 %v593, %v1063
        %v1071 = vsub.f32 %v598, %v1063
        %v1072 = vsub.f32 %v601, %v1063
        %v1073 = vsub.f32 %v606, %v1063
        %v1074 = vsub.f32 %v609, %v1063
        %v1075 = vsub.f32 %v614, %v1063
        %v1076 = vsub.f32 %v617, %v1063
        %v1077 = vsub.f32 %v622, %v1063
        %v1078 = vsub.f32 %v625, %v1063
        %v1079 = vsub.f32 %v630, %v1063
        %v1080 = vsub.f32 %v633, %v1063
        %v1081 = vsub.f32 %v638, %v1063
        %v1082 = vsub.f32 %v641, %v1063
        %v1083 = vsub.f32 %v646, %v1063
        %v1084 = vsub.f32 %v649, %v1063
        %v1085 = vsub.f32 %v654, %v1063
        %v1086 = vsub.f32 %v657, %v1063
        %v1087 = vsub.f32 %v662, %v1063
        %v1088 = vsub.f32 %v665, %v1063
        %v1089 = vsub.f32 %v670, %v1063
        %v1090 = vsub.f32 %v673, %v1063
        %v1091 = vsub.f32 %v678, %v1063
        %v1092 = vsub.f32 %v681, %v1063
        %v1093 = vsub.f32 %v686, %v1063
        %v1094 = vsub.f32 %v689, %v1063
        %v1095 = vsub.f32 %v694, %v1063
        %v1096 = vsub.f32 %v697, %v1063
        %v1097 = vsub.f32 %v702, %v1063
        %v1098 = vsub.f32 %v705, %v1063
        %v1099 = vsub.f32 %v710, %v1063
        %v1100 = vsub.f32 %v713, %v1063
        %v1101 = vsub.f32 %v718, %v1063
        %v1102 = vsub.f32 %v721, %v1063
        %v1103 = vsub.f32 %v726, %v1063
        %v1104 = vsub.f32 %v729, %v1063
        %v1105 = vsub.f32 %v734, %v1063
        %v1106 = vsub.f32 %v737, %v1063
        %v1107 = vsub.f32 %v742, %v1063
        %v1108 = vsub.f32 %v745, %v1063
        %v1109 = vsub.f32 %v750, %v1063
        %v1110 = vsub.f32 %v753, %v1063
        %v1111 = vsub.f32 %v758, %v1063
        %v1112 = vsub.f32 %v761, %v1063
        %v1113 = vsub.f32 %v766, %v1063
        %v1114 = vsub.f32 %v769, %v1063
        %v1115 = vsub.f32 %v774, %v1063
        %v1116 = vsub.f32 %v777, %v1063
        %v1117 = vsub.f32 %v782, %v1063
        %v1118 = vsub.f32 %v785, %v1063
        %v1119 = vsub.f32 %v790, %v1063
        %v1120 = vsub.f32 %v793, %v1063
        %v1121 = vsub.f32 %v798, %v1063
        %v1122 = vsub.f32 %v801, %v1063
        %v1123 = vsub.f32 %v806, %v1063
        %v1124 = vsub.f32 %v809, %v1063
        %v1125 = vsub.f32 %v814, %v1063
        %v1126 = vsub.f32 %v817, %v1063
        %v1127 = vsub.f32 %v822, %v1063
        %v1128 = vsub.f32 %v825, %v1063
        %v1129 = vld [vmem:[%s2] sm:$0x1]
        %v1130 = vmul.f32 %v1058, %v1129
        %v1132 = vlaneseq
        %v1133 = vshrl.u32 %v1132, 7
        %v1134 = vsub.s32 0, %v1133
        %v1135 = vrot.slane %v1130, %v1134
        %v1137 = vmul.f32 %v1065, %v1135
        %v1138 = vmul.f32 %v1066, %v1135
        %v1139 = vmul.f32 %v1067, %v1135
        %v1140 = vmul.f32 %v1068, %v1135
        %v1141 = vmul.f32 %v1069, %v1135
        %v1142 = vmul.f32 %v1070, %v1135
        %v1143 = vmul.f32 %v1071, %v1135
        %v1144 = vmul.f32 %v1072, %v1135
        %v1145 = vmul.f32 %v1073, %v1135
        %v1146 = vmul.f32 %v1074, %v1135
        %v1147 = vmul.f32 %v1075, %v1135
        %v1148 = vmul.f32 %v1076, %v1135
        %v1149 = vmul.f32 %v1077, %v1135
        %v1150 = vmul.f32 %v1078, %v1135
        %v1151 = vmul.f32 %v1079, %v1135
        %v1152 = vmul.f32 %v1080, %v1135
        %v1153 = vmul.f32 %v1081, %v1135
        %v1154 = vmul.f32 %v1082, %v1135
        %v1155 = vmul.f32 %v1083, %v1135
        %v1156 = vmul.f32 %v1084, %v1135
        %v1157 = vmul.f32 %v1085, %v1135
        %v1158 = vmul.f32 %v1086, %v1135
        %v1159 = vmul.f32 %v1087, %v1135
        %v1160 = vmul.f32 %v1088, %v1135
        %v1161 = vmul.f32 %v1089, %v1135
        %v1162 = vmul.f32 %v1090, %v1135
        %v1163 = vmul.f32 %v1091, %v1135
        %v1164 = vmul.f32 %v1092, %v1135
        %v1165 = vmul.f32 %v1093, %v1135
        %v1166 = vmul.f32 %v1094, %v1135
        %v1167 = vmul.f32 %v1095, %v1135
        %v1168 = vmul.f32 %v1096, %v1135
        %v1169 = vmul.f32 %v1097, %v1135
        %v1170 = vmul.f32 %v1098, %v1135
        %v1171 = vmul.f32 %v1099, %v1135
        %v1172 = vmul.f32 %v1100, %v1135
        %v1173 = vmul.f32 %v1101, %v1135
        %v1174 = vmul.f32 %v1102, %v1135
        %v1175 = vmul.f32 %v1103, %v1135
        %v1176 = vmul.f32 %v1104, %v1135
        %v1177 = vmul.f32 %v1105, %v1135
        %v1178 = vmul.f32 %v1106, %v1135
        %v1179 = vmul.f32 %v1107, %v1135
        %v1180 = vmul.f32 %v1108, %v1135
        %v1181 = vmul.f32 %v1109, %v1135
        %v1182 = vmul.f32 %v1110, %v1135
        %v1183 = vmul.f32 %v1111, %v1135
        %v1184 = vmul.f32 %v1112, %v1135
        %v1185 = vmul.f32 %v1113, %v1135
        %v1186 = vmul.f32 %v1114, %v1135
        %v1187 = vmul.f32 %v1115, %v1135
        %v1188 = vmul.f32 %v1116, %v1135
        %v1189 = vmul.f32 %v1117, %v1135
        %v1190 = vmul.f32 %v1118, %v1135
        %v1191 = vmul.f32 %v1119, %v1135
        %v1192 = vmul.f32 %v1120, %v1135
        %v1193 = vmul.f32 %v1121, %v1135
        %v1194 = vmul.f32 %v1122, %v1135
        %v1195 = vmul.f32 %v1123, %v1135
        %v1196 = vmul.f32 %v1124, %v1135
        %v1197 = vmul.f32 %v1125, %v1135
        %v1198 = vmul.f32 %v1126, %v1135
        %v1199 = vmul.f32 %v1127, %v1135
        %v1200 = vmul.f32 %v1128, %v1135
        %v1201 = vld [vmem:[%s3] sm:$0x1]
        %v1203 = vlaneseq
        %v1204 = vshrl.u32 %v1203, 7
        %v1205 = vsub.s32 0, %v1204
        %v1206 = vrot.slane %v1201, %v1205
        %v1208 = vadd.f32 %v1137, %v1206
        %v1209 = vadd.f32 %v1138, %v1206
        %v1210 = vadd.f32 %v1139, %v1206
        %v1211 = vadd.f32 %v1140, %v1206
        %v1212 = vadd.f32 %v1141, %v1206
        %v1213 = vadd.f32 %v1142, %v1206
        %v1214 = vadd.f32 %v1143, %v1206
        %v1215 = vadd.f32 %v1144, %v1206
        %v1216 = vadd.f32 %v1145, %v1206
        %v1217 = vadd.f32 %v1146, %v1206
        %v1218 = vadd.f32 %v1147, %v1206
        %v1219 = vadd.f32 %v1148, %v1206
        %v1220 = vadd.f32 %v1149, %v1206
        %v1221 = vadd.f32 %v1150, %v1206
        %v1222 = vadd.f32 %v1151, %v1206
        %v1223 = vadd.f32 %v1152, %v1206
        %v1224 = vadd.f32 %v1153, %v1206
        %v1225 = vadd.f32 %v1154, %v1206
        %v1226 = vadd.f32 %v1155, %v1206
        %v1227 = vadd.f32 %v1156, %v1206
        %v1228 = vadd.f32 %v1157, %v1206
        %v1229 = vadd.f32 %v1158, %v1206
        %v1230 = vadd.f32 %v1159, %v1206
        %v1231 = vadd.f32 %v1160, %v1206
        %v1232 = vadd.f32 %v1161, %v1206
        %v1233 = vadd.f32 %v1162, %v1206
        %v1234 = vadd.f32 %v1163, %v1206
        %v1235 = vadd.f32 %v1164, %v1206
        %v1236 = vadd.f32 %v1165, %v1206
        %v1237 = vadd.f32 %v1166, %v1206
        %v1238 = vadd.f32 %v1167, %v1206
        %v1239 = vadd.f32 %v1168, %v1206
        %v1240 = vadd.f32 %v1169, %v1206
        %v1241 = vadd.f32 %v1170, %v1206
        %v1242 = vadd.f32 %v1171, %v1206
        %v1243 = vadd.f32 %v1172, %v1206
        %v1244 = vadd.f32 %v1173, %v1206
        %v1245 = vadd.f32 %v1174, %v1206
        %v1246 = vadd.f32 %v1175, %v1206
        %v1247 = vadd.f32 %v1176, %v1206
        %v1248 = vadd.f32 %v1177, %v1206
        %v1249 = vadd.f32 %v1178, %v1206
        %v1250 = vadd.f32 %v1179, %v1206
        %v1251 = vadd.f32 %v1180, %v1206
        %v1252 = vadd.f32 %v1181, %v1206
        %v1253 = vadd.f32 %v1182, %v1206
        %v1254 = vadd.f32 %v1183, %v1206
        %v1255 = vadd.f32 %v1184, %v1206
        %v1256 = vadd.f32 %v1185, %v1206
        %v1257 = vadd.f32 %v1186, %v1206
        %v1258 = vadd.f32 %v1187, %v1206
        %v1259 = vadd.f32 %v1188, %v1206
        %v1260 = vadd.f32 %v1189, %v1206
        %v1261 = vadd.f32 %v1190, %v1206
        %v1262 = vadd.f32 %v1191, %v1206
        %v1263 = vadd.f32 %v1192, %v1206
        %v1264 = vadd.f32 %v1193, %v1206
        %v1265 = vadd.f32 %v1194, %v1206
        %v1266 = vadd.f32 %v1195, %v1206
        %v1267 = vadd.f32 %v1196, %v1206
        %v1268 = vadd.f32 %v1197, %v1206
        %v1269 = vadd.f32 %v1198, %v1206
        %v1270 = vadd.f32 %v1199, %v1206
        %v1271 = vadd.f32 %v1200, %v1206
        %vm1272 = vcmp.ge.f32.partialorder %v1208, 0.0
        %vm1273 = vcmp.ge.f32.partialorder %v1209, 0.0
        %vm1274 = vcmp.ge.f32.partialorder %v1210, 0.0
        %vm1275 = vcmp.ge.f32.partialorder %v1211, 0.0
        %vm1276 = vcmp.ge.f32.partialorder %v1212, 0.0
        %vm1277 = vcmp.ge.f32.partialorder %v1213, 0.0
        %vm1278 = vcmp.ge.f32.partialorder %v1214, 0.0
        %vm1279 = vcmp.ge.f32.partialorder %v1215, 0.0
        %vm1280 = vcmp.ge.f32.partialorder %v1216, 0.0
        %vm1281 = vcmp.ge.f32.partialorder %v1217, 0.0
        %vm1282 = vcmp.ge.f32.partialorder %v1218, 0.0
        %vm1283 = vcmp.ge.f32.partialorder %v1219, 0.0
        %vm1284 = vcmp.ge.f32.partialorder %v1220, 0.0
        %vm1285 = vcmp.ge.f32.partialorder %v1221, 0.0
        %vm1286 = vcmp.ge.f32.partialorder %v1222, 0.0
        %vm1287 = vcmp.ge.f32.partialorder %v1223, 0.0
        %vm1288 = vcmp.ge.f32.partialorder %v1224, 0.0
        %vm1289 = vcmp.ge.f32.partialorder %v1225, 0.0
        %vm1290 = vcmp.ge.f32.partialorder %v1226, 0.0
        %vm1291 = vcmp.ge.f32.partialorder %v1227, 0.0
        %vm1292 = vcmp.ge.f32.partialorder %v1228, 0.0
        %vm1293 = vcmp.ge.f32.partialorder %v1229, 0.0
        %vm1294 = vcmp.ge.f32.partialorder %v1230, 0.0
        %vm1295 = vcmp.ge.f32.partialorder %v1231, 0.0
        %vm1296 = vcmp.ge.f32.partialorder %v1232, 0.0
        %vm1297 = vcmp.ge.f32.partialorder %v1233, 0.0
        %vm1298 = vcmp.ge.f32.partialorder %v1234, 0.0
        %vm1299 = vcmp.ge.f32.partialorder %v1235, 0.0
        %vm1300 = vcmp.ge.f32.partialorder %v1236, 0.0
        %vm1301 = vcmp.ge.f32.partialorder %v1237, 0.0
        %vm1302 = vcmp.ge.f32.partialorder %v1238, 0.0
        %vm1303 = vcmp.ge.f32.partialorder %v1239, 0.0
        %vm1304 = vcmp.ge.f32.partialorder %v1240, 0.0
        %vm1305 = vcmp.ge.f32.partialorder %v1241, 0.0
        %vm1306 = vcmp.ge.f32.partialorder %v1242, 0.0
        %vm1307 = vcmp.ge.f32.partialorder %v1243, 0.0
        %vm1308 = vcmp.ge.f32.partialorder %v1244, 0.0
        %vm1309 = vcmp.ge.f32.partialorder %v1245, 0.0
        %vm1310 = vcmp.ge.f32.partialorder %v1246, 0.0
        %vm1311 = vcmp.ge.f32.partialorder %v1247, 0.0
        %vm1312 = vcmp.ge.f32.partialorder %v1248, 0.0
        %vm1313 = vcmp.ge.f32.partialorder %v1249, 0.0
        %vm1314 = vcmp.ge.f32.partialorder %v1250, 0.0
        %vm1315 = vcmp.ge.f32.partialorder %v1251, 0.0
        %vm1316 = vcmp.ge.f32.partialorder %v1252, 0.0
        %vm1317 = vcmp.ge.f32.partialorder %v1253, 0.0
        %vm1318 = vcmp.ge.f32.partialorder %v1254, 0.0
        %vm1319 = vcmp.ge.f32.partialorder %v1255, 0.0
        %vm1320 = vcmp.ge.f32.partialorder %v1256, 0.0
        %vm1321 = vcmp.ge.f32.partialorder %v1257, 0.0
        %vm1322 = vcmp.ge.f32.partialorder %v1258, 0.0
        %vm1323 = vcmp.ge.f32.partialorder %v1259, 0.0
        %vm1324 = vcmp.ge.f32.partialorder %v1260, 0.0
        %vm1325 = vcmp.ge.f32.partialorder %v1261, 0.0
        %vm1326 = vcmp.ge.f32.partialorder %v1262, 0.0
        %vm1327 = vcmp.ge.f32.partialorder %v1263, 0.0
        %vm1328 = vcmp.ge.f32.partialorder %v1264, 0.0
        %vm1329 = vcmp.ge.f32.partialorder %v1265, 0.0
        %vm1330 = vcmp.ge.f32.partialorder %v1266, 0.0
        %vm1331 = vcmp.ge.f32.partialorder %v1267, 0.0
        %vm1332 = vcmp.ge.f32.partialorder %v1268, 0.0
        %vm1333 = vcmp.ge.f32.partialorder %v1269, 0.0
        %vm1334 = vcmp.ge.f32.partialorder %v1270, 0.0
        %vm1335 = vcmp.ge.f32.partialorder %v1271, 0.0
        %v1336 = vmul.f32 %v1208, 0.2
        %v1337 = vmul.f32 %v1209, 0.2
        %v1338 = vmul.f32 %v1210, 0.2
        %v1339 = vmul.f32 %v1211, 0.2
        %v1340 = vmul.f32 %v1212, 0.2
        %v1341 = vmul.f32 %v1213, 0.2
        %v1342 = vmul.f32 %v1214, 0.2
        %v1343 = vmul.f32 %v1215, 0.2
        %v1344 = vmul.f32 %v1216, 0.2
        %v1345 = vmul.f32 %v1217, 0.2
        %v1346 = vmul.f32 %v1218, 0.2
        %v1347 = vmul.f32 %v1219, 0.2
        %v1348 = vmul.f32 %v1220, 0.2
        %v1349 = vmul.f32 %v1221, 0.2
        %v1350 = vmul.f32 %v1222, 0.2
        %v1351 = vmul.f32 %v1223, 0.2
        %v1352 = vmul.f32 %v1224, 0.2
        %v1353 = vmul.f32 %v1225, 0.2
        %v1354 = vmul.f32 %v1226, 0.2
        %v1355 = vmul.f32 %v1227, 0.2
        %v1356 = vmul.f32 %v1228, 0.2
        %v1357 = vmul.f32 %v1229, 0.2
        %v1358 = vmul.f32 %v1230, 0.2
        %v1359 = vmul.f32 %v1231, 0.2
        %v1360 = vmul.f32 %v1232, 0.2
        %v1361 = vmul.f32 %v1233, 0.2
        %v1362 = vmul.f32 %v1234, 0.2
        %v1363 = vmul.f32 %v1235, 0.2
        %v1364 = vmul.f32 %v1236, 0.2
        %v1365 = vmul.f32 %v1237, 0.2
        %v1366 = vmul.f32 %v1238, 0.2
        %v1367 = vmul.f32 %v1239, 0.2
        %v1368 = vmul.f32 %v1240, 0.2
        %v1369 = vmul.f32 %v1241, 0.2
        %v1370 = vmul.f32 %v1242, 0.2
        %v1371 = vmul.f32 %v1243, 0.2
        %v1372 = vmul.f32 %v1244, 0.2
        %v1373 = vmul.f32 %v1245, 0.2
        %v1374 = vmul.f32 %v1246, 0.2
        %v1375 = vmul.f32 %v1247, 0.2
        %v1376 = vmul.f32 %v1248, 0.2
        %v1377 = vmul.f32 %v1249, 0.2
        %v1378 = vmul.f32 %v1250, 0.2
        %v1379 = vmul.f32 %v1251, 0.2
        %v1380 = vmul.f32 %v1252, 0.2
        %v1381 = vmul.f32 %v1253, 0.2
        %v1382 = vmul.f32 %v1254, 0.2
        %v1383 = vmul.f32 %v1255, 0.2
        %v1384 = vmul.f32 %v1256, 0.2
        %v1385 = vmul.f32 %v1257, 0.2
        %v1386 = vmul.f32 %v1258, 0.2
        %v1387 = vmul.f32 %v1259, 0.2
        %v1388 = vmul.f32 %v1260, 0.2
        %v1389 = vmul.f32 %v1261, 0.2
        %v1390 = vmul.f32 %v1262, 0.2
        %v1391 = vmul.f32 %v1263, 0.2
        %v1392 = vmul.f32 %v1264, 0.2
        %v1393 = vmul.f32 %v1265, 0.2
        %v1394 = vmul.f32 %v1266, 0.2
        %v1395 = vmul.f32 %v1267, 0.2
        %v1396 = vmul.f32 %v1268, 0.2
        %v1397 = vmul.f32 %v1269, 0.2
        %v1398 = vmul.f32 %v1270, 0.2
        %v1399 = vmul.f32 %v1271, 0.2
        %v1400 = vsel %vm1272, %v1208, %v1336
        %v1401 = vsel %vm1273, %v1209, %v1337
        %v1402 = vsel %vm1274, %v1210, %v1338
        %v1403 = vsel %vm1275, %v1211, %v1339
        %v1404 = vsel %vm1276, %v1212, %v1340
        %v1405 = vsel %vm1277, %v1213, %v1341
        %v1406 = vsel %vm1278, %v1214, %v1342
        %v1407 = vsel %vm1279, %v1215, %v1343
        %v1408 = vsel %vm1280, %v1216, %v1344
        %v1409 = vsel %vm1281, %v1217, %v1345
        %v1410 = vsel %vm1282, %v1218, %v1346
        %v1411 = vsel %vm1283, %v1219, %v1347
        %v1412 = vsel %vm1284, %v1220, %v1348
        %v1413 = vsel %vm1285, %v1221, %v1349
        %v1414 = vsel %vm1286, %v1222, %v1350
        %v1415 = vsel %vm1287, %v1223, %v1351
        %v1416 = vsel %vm1288, %v1224, %v1352
        %v1417 = vsel %vm1289, %v1225, %v1353
        %v1418 = vsel %vm1290, %v1226, %v1354
        %v1419 = vsel %vm1291, %v1227, %v1355
        %v1420 = vsel %vm1292, %v1228, %v1356
        %v1421 = vsel %vm1293, %v1229, %v1357
        %v1422 = vsel %vm1294, %v1230, %v1358
        %v1423 = vsel %vm1295, %v1231, %v1359
        %v1424 = vsel %vm1296, %v1232, %v1360
        %v1425 = vsel %vm1297, %v1233, %v1361
        %v1426 = vsel %vm1298, %v1234, %v1362
        %v1427 = vsel %vm1299, %v1235, %v1363
        %v1428 = vsel %vm1300, %v1236, %v1364
        %v1429 = vsel %vm1301, %v1237, %v1365
        %v1430 = vsel %vm1302, %v1238, %v1366
        %v1431 = vsel %vm1303, %v1239, %v1367
        %v1432 = vsel %vm1304, %v1240, %v1368
        %v1433 = vsel %vm1305, %v1241, %v1369
        %v1434 = vsel %vm1306, %v1242, %v1370
        %v1435 = vsel %vm1307, %v1243, %v1371
        %v1436 = vsel %vm1308, %v1244, %v1372
        %v1437 = vsel %vm1309, %v1245, %v1373
        %v1438 = vsel %vm1310, %v1246, %v1374
        %v1439 = vsel %vm1311, %v1247, %v1375
        %v1440 = vsel %vm1312, %v1248, %v1376
        %v1441 = vsel %vm1313, %v1249, %v1377
        %v1442 = vsel %vm1314, %v1250, %v1378
        %v1443 = vsel %vm1315, %v1251, %v1379
        %v1444 = vsel %vm1316, %v1252, %v1380
        %v1445 = vsel %vm1317, %v1253, %v1381
        %v1446 = vsel %vm1318, %v1254, %v1382
        %v1447 = vsel %vm1319, %v1255, %v1383
        %v1448 = vsel %vm1320, %v1256, %v1384
        %v1449 = vsel %vm1321, %v1257, %v1385
        %v1450 = vsel %vm1322, %v1258, %v1386
        %v1451 = vsel %vm1323, %v1259, %v1387
        %v1452 = vsel %vm1324, %v1260, %v1388
        %v1453 = vsel %vm1325, %v1261, %v1389
        %v1454 = vsel %vm1326, %v1262, %v1390
        %v1455 = vsel %vm1327, %v1263, %v1391
        %v1456 = vsel %vm1328, %v1264, %v1392
        %v1457 = vsel %vm1329, %v1265, %v1393
        %v1458 = vsel %vm1330, %v1266, %v1394
        %v1459 = vsel %vm1331, %v1267, %v1395
        %v1460 = vsel %vm1332, %v1268, %v1396
        %v1461 = vsel %vm1333, %v1269, %v1397
        %v1462 = vsel %vm1334, %v1270, %v1398
        %v1463 = vsel %vm1335, %v1271, %v1399
        %1464 = vst [vmem:[%s215] sm:$0xff] %v1400
        %1465 = vst [vmem:[%s215 + $0x8] sm:$0xff] %v1401
        %1466 = vst [vmem:[%s215 + $0x10] sm:$0xff] %v1402
        %1467 = vst [vmem:[%s215 + $0x18] sm:$0xff] %v1403
        %1468 = vst [vmem:[%s215 + $0x20] sm:$0xff] %v1404
        %1469 = vst [vmem:[%s215 + $0x28] sm:$0xff] %v1405
        %1470 = vst [vmem:[%s215 + $0x30] sm:$0xff] %v1406
        %1471 = vst [vmem:[%s215 + $0x38] sm:$0xff] %v1407
        %1472 = vst [vmem:[%s215 + $0x40] sm:$0xff] %v1408
        %1473 = vst [vmem:[%s215 + $0x48] sm:$0xff] %v1409
        %1474 = vst [vmem:[%s215 + $0x50] sm:$0xff] %v1410
        %1475 = vst [vmem:[%s215 + $0x58] sm:$0xff] %v1411
        %1476 = vst [vmem:[%s215 + $0x60] sm:$0xff] %v1412
        %1477 = vst [vmem:[%s215 + $0x68] sm:$0xff] %v1413
        %1478 = vst [vmem:[%s215 + $0x70] sm:$0xff] %v1414
        %1479 = vst [vmem:[%s215 + $0x78] sm:$0xff] %v1415
        %1480 = vst [vmem:[%s215 + $0x80] sm:$0xff] %v1416
        %1481 = vst [vmem:[%s215 + $0x88] sm:$0xff] %v1417
        %1482 = vst [vmem:[%s215 + $0x90] sm:$0xff] %v1418
        %1483 = vst [vmem:[%s215 + $0x98] sm:$0xff] %v1419
        %1484 = vst [vmem:[%s215 + $0xa0] sm:$0xff] %v1420
        %1485 = vst [vmem:[%s215 + $0xa8] sm:$0xff] %v1421
        %1486 = vst [vmem:[%s215 + $0xb0] sm:$0xff] %v1422
        %1487 = vst [vmem:[%s215 + $0xb8] sm:$0xff] %v1423
        %1488 = vst [vmem:[%s215 + $0xc0] sm:$0xff] %v1424
        %1489 = vst [vmem:[%s215 + $0xc8] sm:$0xff] %v1425
        %1490 = vst [vmem:[%s215 + $0xd0] sm:$0xff] %v1426
        %1491 = vst [vmem:[%s215 + $0xd8] sm:$0xff] %v1427
        %1492 = vst [vmem:[%s215 + $0xe0] sm:$0xff] %v1428
        %1493 = vst [vmem:[%s215 + $0xe8] sm:$0xff] %v1429
        %1494 = vst [vmem:[%s215 + $0xf0] sm:$0xff] %v1430
        %1495 = vst [vmem:[%s215 + $0xf8] sm:$0xff] %v1431
        %1496 = vst [vmem:[%s215 + $0x100] sm:$0xff] %v1432
        %1497 = vst [vmem:[%s215 + $0x108] sm:$0xff] %v1433
        %1498 = vst [vmem:[%s215 + $0x110] sm:$0xff] %v1434
        %1499 = vst [vmem:[%s215 + $0x118] sm:$0xff] %v1435
        %1500 = vst [vmem:[%s215 + $0x120] sm:$0xff] %v1436
        %1501 = vst [vmem:[%s215 + $0x128] sm:$0xff] %v1437
        %1502 = vst [vmem:[%s215 + $0x130] sm:$0xff] %v1438
        %1503 = vst [vmem:[%s215 + $0x138] sm:$0xff] %v1439
        %1504 = vst [vmem:[%s215 + $0x140] sm:$0xff] %v1440
        %1505 = vst [vmem:[%s215 + $0x148] sm:$0xff] %v1441
        %1506 = vst [vmem:[%s215 + $0x150] sm:$0xff] %v1442
        %1507 = vst [vmem:[%s215 + $0x158] sm:$0xff] %v1443
        %1508 = vst [vmem:[%s215 + $0x160] sm:$0xff] %v1444
        %1509 = vst [vmem:[%s215 + $0x168] sm:$0xff] %v1445
        %1510 = vst [vmem:[%s215 + $0x170] sm:$0xff] %v1446
        %1511 = vst [vmem:[%s215 + $0x178] sm:$0xff] %v1447
        %1512 = vst [vmem:[%s215 + $0x180] sm:$0xff] %v1448
        %1513 = vst [vmem:[%s215 + $0x188] sm:$0xff] %v1449
        %1514 = vst [vmem:[%s215 + $0x190] sm:$0xff] %v1450
        %1515 = vst [vmem:[%s215 + $0x198] sm:$0xff] %v1451
        %1516 = vst [vmem:[%s215 + $0x1a0] sm:$0xff] %v1452
        %1517 = vst [vmem:[%s215 + $0x1a8] sm:$0xff] %v1453
        %1518 = vst [vmem:[%s215 + $0x1b0] sm:$0xff] %v1454
        %1519 = vst [vmem:[%s215 + $0x1b8] sm:$0xff] %v1455
        %1520 = vst [vmem:[%s215 + $0x1c0] sm:$0xff] %v1456
        %1521 = vst [vmem:[%s215 + $0x1c8] sm:$0xff] %v1457
        %1522 = vst [vmem:[%s215 + $0x1d0] sm:$0xff] %v1458
        %1523 = vst [vmem:[%s215 + $0x1d8] sm:$0xff] %v1459
        %1524 = vst [vmem:[%s215 + $0x1e0] sm:$0xff] %v1460
        %1525 = vst [vmem:[%s215 + $0x1e8] sm:$0xff] %v1461
        %1526 = vst [vmem:[%s215 + $0x1f0] sm:$0xff] %v1462
        %1527 = vst [vmem:[%s215 + $0x1f8] sm:$0xff] %v1463
      $region48: #{discriminator_forward.6} parent=35 // pred_fallthru
        _
      %s1528 = smul.u32 %s19, %s20
      %s1529 = smul.u32 64, %s1528
      %p1530 = scmp.lt.s32.totalorder %s1529, 63
      %s1531 = scalar_select %p1530, %s1529, 63
      %s1532 = smul.addr %s1531, 8
      %s1533 = scalar_lea.vmem %s4, %s1532
      // Predicated region
      $region49: #{discriminator_forward.6} parent=35 // pred_check
        %p1534 = pneg %p136
      $region50: #{discriminator_forward.6} parent=35 // pred_check_branch
        %1536 = sbr.rel (%p1534) target = $region52
      $region51: #{discriminator_forward.6} parent=35 // pred_region
        %s1537 = smul.u32 %s19, %s20
        %s1538 = smul.u32 64, %s1537
      $region52: #{discriminator_forward.6} parent=35 // pred_fallthru
        _
    $region36: #{discriminator_forward.6} parent=5 // pred_fallthru
      _
    %p1539 = scmp.le.s32.totalorder 2, %s10
    // Predicated region
    $region53: #{discriminator_forward.6} parent=5 // pred_check
      %p1540 = pneg %p1539
    $region54: #{discriminator_forward.6} parent=5 // pred_check_branch
      %1542 = sbr.rel (%p1540) target = $region56
    $region55: #{discriminator_forward.6} parent=5 // pred_region
      %s1543 = ssub.s32 %s10, 2
      // Predicated region
      $region57: #{discriminator_forward.6} parent=55 // pred_check
        %p1544 = pneg %p142
      $region58: #{discriminator_forward.6} parent=55 // pred_check_branch
        %1546 = sbr.rel (%p1544) target = $region60
      $region59: #{discriminator_forward.6} parent=55 // pred_region
        %s1547 = smul.u32 %s21, %s22
        %s1548 = smul.u32 64, %s1547
        %p1549 = scmp.lt.s32.totalorder %s1548, 63
        %s1550 = scalar_select %p1549, %s1548, 63
        %s1551 = smul.addr %s1550, 8
        %s1552 = scalar_lea.vmem %s4, %s1551
      $region60: #{discriminator_forward.6} parent=55 // pred_fallthru
        _
    $region56: #{discriminator_forward.6} parent=5 // pred_fallthru
      _
  $region6: #{discriminator_forward.6} parent=0 // loop_footer
    %s14 = sadd.s32 1, %s10
  $region7: #{discriminator_forward.6} parent=0 // loop_footer_branch
    %9 = sbr.rel target = $region3
  $region8: #{discriminator_forward.6} parent=0 // loop_exit
    _

// kernel: discriminator_forward.7
$region0: #{discriminator_forward.7}
  #allocation0 [shape = 'u32[]', space=smem, size = 0x4, offset = 0x4, fixed_abs, tag = 'smem constant byte address 0x4 - core index']
  #allocation1 [shape = 'u32[144,128]{1,0:T(1,128)}', space=vmem, size = 0x12000, scoped, tag = 'internal scratch']
  #allocation2 [shape = 'f32[1,128]{1,0:T(1,128)}', space=vmem, size = 0x200, scoped, tag = 'scratch operand']
  #allocation3 [shape = 'f32[1,128]{1,0:T(1,128)}', space=vmem, size = 0x200, scoped, tag = 'scratch operand']
  %s0 = inlined_call_operand.vmem [shape: bf16[128,256], index: 0, kind: input, shape index: {}]
  %s1 = inlined_call_operand.vmem [shape: bf16[256,128], index: 1, kind: input, shape index: {}]
  %s2 = inlined_call_operand.vmem [shape: f32[1,128], index: 2, kind: input, shape index: {}]
  %s3 = inlined_call_operand.vmem [shape: f32[1,128], index: 3, kind: input, shape index: {}]
  %s4 = inlined_call_operand.vmem [shape: f32[128,128], index: 4, kind: output, shape index: {}]
  %s5 = sld [smem:[#allocation0]]
  $region61: #{discriminator_forward.7} parent=0
    _
  %s7 = ssub.s32 1, %s5
  %s8 = scalar_select 0, %s7, %s5
  loop: start=0, step=1, limit=4
  $region2: #{discriminator_forward.7} parent=0 // loop_pre_header
    _
  $region3: #{discriminator_forward.7} parent=0 // loop_header
    %s10 = sphi 0, %s14
    %p11 = scmp.ge.s32.totalorder %s10, 4
    %s17 = sphi 0, %s29
    %s18 = sphi 0, %s25
    %s19 = sphi 0, %s17
    %s20 = sphi 0, %s18
    %s21 = sphi 0, %s19
    %s22 = sphi 0, %s20
    %s32 = sphi 0, %s34
    %s35 = sphi 0, %s32
    %s36 = sphi 0, %s35
    %s52 = sphi 0, %s36
    %s56 = sphi 0, %s56
    %s58 = sphi 0, %s56
    %s59 = sphi 0, %s58
    %s73 = sphi 0, %s59
    %s77 = sphi 0, %s77
    %s79 = sphi 0, %s77
    %s80 = sphi 0, %s79
    %s94 = sphi 0, %s80
    %s98 = sphi 0, %s98
    %s100 = sphi 0, %s98
    %s101 = sphi 0, %s100
    %s115 = sphi 0, %s101
    %s123 = sphi 0, %s125
    %s126 = sphi 0, %s123
    %s127 = sphi 0, %s126
    %s143 = sphi 0, %s127
  $region4: #{discriminator_forward.7} parent=0 // loop_header_branch
    %13 = sbr.rel (%p11) target = $region8
  $region5: #{discriminator_forward.7} parent=0 // loop_body
    %s15 = ssub.s32 %s10, 1
    %s16 = ssub.s32 %s10, 2
    %s23 = sadd.s32 1, %s18
    %p24 = scmp.ge.s32.totalorder %s23, 1
    %s25 = scalar_select %p24, 0, %s23
    %s26 = sadd.s32 1, %s17
    %s27 = scalar_select %p24, %s26, %s17
    %p28 = scmp.ge.s32.totalorder %s27, 2
    %s29 = scalar_select %p28, 0, %s27
    %s30 = ssub.s32 %s18, %s25
    %p31 = scmp.eq.s32.totalorder %s30, 0
    %s33 = sadd.s32 %s32, 1
    %s34 = scalar_select %p31, %s32, %s33
    %p37 = pneg %p31
    %p38 = scmp.eq.s32.totalorder %s10, 1
    %p39 = por %p37, %p38
    %p40 = scmp.ne.s32.totalorder %s32, %s35
    %p41 = scmp.eq.s32.totalorder %s10, 0
    %p42 = por %p40, %p41
    %p43 = scmp.ne.s32.totalorder %s32, %s35
    %p44 = scmp.eq.s32.totalorder %s15, 1
    %p45 = por %p43, %p44
    %p46 = scmp.ne.s32.totalorder %s35, %s36
    %p47 = scmp.eq.s32.totalorder %s15, 0
    %p48 = por %p46, %p47
    %p49 = scmp.ne.s32.totalorder %s35, %s36
    %p50 = scmp.eq.s32.totalorder %s16, 1
    %p51 = por %p49, %p50
    %p53 = scmp.ne.s32.totalorder %s36, %s52
    %p54 = scmp.eq.s32.totalorder %s16, 0
    %p55 = por %p53, %p54
    %s57 = sadd.s32 %s56, 1
    %p60 = scmp.eq.s32.totalorder %s10, 1
    %p61 = scmp.ne.s32.totalorder %s56, %s58
    %p62 = scmp.eq.s32.totalorder %s10, 0
    %p63 = por %p61, %p62
    %p64 = scmp.ne.s32.totalorder %s56, %s58
    %p65 = scmp.eq.s32.totalorder %s15, 1
    %p66 = por %p64, %p65
    %p67 = scmp.ne.s32.totalorder %s58, %s59
    %p68 = scmp.eq.s32.totalorder %s15, 0
    %p69 = por %p67, %p68
    %p70 = scmp.ne.s32.totalorder %s58, %s59
    %p71 = scmp.eq.s32.totalorder %s16, 1
    %p72 = por %p70, %p71
    %p74 = scmp.ne.s32.totalorder %s59, %s73
    %p75 = scmp.eq.s32.totalorder %s16, 0
    %p76 = por %p74, %p75
    %s78 = sadd.s32 %s77, 1
    %p81 = scmp.eq.s32.totalorder %s10, 1
    %p82 = scmp.ne.s32.totalorder %s77, %s79
    %p83 = scmp.eq.s32.totalorder %s10, 0
    %p84 = por %p82, %p83
    %p85 = scmp.ne.s32.totalorder %s77, %s79
    %p86 = scmp.eq.s32.totalorder %s15, 1
    %p87 = por %p85, %p86
    %p88 = scmp.ne.s32.totalorder %s79, %s80
    %p89 = scmp.eq.s32.totalorder %s15, 0
    %p90 = por %p88, %p89
    %p91 = scmp.ne.s32.totalorder %s79, %s80
    %p92 = scmp.eq.s32.totalorder %s16, 1
    %p93 = por %p91, %p92
    %p95 = scmp.ne.s32.totalorder %s80, %s94
    %p96 = scmp.eq.s32.totalorder %s16, 0
    %p97 = por %p95, %p96
    %s99 = sadd.s32 %s98, 1
    %p102 = scmp.eq.s32.totalorder %s10, 1
    %p103 = scmp.ne.s32.totalorder %s98, %s100
    %p104 = scmp.eq.s32.totalorder %s10, 0
    %p105 = por %p103, %p104
    %p106 = scmp.ne.s32.totalorder %s98, %s100
    %p107 = scmp.eq.s32.totalorder %s15, 1
    %p108 = por %p106, %p107
    %p109 = scmp.ne.s32.totalorder %s100, %s101
    %p110 = scmp.eq.s32.totalorder %s15, 0
    %p111 = por %p109, %p110
    %p112 = scmp.ne.s32.totalorder %s100, %s101
    %p113 = scmp.eq.s32.totalorder %s16, 1
    %p114 = por %p112, %p113
    %p116 = scmp.ne.s32.totalorder %s101, %s115
    %p117 = scmp.eq.s32.totalorder %s16, 0
    %p118 = por %p116, %p117
    %s119 = smul.u32 %s17, %s18
    %s120 = smul.u32 %s29, %s25
    %s121 = ssub.s32 %s119, %s120
    %p122 = scmp.eq.s32.totalorder %s121, 0
    %s124 = sadd.s32 %s123, 1
    %s125 = scalar_select %p122, %s123, %s124
    %p128 = pneg %p122
    %p129 = scmp.eq.s32.totalorder %s10, 1
    %p130 = por %p128, %p129
    %p131 = scmp.ne.s32.totalorder %s123, %s126
    %p132 = scmp.eq.s32.totalorder %s10, 0
    %p133 = por %p131, %p132
    %p134 = scmp.ne.s32.totalorder %s123, %s126
    %p135 = scmp.eq.s32.totalorder %s15, 1
    %p136 = por %p134, %p135
    %p137 = scmp.ne.s32.totalorder %s126, %s127
    %p138 = scmp.eq.s32.totalorder %s15, 0
    %p139 = por %p137, %p138
    %p140 = scmp.ne.s32.totalorder %s126, %s127
    %p141 = scmp.eq.s32.totalorder %s16, 1
    %p142 = por %p140, %p141
    %p144 = scmp.ne.s32.totalorder %s127, %s143
    %p145 = scmp.eq.s32.totalorder %s16, 0
    %p146 = por %p144, %p145
    %p147 = scmp.le.s32.totalorder 1, %s10
    %p148 = scmp.lt.s32.totalorder %s10, 3
    %p149 = pnand %p147, %p148
    %p150 = pneg %p149
    // Predicated region
    $region9: #{discriminator_forward.7} parent=5 // pred_check
      _
    $region10: #{discriminator_forward.7} parent=5 // pred_check_branch
      %152 = sbr.rel (%p149) target = $region12
    $region11: #{discriminator_forward.7} parent=5 // pred_region
      %s153 = ssub.s32 %s10, 1
      // Predicated region
      $region13: #{discriminator_forward.7} parent=11 // pred_check
        %p154 = pneg %p48
      $region14: #{discriminator_forward.7} parent=11 // pred_check_branch
        %156 = sbr.rel (%p154) target = $region16
      $region15: #{discriminator_forward.7} parent=11 // pred_region
        %s157 = smul.u32 16, %s20
        %p158 = scmp.lt.s32.totalorder %s157, 15
        %s159 = scalar_select %p158, %s157, 15
        %s160 = smul.addr %s159, 2
        %s161 = smul.addr %s160, 4
        %s162 = scalar_lea.vmem %s0, %s161
        %s163 = smul.u32 16, %s20
      $region16: #{discriminator_forward.7} parent=11 // pred_fallthru
        _
      // Predicated region
      $region17: #{discriminator_forward.7} parent=11 // pred_check
        %p164 = pneg %p69
      $region18: #{discriminator_forward.7} parent=11 // pred_check_branch
        %166 = sbr.rel (%p164) target = $region20
      $region19: #{discriminator_forward.7} parent=11 // pred_region
        _
      $region20: #{discriminator_forward.7} parent=11 // pred_fallthru
        _
      // Predicated region
      $region21: #{discriminator_forward.7} parent=11 // pred_check
        %p167 = pneg %p90
      $region22: #{discriminator_forward.7} parent=11 // pred_check_branch
        %169 = sbr.rel (%p167) target = $region24
      $region23: #{discriminator_forward.7} parent=11 // pred_region
        _
      $region24: #{discriminator_forward.7} parent=11 // pred_fallthru
        _
      // Predicated region
      $region25: #{discriminator_forward.7} parent=11 // pred_check
        %p170 = pneg %p111
      $region26: #{discriminator_forward.7} parent=11 // pred_check_branch
        %172 = sbr.rel (%p170) target = $region28
      $region27: #{discriminator_forward.7} parent=11 // pred_region
        _
      $region28: #{discriminator_forward.7} parent=11 // pred_fallthru
        _
    $region12: #{discriminator_forward.7} parent=5 // pred_fallthru
      _
    %p173 = scmp.lt.s32.totalorder %s10, 2
    // Predicated region
    $region29: #{discriminator_forward.7} parent=5 // pred_check
      %p174 = pneg %p173
    $region30: #{discriminator_forward.7} parent=5 // pred_check_branch
      %176 = sbr.rel (%p174) target = $region32
    $region31: #{discriminator_forward.7} parent=5 // pred_region
      _
    $region32: #{discriminator_forward.7} parent=5 // pred_fallthru
      _
    %p177 = scmp.le.s32.totalorder 1, %s10
    %p178 = scmp.lt.s32.totalorder %s10, 3
    %p179 = pnand %p177, %p178
    %p180 = pneg %p179
    // Predicated region
    $region33: #{discriminator_forward.7} parent=5 // pred_check
      _
    $region34: #{discriminator_forward.7} parent=5 // pred_check_branch
      %182 = sbr.rel (%p179) target = $region36
    $region35: #{discriminator_forward.7} parent=5 // pred_region
      %s183 = ssub.s32 %s10, 1
      %s184 = smul.u32 16, %s20
      %p185 = scmp.lt.s32.totalorder %s184, 15
      %s186 = scalar_select %p185, %s184, 15
      %s187 = smul.addr %s186, 2
      %s188 = smul.addr %s187, 4
      %s189 = scalar_lea.vmem %s0, %s188
      %p190 = pneg %p48
      %p191 = pneg %p45
      %p192 = pneg %p69
      %p193 = pneg %p66
      %p194 = pneg %p90
      %p195 = pneg %p87
      %p196 = pneg %p111
      %p197 = pneg %p108
      %p198 = pneg %p139
      %p199 = pneg %p136
      %s200 = smul.u32 %s19, %s20
      %s201 = smul.u32 16, %s200
      %p202 = scmp.lt.s32.totalorder %s201, 15
      %s203 = scalar_select %p202, %s201, 15
      %s204 = smul.addr %s203, 8
      %s205 = scalar_lea.vmem %s4, %s204
      %s206 = smul.u32 16, %s20
      %p207 = scmp.lt.s32.totalorder %s206, 15
      %s208 = scalar_select %p207, %s206, 15
      %s209 = smul.addr %s208, 2
      %s210 = smul.addr %s209, 4
      %s211 = scalar_lea.vmem %s0, %s210
      %s212 = smul.u32 16, %s20
      %s213 = smul.u32 %s19, %s20
      %s214 = smul.u32 16, %s213
      %p215 = scmp.lt.s32.totalorder %s214, 15
      %s216 = scalar_select %p215, %s214, 15
      %s217 = smul.addr %s216, 8
      %s218 = scalar_lea.vmem %s4, %s217
      %s219 = smul.u32 %s19, %s20
      %s220 = smul.u32 16, %s219
      %v222 = vld [vmem:[%s211] sm:$0xff]
      %v223 = vld [vmem:[%s211 + $0x8] sm:$0xff]
      %v224 = vld [vmem:[%s211 + $0x10] sm:$0xff]
      %v225 = vld [vmem:[%s211 + $0x18] sm:$0xff]
      %v226 = vld [vmem:[%s211 + $0x20] sm:$0xff]
      %v227 = vld [vmem:[%s211 + $0x28] sm:$0xff]
      %v228 = vld [vmem:[%s211 + $0x30] sm:$0xff]
      %v229 = vld [vmem:[%s211 + $0x38] sm:$0xff]
      %v230 = vld [vmem:[%s211 + $0x40] sm:$0xff]
      %v231 = vld [vmem:[%s211 + $0x48] sm:$0xff]
      %v232 = vld [vmem:[%s211 + $0x50] sm:$0xff]
      %v233 = vld [vmem:[%s211 + $0x58] sm:$0xff]
      %v234 = vld [vmem:[%s211 + $0x60] sm:$0xff]
      %v235 = vld [vmem:[%s211 + $0x68] sm:$0xff]
      %v236 = vld [vmem:[%s211 + $0x70] sm:$0xff]
      %v237 = vld [vmem:[%s211 + $0x78] sm:$0xff]
      %v238 = vld [vmem:[%s1] sm:$0xf]
      %v239 = vld [vmem:[%s1 + $0x4] sm:$0xf]
      %v240 = vld [vmem:[%s1 + $0x8] sm:$0xf]
      %v241 = vld [vmem:[%s1 + $0xc] sm:$0xf]
      %v242 = vld [vmem:[%s1 + $0x10] sm:$0xf]
      %v243 = vld [vmem:[%s1 + $0x14] sm:$0xf]
      %v244 = vld [vmem:[%s1 + $0x18] sm:$0xf]
      %v245 = vld [vmem:[%s1 + $0x1c] sm:$0xf]
      %v246 = vld [vmem:[%s1 + $0x20] sm:$0xf]
      %v247 = vld [vmem:[%s1 + $0x24] sm:$0xf]
      %v248 = vld [vmem:[%s1 + $0x28] sm:$0xf]
      %v249 = vld [vmem:[%s1 + $0x2c] sm:$0xf]
      %v250 = vld [vmem:[%s1 + $0x30] sm:$0xf]
      %v251 = vld [vmem:[%s1 + $0x34] sm:$0xf]
      %v252 = vld [vmem:[%s1 + $0x38] sm:$0xf]
      %v253 = vld [vmem:[%s1 + $0x3c] sm:$0xf]
      %v254 = vld [vmem:[%s1 + $0x40] sm:$0xf]
      %v255 = vld [vmem:[%s1 + $0x44] sm:$0xf]
      %v256 = vld [vmem:[%s1 + $0x48] sm:$0xf]
      %v257 = vld [vmem:[%s1 + $0x4c] sm:$0xf]
      %v258 = vld [vmem:[%s1 + $0x50] sm:$0xf]
      %v259 = vld [vmem:[%s1 + $0x54] sm:$0xf]
      %v260 = vld [vmem:[%s1 + $0x58] sm:$0xf]
      %v261 = vld [vmem:[%s1 + $0x5c] sm:$0xf]
      %v262 = vld [vmem:[%s1 + $0x60] sm:$0xf]
      %v263 = vld [vmem:[%s1 + $0x64] sm:$0xf]
      %v264 = vld [vmem:[%s1 + $0x68] sm:$0xf]
      %v265 = vld [vmem:[%s1 + $0x6c] sm:$0xf]
      %v266 = vld [vmem:[%s1 + $0x70] sm:$0xf]
      %v267 = vld [vmem:[%s1 + $0x74] sm:$0xf]
      %v268 = vld [vmem:[%s1 + $0x78] sm:$0xf]
      %v269 = vld [vmem:[%s1 + $0x7c] sm:$0xf]
      %v286 = vunpack.c.l.b16 %v222
      %v287 = vunpack.c.h.b16 %v222
      %v288 = vunpack.c.l.b16 %v223
      %v289 = vunpack.c.h.b16 %v223
      %v290 = vunpack.c.l.b16 %v224
      %v291 = vunpack.c.h.b16 %v224
      %v292 = vunpack.c.l.b16 %v225
      %v293 = vunpack.c.h.b16 %v225
      %v294 = vunpack.c.l.b16 %v226
      %v295 = vunpack.c.h.b16 %v226
      %v296 = vunpack.c.l.b16 %v227
      %v297 = vunpack.c.h.b16 %v227
      %v298 = vunpack.c.l.b16 %v228
      %v299 = vunpack.c.h.b16 %v228
      %v300 = vunpack.c.l.b16 %v229
      %v301 = vunpack.c.h.b16 %v229
      %v302 = vunpack.c.l.b16 %v230
      %v303 = vunpack.c.h.b16 %v230
      %v304 = vunpack.c.l.b16 %v231
      %v305 = vunpack.c.h.b16 %v231
      %v306 = vunpack.c.l.b16 %v232
      %v307 = vunpack.c.h.b16 %v232
      %v308 = vunpack.c.l.b16 %v233
      %v309 = vunpack.c.h.b16 %v233
      %v310 = vunpack.c.l.b16 %v234
      %v311 = vunpack.c.h.b16 %v234
      %v312 = vunpack.c.l.b16 %v235
      %v313 = vunpack.c.h.b16 %v235
      %v314 = vunpack.c.l.b16 %v236
      %v315 = vunpack.c.h.b16 %v236
      %v316 = vunpack.c.l.b16 %v237
      %v317 = vunpack.c.h.b16 %v237
      %v318 = vpack.c.b16 %v288, %v286
      %v319 = vpack.c.b16 %v289, %v287
      %v320 = vpack.c.b16 %v292, %v290
      %v321 = vpack.c.b16 %v293, %v291
      %v322 = vpack.c.b16 %v296, %v294
      %v323 = vpack.c.b16 %v297, %v295
      %v324 = vpack.c.b16 %v300, %v298
      %v325 = vpack.c.b16 %v301, %v299
      %v326 = vpack.c.b16 %v304, %v302
      %v327 = vpack.c.b16 %v305, %v303
      %v328 = vpack.c.b16 %v308, %v306
      %v329 = vpack.c.b16 %v309, %v307
      %v330 = vpack.c.b16 %v312, %v310
      %v331 = vpack.c.b16 %v313, %v311
      %v332 = vpack.c.b16 %v316, %v314
      %v333 = vpack.c.b16 %v317, %v315
      %v382 = vunpack.c.l.b16 %v238
      %v383 = vunpack.c.l.b16 %v239
      %v384 = vunpack.c.l.b16 %v240
      %v385 = vunpack.c.l.b16 %v241
      %v386 = vunpack.c.l.b16 %v242
      %v387 = vunpack.c.l.b16 %v243
      %v388 = vunpack.c.l.b16 %v244
      %v389 = vunpack.c.l.b16 %v245
      %v390 = vunpack.c.l.b16 %v246
      %v391 = vunpack.c.l.b16 %v247
      %v392 = vunpack.c.l.b16 %v248
      %v393 = vunpack.c.l.b16 %v249
      %v394 = vunpack.c.l.b16 %v250
      %v395 = vunpack.c.l.b16 %v251
      %v396 = vunpack.c.l.b16 %v252
      %v397 = vunpack.c.l.b16 %v253
      %v398 = vunpack.c.l.b16 %v254
      %v399 = vunpack.c.l.b16 %v255
      %v400 = vunpack.c.l.b16 %v256
      %v401 = vunpack.c.l.b16 %v257
      %v402 = vunpack.c.l.b16 %v258
      %v403 = vunpack.c.l.b16 %v259
      %v404 = vunpack.c.l.b16 %v260
      %v405 = vunpack.c.l.b16 %v261
      %v406 = vunpack.c.l.b16 %v262
      %v407 = vunpack.c.l.b16 %v263
      %v408 = vunpack.c.l.b16 %v264
      %v409 = vunpack.c.l.b16 %v265
      %v410 = vunpack.c.l.b16 %v266
      %v411 = vunpack.c.l.b16 %v267
      %v412 = vunpack.c.l.b16 %v268
      %v413 = vunpack.c.l.b16 %v269
      %v414 = vpack.c.b16 %v383, %v382
      %v415 = vpack.c.b16 %v385, %v384
      %v416 = vpack.c.b16 %v387, %v386
      %v417 = vpack.c.b16 %v389, %v388
      %v418 = vpack.c.b16 %v391, %v390
      %v419 = vpack.c.b16 %v393, %v392
      %v420 = vpack.c.b16 %v395, %v394
      %v421 = vpack.c.b16 %v397, %v396
      %v422 = vpack.c.b16 %v399, %v398
      %v423 = vpack.c.b16 %v401, %v400
      %v424 = vpack.c.b16 %v403, %v402
      %v425 = vpack.c.b16 %v405, %v404
      %v426 = vpack.c.b16 %v407, %v406
      %v427 = vpack.c.b16 %v409, %v408
      %v428 = vpack.c.b16 %v411, %v410
      %v429 = vpack.c.b16 %v413, %v412
      %446 = vmatprep.subr.bf16.mxu0 0
      %447 = vmatpush1.bf16.msra.mxu0 %v414
      %448 = vmatprep.subr.bf16.mxu0 0
      %449 = vmatpush1.bf16.msra.mxu0 %v415
      %450 = vmatprep.subr.bf16.mxu0 0
      %451 = vmatpush1.bf16.msra.mxu0 %v416
      %452 = vmatprep.subr.bf16.mxu0 0
      %453 = vmatpush1.bf16.msra.mxu0 %v417
      %454 = vmatprep.subr.bf16.mxu0 0
      %455 = vmatpush1.bf16.msra.mxu0 %v418
      %456 = vmatprep.subr.bf16.mxu0 0
      %457 = vmatpush1.bf16.msra.mxu0 %v419
      %458 = vmatprep.subr.bf16.mxu0 0
      %459 = vmatpush1.bf16.msra.mxu0 %v420
      %460 = vmatprep.subr.bf16.mxu0 0
      %461 = vmatpush1.bf16.msra.mxu0 %v421
      %462 = vmatprep.subr.bf16.mxu0 0
      %463 = vmatpush1.bf16.msra.mxu0 %v422
      %464 = vmatprep.subr.bf16.mxu0 0
      %465 = vmatpush1.bf16.msra.mxu0 %v423
      %466 = vmatprep.subr.bf16.mxu0 0
      %467 = vmatpush1.bf16.msra.mxu0 %v424
      %468 = vmatprep.subr.bf16.mxu0 0
      %469 = vmatpush1.bf16.msra.mxu0 %v425
      %470 = vmatprep.subr.bf16.mxu0 0
      %471 = vmatpush1.bf16.msra.mxu0 %v426
      %472 = vmatprep.subr.bf16.mxu0 0
      %473 = vmatpush1.bf16.msra.mxu0 %v427
      %474 = vmatprep.subr.bf16.mxu0 0
      %475 = vmatpush1.bf16.msra.mxu0 %v428
      %476 = vmatprep.subr.bf16.mxu0 0
      %477 = vmatpush1.bf16.msra.mxu0 %v429
      %478 = vmatprep.mubr.bf16.mxu0 %v319
      %479 = vmatmul.mubr.bf16.gmra.mrb[0].mxu0 %v318
      %v480 = vpop.f32.mrb[0].mxu0
      %v481 = vadd.f32 0.0, %v480
      %v482 = vpop.f32.mrb[0].mxu0
      %v483 = vpop.f32.mrb[0].mxu0
      %v484 = vadd.f32 0.0, %v483
      %v485 = vpop.f32.mrb[0].mxu0
      %486 = vmatprep.mubr.bf16.mxu0 %v321
      %487 = vmatmul.mubr.bf16.gmra.mrb[0].mxu0 %v320
      %v488 = vpop.f32.mrb[0].mxu0
      %v489 = vadd.f32 0.0, %v488
      %v490 = vpop.f32.mrb[0].mxu0
      %v491 = vpop.f32.mrb[0].mxu0
      %v492 = vadd.f32 0.0, %v491
      %v493 = vpop.f32.mrb[0].mxu0
      %494 = vmatprep.mubr.bf16.mxu0 %v323
      %495 = vmatmul.mubr.bf16.gmra.mrb[0].mxu0 %v322
      %v496 = vpop.f32.mrb[0].mxu0
      %v497 = vadd.f32 0.0, %v496
      %v498 = vpop.f32.mrb[0].mxu0
      %v499 = vpop.f32.mrb[0].mxu0
      %v500 = vadd.f32 0.0, %v499
      %v501 = vpop.f32.mrb[0].mxu0
      %502 = vmatprep.mubr.bf16.mxu0 %v325
      %503 = vmatmul.mubr.bf16.gmra.mrb[0].mxu0 %v324
      %v504 = vpop.f32.mrb[0].mxu0
      %v505 = vadd.f32 0.0, %v504
      %v506 = vpop.f32.mrb[0].mxu0
      %v507 = vpop.f32.mrb[0].mxu0
      %v508 = vadd.f32 0.0, %v507
      %v509 = vpop.f32.mrb[0].mxu0
      %510 = vmatprep.mubr.bf16.mxu0 %v327
      %511 = vmatmul.mubr.bf16.gmra.mrb[0].mxu0 %v326
      %v512 = vpop.f32.mrb[0].mxu0
      %v513 = vadd.f32 0.0, %v512
      %v514 = vpop.f32.mrb[0].mxu0
      %v515 = vpop.f32.mrb[0].mxu0
      %v516 = vadd.f32 0.0, %v515
      %v517 = vpop.f32.mrb[0].mxu0
      %518 = vmatprep.mubr.bf16.mxu0 %v329
      %519 = vmatmul.mubr.bf16.gmra.mrb[0].mxu0 %v328
      %v520 = vpop.f32.mrb[0].mxu0
      %v521 = vadd.f32 0.0, %v520
      %v522 = vpop.f32.mrb[0].mxu0
      %v523 = vpop.f32.mrb[0].mxu0
      %v524 = vadd.f32 0.0, %v523
      %v525 = vpop.f32.mrb[0].mxu0
      %526 = vmatprep.mubr.bf16.mxu0 %v331
      %527 = vmatmul.mubr.bf16.gmra.mrb[0].mxu0 %v330
      %v528 = vpop.f32.mrb[0].mxu0
      %v529 = vadd.f32 0.0, %v528
      %v530 = vpop.f32.mrb[0].mxu0
      %v531 = vpop.f32.mrb[0].mxu0
      %v532 = vadd.f32 0.0, %v531
      %v533 = vpop.f32.mrb[0].mxu0
      %534 = vmatprep.mubr.bf16.mxu0 %v333
      %535 = vmatmul.mubr.bf16.gmra.mrb[0].mxu0 %v332
      %v536 = vpop.f32.mrb[0].mxu0
      %v537 = vadd.f32 0.0, %v536
      %v538 = vpop.f32.mrb[0].mxu0
      %v539 = vpop.f32.mrb[0].mxu0
      %v540 = vadd.f32 0.0, %v539
      %v541 = vpop.f32.mrb[0].mxu0
      %542 = vdwg.mxu0
      %p543 = scmp.eq.s32.totalorder %s19, 0
      %p544 = scmp.eq.s32.totalorder %s20, 0
      %p545 = pnand %p543, %p544
      %p546 = pneg %p545
      // Predicated region
      $region37: #{discriminator_forward.7} parent=35 // pred_check
        _
      $region38: #{discriminator_forward.7} parent=35 // pred_check_branch
        %548 = sbr.rel (%p545) target = $region40
      $region39: #{discriminator_forward.7} parent=35 // pred_region
        %549 = vst [vmem:[#allocation2] sm:$0x1] 0.0
        %550 = vst [vmem:[#allocation3] sm:$0x1] 0.0
      $region40: #{discriminator_forward.7} parent=35 // pred_fallthru
        _
      // Predicated region
      $region41: #{discriminator_forward.7} parent=35 // pred_check
        %p551 = pneg %p543
      $region42: #{discriminator_forward.7} parent=35 // pred_check_branch
        %553 = sbr.rel (%p551) target = $region44
      $region43: #{discriminator_forward.7} parent=35 // pred_region
        %v554 = vld [vmem:[#allocation2] sm:$0x1]
        %v555 = vadd.f32 %v481, %v484
        %v556 = vadd.f32 %v555, %v489
        %v557 = vadd.f32 %v556, %v492
        %v558 = vadd.f32 %v557, %v497
        %v559 = vadd.f32 %v558, %v500
        %v560 = vadd.f32 %v559, %v505
        %v561 = vadd.f32 %v560, %v508
        %v562 = vadd.f32 %v561, %v513
        %v563 = vadd.f32 %v562, %v516
        %v564 = vadd.f32 %v563, %v521
        %v565 = vadd.f32 %v564, %v524
        %v566 = vadd.f32 %v565, %v529
        %v567 = vadd.f32 %v566, %v532
        %v568 = vadd.f32 %v567, %v537
        %v569 = vadd.f32 %v568, %v540
        %v570 = vrot.slane %v569, 4
        %v571 = vadd.f32 %v569, %v570
        %v572 = vrot.slane %v571, 2
        %v573 = vadd.f32 %v571, %v572
        %v574 = vrot.slane %v573, 1
        %v575 = vadd.f32 %v573, %v574
        %v576 = vadd.f32 %v554, %v575
        %577 = vst [vmem:[#allocation2] sm:$0x1] %v576
        %v578 = vld [vmem:[#allocation3] sm:$0x1]
        %v579 = vmul.f32 %v481, %v481
        %v580 = vmul.f32 %v484, %v484
        %v581 = vmul.f32 %v489, %v489
        %v582 = vmul.f32 %v492, %v492
        %v583 = vmul.f32 %v497, %v497
        %v584 = vmul.f32 %v500, %v500
        %v585 = vmul.f32 %v505, %v505
        %v586 = vmul.f32 %v508, %v508
        %v587 = vmul.f32 %v513, %v513
        %v588 = vmul.f32 %v516, %v516
        %v589 = vmul.f32 %v521, %v521
        %v590 = vmul.f32 %v524, %v524
        %v591 = vmul.f32 %v529, %v529
        %v592 = vmul.f32 %v532, %v532
        %v593 = vmul.f32 %v537, %v537
        %v594 = vmul.f32 %v540, %v540
        %v595 = vadd.f32 %v579, %v580
        %v596 = vadd.f32 %v595, %v581
        %v597 = vadd.f32 %v596, %v582
        %v598 = vadd.f32 %v597, %v583
        %v599 = vadd.f32 %v598, %v584
        %v600 = vadd.f32 %v599, %v585
        %v601 = vadd.f32 %v600, %v586
        %v602 = vadd.f32 %v601, %v587
        %v603 = vadd.f32 %v602, %v588
        %v604 = vadd.f32 %v603, %v589
        %v605 = vadd.f32 %v604, %v590
        %v606 = vadd.f32 %v605, %v591
        %v607 = vadd.f32 %v606, %v592
        %v608 = vadd.f32 %v607, %v593
        %v609 = vadd.f32 %v608, %v594
        %v610 = vrot.slane %v609, 4
        %v611 = vadd.f32 %v609, %v610
        %v612 = vrot.slane %v611, 2
        %v613 = vadd.f32 %v611, %v612
        %v614 = vrot.slane %v613, 1
        %v615 = vadd.f32 %v613, %v614
        %v616 = vadd.f32 %v578, %v615
        %617 = vst [vmem:[#allocation3] sm:$0x1] %v616
      $region44: #{discriminator_forward.7} parent=35 // pred_fallthru
        _
      %p618 = scmp.eq.s32.totalorder %s19, 1
      // Predicated region
      $region45: #{discriminator_forward.7} parent=35 // pred_check
        %p619 = pneg %p618
      $region46: #{discriminator_forward.7} parent=35 // pred_check_branch
        %621 = sbr.rel (%p619) target = $region48
      $region47: #{discriminator_forward.7} parent=35 // pred_region
        %v622 = vld [vmem:[#allocation2] sm:$0x1]
        %v623 = vmul.f32 %v622, 0.0078125
        %v624 = vld [vmem:[#allocation3] sm:$0x1]
        %v625 = vmul.f32 %v624, 0.0078125
        %v626 = vmul.f32 %v623, %v623
        %v627 = vsub.f32 %v625, %v626
        %v628 = vadd.f32 %v627, 1e-05
        %v629 = vrsqrt.pop %v628
        %v631 = vlaneseq
        %v632 = vshrl.u32 %v631, 7
        %v633 = vsub.s32 0, %v632
        %v634 = vrot.slane %v623, %v633
        %v636 = vsub.f32 %v481, %v634
        %v637 = vsub.f32 %v484, %v634
        %v638 = vsub.f32 %v489, %v634
        %v639 = vsub.f32 %v492, %v634
        %v640 = vsub.f32 %v497, %v634
        %v641 = vsub.f32 %v500, %v634
        %v642 = vsub.f32 %v505, %v634
        %v643 = vsub.f32 %v508, %v634
        %v644 = vsub.f32 %v513, %v634
        %v645 = vsub.f32 %v516, %v634
        %v646 = vsub.f32 %v521, %v634
        %v647 = vsub.f32 %v524, %v634
        %v648 = vsub.f32 %v529, %v634
        %v649 = vsub.f32 %v532, %v634
        %v650 = vsub.f32 %v537, %v634
        %v651 = vsub.f32 %v540, %v634
        %v652 = vld [vmem:[%s2] sm:$0x1]
        %v653 = vmul.f32 %v629, %v652
        %v655 = vlaneseq
        %v656 = vshrl.u32 %v655, 7
        %v657 = vsub.s32 0, %v656
        %v658 = vrot.slane %v653, %v657
        %v660 = vmul.f32 %v636, %v658
        %v661 = vmul.f32 %v637, %v658
        %v662 = vmul.f32 %v638, %v658
        %v663 = vmul.f32 %v639, %v658
        %v664 = vmul.f32 %v640, %v658
        %v665 = vmul.f32 %v641, %v658
        %v666 = vmul.f32 %v642, %v658
        %v667 = vmul.f32 %v643, %v658
        %v668 = vmul.f32 %v644, %v658
        %v669 = vmul.f32 %v645, %v658
        %v670 = vmul.f32 %v646, %v658
        %v671 = vmul.f32 %v647, %v658
        %v672 = vmul.f32 %v648, %v658
        %v673 = vmul.f32 %v649, %v658
        %v674 = vmul.f32 %v650, %v658
        %v675 = vmul.f32 %v651, %v658
        %v676 = vld [vmem:[%s3] sm:$0x1]
        %v678 = vlaneseq
        %v679 = vshrl.u32 %v678, 7
        %v680 = vsub.s32 0, %v679
        %v681 = vrot.slane %v676, %v680
        %v683 = vadd.f32 %v660, %v681
        %v684 = vadd.f32 %v661, %v681
        %v685 = vadd.f32 %v662, %v681
        %v686 = vadd.f32 %v663, %v681
        %v687 = vadd.f32 %v664, %v681
        %v688 = vadd.f32 %v665, %v681
        %v689 = vadd.f32 %v666, %v681
        %v690 = vadd.f32 %v667, %v681
        %v691 = vadd.f32 %v668, %v681
        %v692 = vadd.f32 %v669, %v681
        %v693 = vadd.f32 %v670, %v681
        %v694 = vadd.f32 %v671, %v681
        %v695 = vadd.f32 %v672, %v681
        %v696 = vadd.f32 %v673, %v681
        %v697 = vadd.f32 %v674, %v681
        %v698 = vadd.f32 %v675, %v681
        %vm699 = vcmp.ge.f32.partialorder %v683, 0.0
        %vm700 = vcmp.ge.f32.partialorder %v684, 0.0
        %vm701 = vcmp.ge.f32.partialorder %v685, 0.0
        %vm702 = vcmp.ge.f32.partialorder %v686, 0.0
        %vm703 = vcmp.ge.f32.partialorder %v687, 0.0
        %vm704 = vcmp.ge.f32.partialorder %v688, 0.0
        %vm705 = vcmp.ge.f32.partialorder %v689, 0.0
        %vm706 = vcmp.ge.f32.partialorder %v690, 0.0
        %vm707 = vcmp.ge.f32.partialorder %v691, 0.0
        %vm708 = vcmp.ge.f32.partialorder %v692, 0.0
        %vm709 = vcmp.ge.f32.partialorder %v693, 0.0
        %vm710 = vcmp.ge.f32.partialorder %v694, 0.0
        %vm711 = vcmp.ge.f32.partialorder %v695, 0.0
        %vm712 = vcmp.ge.f32.partialorder %v696, 0.0
        %vm713 = vcmp.ge.f32.partialorder %v697, 0.0
        %vm714 = vcmp.ge.f32.partialorder %v698, 0.0
        %v715 = vmul.f32 %v683, 0.2
        %v716 = vmul.f32 %v684, 0.2
        %v717 = vmul.f32 %v685, 0.2
        %v718 = vmul.f32 %v686, 0.2
        %v719 = vmul.f32 %v687, 0.2
        %v720 = vmul.f32 %v688, 0.2
        %v721 = vmul.f32 %v689, 0.2
        %v722 = vmul.f32 %v690, 0.2
        %v723 = vmul.f32 %v691, 0.2
        %v724 = vmul.f32 %v692, 0.2
        %v725 = vmul.f32 %v693, 0.2
        %v726 = vmul.f32 %v694, 0.2
        %v727 = vmul.f32 %v695, 0.2
        %v728 = vmul.f32 %v696, 0.2
        %v729 = vmul.f32 %v697, 0.2
        %v730 = vmul.f32 %v698, 0.2
        %v731 = vsel %vm699, %v683, %v715
        %v732 = vsel %vm700, %v684, %v716
        %v733 = vsel %vm701, %v685, %v717
        %v734 = vsel %vm702, %v686, %v718
        %v735 = vsel %vm703, %v687, %v719
        %v736 = vsel %vm704, %v688, %v720
        %v737 = vsel %vm705, %v689, %v721
        %v738 = vsel %vm706, %v690, %v722
        %v739 = vsel %vm707, %v691, %v723
        %v740 = vsel %vm708, %v692, %v724
        %v741 = vsel %vm709, %v693, %v725
        %v742 = vsel %vm710, %v694, %v726
        %v743 = vsel %vm711, %v695, %v727
        %v744 = vsel %vm712, %v696, %v728
        %v745 = vsel %vm713, %v697, %v729
        %v746 = vsel %vm714, %v698, %v730
        %747 = vst [vmem:[%s218] sm:$0xff] %v731
        %748 = vst [vmem:[%s218 + $0x8] sm:$0xff] %v732
        %749 = vst [vmem:[%s218 + $0x10] sm:$0xff] %v733
        %750 = vst [vmem:[%s218 + $0x18] sm:$0xff] %v734
        %751 = vst [vmem:[%s218 + $0x20] sm:$0xff] %v735
        %752 = vst [vmem:[%s218 + $0x28] sm:$0xff] %v736
        %753 = vst [vmem:[%s218 + $0x30] sm:$0xff] %v737
        %754 = vst [vmem:[%s218 + $0x38] sm:$0xff] %v738
        %755 = vst [vmem:[%s218 + $0x40] sm:$0xff] %v739
        %756 = vst [vmem:[%s218 + $0x48] sm:$0xff] %v740
        %757 = vst [vmem:[%s218 + $0x50] sm:$0xff] %v741
        %758 = vst [vmem:[%s218 + $0x58] sm:$0xff] %v742
        %759 = vst [vmem:[%s218 + $0x60] sm:$0xff] %v743
        %760 = vst [vmem:[%s218 + $0x68] sm:$0xff] %v744
        %761 = vst [vmem:[%s218 + $0x70] sm:$0xff] %v745
        %762 = vst [vmem:[%s218 + $0x78] sm:$0xff] %v746
      $region48: #{discriminator_forward.7} parent=35 // pred_fallthru
        _
      %s763 = smul.u32 %s19, %s20
      %s764 = smul.u32 16, %s763
      %p765 = scmp.lt.s32.totalorder %s764, 15
      %s766 = scalar_select %p765, %s764, 15
      %s767 = smul.addr %s766, 8
      %s768 = scalar_lea.vmem %s4, %s767
      // Predicated region
      $region49: #{discriminator_forward.7} parent=35 // pred_check
        %p769 = pneg %p136
      $region50: #{discriminator_forward.7} parent=35 // pred_check_branch
        %771 = sbr.rel (%p769) target = $region52
      $region51: #{discriminator_forward.7} parent=35 // pred_region
        %s772 = smul.u32 %s19, %s20
        %s773 = smul.u32 16, %s772
      $region52: #{discriminator_forward.7} parent=35 // pred_fallthru
        _
    $region36: #{discriminator_forward.7} parent=5 // pred_fallthru
      _
    %p774 = scmp.le.s32.totalorder 2, %s10
    // Predicated region
    $region53: #{discriminator_forward.7} parent=5 // pred_check
      %p775 = pneg %p774
    $region54: #{discriminator_forward.7} parent=5 // pred_check_branch
      %777 = sbr.rel (%p775) target = $region56
    $region55: #{discriminator_forward.7} parent=5 // pred_region
      %s778 = ssub.s32 %s10, 2
      // Predicated region
      $region57: #{discriminator_forward.7} parent=55 // pred_check
        %p779 = pneg %p142
      $region58: #{discriminator_forward.7} parent=55 // pred_check_branch
        %781 = sbr.rel (%p779) target = $region60
      $region59: #{discriminator_forward.7} parent=55 // pred_region
        %s782 = smul.u32 %s21, %s22
        %s783 = smul.u32 16, %s782
        %p784 = scmp.lt.s32.totalorder %s783, 15
        %s785 = scalar_select %p784, %s783, 15
        %s786 = smul.addr %s785, 8
        %s787 = scalar_lea.vmem %s4, %s786
      $region60: #{discriminator_forward.7} parent=55 // pred_fallthru
        _
    $region56: #{discriminator_forward.7} parent=5 // pred_fallthru
      _
  $region6: #{discriminator_forward.7} parent=0 // loop_footer
    %s14 = sadd.s32 1, %s10
  $region7: #{discriminator_forward.7} parent=0 // loop_footer_branch
    %9 = sbr.rel target = $region3
  $region8: #{discriminator_forward.7} parent=0 // loop_exit
    _

// kernel: discriminator_forward.8
$region0: #{discriminator_forward.8}
  #allocation0 [shape = 'u32[]', space=smem, size = 0x4, offset = 0x4, fixed_abs, tag = 'smem constant byte address 0x4 - core index']
  #allocation1 [shape = 'u32[144,128]{1,0:T(1,128)}', space=vmem, size = 0x12000, scoped, tag = 'internal scratch']
  #allocation2 [shape = 'f32[1,128]{1,0:T(1,128)}', space=vmem, size = 0x200, scoped, tag = 'scratch operand']
  #allocation3 [shape = 'f32[1,128]{1,0:T(1,128)}', space=vmem, size = 0x200, scoped, tag = 'scratch operand']
  %s0 = inlined_call_operand.vmem [shape: bf16[32,512], index: 0, kind: input, shape index: {}]
  %s1 = inlined_call_operand.vmem [shape: bf16[512,128], index: 1, kind: input, shape index: {}]
  %s2 = inlined_call_operand.vmem [shape: f32[1,128], index: 2, kind: input, shape index: {}]
  %s3 = inlined_call_operand.vmem [shape: f32[1,128], index: 3, kind: input, shape index: {}]
  %s4 = inlined_call_operand.vmem [shape: f32[32,128], index: 4, kind: output, shape index: {}]
  %s5 = sld [smem:[#allocation0]]
  $region61: #{discriminator_forward.8} parent=0
    _
  %s7 = ssub.s32 1, %s5
  %s8 = scalar_select 0, %s7, %s5
  loop: start=0, step=1, limit=4
  $region2: #{discriminator_forward.8} parent=0 // loop_pre_header
    _
  $region3: #{discriminator_forward.8} parent=0 // loop_header
    %s10 = sphi 0, %s14
    %p11 = scmp.ge.s32.totalorder %s10, 4
    %s17 = sphi 0, %s29
    %s18 = sphi 0, %s25
    %s19 = sphi 0, %s17
    %s20 = sphi 0, %s18
    %s21 = sphi 0, %s19
    %s22 = sphi 0, %s20
    %s32 = sphi 0, %s34
    %s35 = sphi 0, %s32
    %s36 = sphi 0, %s35
    %s52 = sphi 0, %s36
    %s56 = sphi 0, %s56
    %s58 = sphi 0, %s56
    %s59 = sphi 0, %s58
    %s73 = sphi 0, %s59
    %s77 = sphi 0, %s77
    %s79 = sphi 0, %s77
    %s80 = sphi 0, %s79
    %s94 = sphi 0, %s80
    %s98 = sphi 0, %s98
    %s100 = sphi 0, %s98
    %s101 = sphi 0, %s100
    %s115 = sphi 0, %s101
    %s123 = sphi 0, %s125
    %s126 = sphi 0, %s123
    %s127 = sphi 0, %s126
    %s143 = sphi 0, %s127
  $region4: #{discriminator_forward.8} parent=0 // loop_header_branch
    %13 = sbr.rel (%p11) target = $region8
  $region5: #{discriminator_forward.8} parent=0 // loop_body
    %s15 = ssub.s32 %s10, 1
    %s16 = ssub.s32 %s10, 2
    %s23 = sadd.s32 1, %s18
    %p24 = scmp.ge.s32.totalorder %s23, 1
    %s25 = scalar_select %p24, 0, %s23
    %s26 = sadd.s32 1, %s17
    %s27 = scalar_select %p24, %s26, %s17
    %p28 = scmp.ge.s32.totalorder %s27, 2
    %s29 = scalar_select %p28, 0, %s27
    %s30 = ssub.s32 %s18, %s25
    %p31 = scmp.eq.s32.totalorder %s30, 0
    %s33 = sadd.s32 %s32, 1
    %s34 = scalar_select %p31, %s32, %s33
    %p37 = pneg %p31
    %p38 = scmp.eq.s32.totalorder %s10, 1
    %p39 = por %p37, %p38
    %p40 = scmp.ne.s32.totalorder %s32, %s35
    %p41 = scmp.eq.s32.totalorder %s10, 0
    %p42 = por %p40, %p41
    %p43 = scmp.ne.s32.totalorder %s32, %s35
    %p44 = scmp.eq.s32.totalorder %s15, 1
    %p45 = por %p43, %p44
    %p46 = scmp.ne.s32.totalorder %s35, %s36
    %p47 = scmp.eq.s32.totalorder %s15, 0
    %p48 = por %p46, %p47
    %p49 = scmp.ne.s32.totalorder %s35, %s36
    %p50 = scmp.eq.s32.totalorder %s16, 1
    %p51 = por %p49, %p50
    %p53 = scmp.ne.s32.totalorder %s36, %s52
    %p54 = scmp.eq.s32.totalorder %s16, 0
    %p55 = por %p53, %p54
    %s57 = sadd.s32 %s56, 1
    %p60 = scmp.eq.s32.totalorder %s10, 1
    %p61 = scmp.ne.s32.totalorder %s56, %s58
    %p62 = scmp.eq.s32.totalorder %s10, 0
    %p63 = por %p61, %p62
    %p64 = scmp.ne.s32.totalorder %s56, %s58
    %p65 = scmp.eq.s32.totalorder %s15, 1
    %p66 = por %p64, %p65
    %p67 = scmp.ne.s32.totalorder %s58, %s59
    %p68 = scmp.eq.s32.totalorder %s15, 0
    %p69 = por %p67, %p68
    %p70 = scmp.ne.s32.totalorder %s58, %s59
    %p71 = scmp.eq.s32.totalorder %s16, 1
    %p72 = por %p70, %p71
    %p74 = scmp.ne.s32.totalorder %s59, %s73
    %p75 = scmp.eq.s32.totalorder %s16, 0
    %p76 = por %p74, %p75
    %s78 = sadd.s32 %s77, 1
    %p81 = scmp.eq.s32.totalorder %s10, 1
    %p82 = scmp.ne.s32.totalorder %s77, %s79
    %p83 = scmp.eq.s32.totalorder %s10, 0
    %p84 = por %p82, %p83
    %p85 = scmp.ne.s32.totalorder %s77, %s79
    %p86 = scmp.eq.s32.totalorder %s15, 1
    %p87 = por %p85, %p86
    %p88 = scmp.ne.s32.totalorder %s79, %s80
    %p89 = scmp.eq.s32.totalorder %s15, 0
    %p90 = por %p88, %p89
    %p91 = scmp.ne.s32.totalorder %s79, %s80
    %p92 = scmp.eq.s32.totalorder %s16, 1
    %p93 = por %p91, %p92
    %p95 = scmp.ne.s32.totalorder %s80, %s94
    %p96 = scmp.eq.s32.totalorder %s16, 0
    %p97 = por %p95, %p96
    %s99 = sadd.s32 %s98, 1
    %p102 = scmp.eq.s32.totalorder %s10, 1
    %p103 = scmp.ne.s32.totalorder %s98, %s100
    %p104 = scmp.eq.s32.totalorder %s10, 0
    %p105 = por %p103, %p104
    %p106 = scmp.ne.s32.totalorder %s98, %s100
    %p107 = scmp.eq.s32.totalorder %s15, 1
    %p108 = por %p106, %p107
    %p109 = scmp.ne.s32.totalorder %s100, %s101
    %p110 = scmp.eq.s32.totalorder %s15, 0
    %p111 = por %p109, %p110
    %p112 = scmp.ne.s32.totalorder %s100, %s101
    %p113 = scmp.eq.s32.totalorder %s16, 1
    %p114 = por %p112, %p113
    %p116 = scmp.ne.s32.totalorder %s101, %s115
    %p117 = scmp.eq.s32.totalorder %s16, 0
    %p118 = por %p116, %p117
    %s119 = smul.u32 %s17, %s18
    %s120 = smul.u32 %s29, %s25
    %s121 = ssub.s32 %s119, %s120
    %p122 = scmp.eq.s32.totalorder %s121, 0
    %s124 = sadd.s32 %s123, 1
    %s125 = scalar_select %p122, %s123, %s124
    %p128 = pneg %p122
    %p129 = scmp.eq.s32.totalorder %s10, 1
    %p130 = por %p128, %p129
    %p131 = scmp.ne.s32.totalorder %s123, %s126
    %p132 = scmp.eq.s32.totalorder %s10, 0
    %p133 = por %p131, %p132
    %p134 = scmp.ne.s32.totalorder %s123, %s126
    %p135 = scmp.eq.s32.totalorder %s15, 1
    %p136 = por %p134, %p135
    %p137 = scmp.ne.s32.totalorder %s126, %s127
    %p138 = scmp.eq.s32.totalorder %s15, 0
    %p139 = por %p137, %p138
    %p140 = scmp.ne.s32.totalorder %s126, %s127
    %p141 = scmp.eq.s32.totalorder %s16, 1
    %p142 = por %p140, %p141
    %p144 = scmp.ne.s32.totalorder %s127, %s143
    %p145 = scmp.eq.s32.totalorder %s16, 0
    %p146 = por %p144, %p145
    %p147 = scmp.le.s32.totalorder 1, %s10
    %p148 = scmp.lt.s32.totalorder %s10, 3
    %p149 = pnand %p147, %p148
    %p150 = pneg %p149
    // Predicated region
    $region9: #{discriminator_forward.8} parent=5 // pred_check
      _
    $region10: #{discriminator_forward.8} parent=5 // pred_check_branch
      %152 = sbr.rel (%p149) target = $region12
    $region11: #{discriminator_forward.8} parent=5 // pred_region
      %s153 = ssub.s32 %s10, 1
      // Predicated region
      $region13: #{discriminator_forward.8} parent=11 // pred_check
        %p154 = pneg %p48
      $region14: #{discriminator_forward.8} parent=11 // pred_check_branch
        %156 = sbr.rel (%p154) target = $region16
      $region15: #{discriminator_forward.8} parent=11 // pred_region
        %s157 = smul.u32 4, %s20
        %p158 = scmp.lt.s32.totalorder %s157, 3
        %s159 = scalar_select %p158, %s157, 3
        %s160 = smul.addr %s159, 4
        %s161 = smul.addr %s160, 4
        %s162 = scalar_lea.vmem %s0, %s161
        %s163 = smul.u32 4, %s20
      $region16: #{discriminator_forward.8} parent=11 // pred_fallthru
        _
      // Predicated region
      $region17: #{discriminator_forward.8} parent=11 // pred_check
        %p164 = pneg %p69
      $region18: #{discriminator_forward.8} parent=11 // pred_check_branch
        %166 = sbr.rel (%p164) target = $region20
      $region19: #{discriminator_forward.8} parent=11 // pred_region
        _
      $region20: #{discriminator_forward.8} parent=11 // pred_fallthru
        _
      // Predicated region
      $region21: #{discriminator_forward.8} parent=11 // pred_check
        %p167 = pneg %p90
      $region22: #{discriminator_forward.8} parent=11 // pred_check_branch
        %169 = sbr.rel (%p167) target = $region24
      $region23: #{discriminator_forward.8} parent=11 // pred_region
        _
      $region24: #{discriminator_forward.8} parent=11 // pred_fallthru
        _
      // Predicated region
      $region25: #{discriminator_forward.8} parent=11 // pred_check
        %p170 = pneg %p111
      $region26: #{discriminator_forward.8} parent=11 // pred_check_branch
        %172 = sbr.rel (%p170) target = $region28
      $region27: #{discriminator_forward.8} parent=11 // pred_region
        _
      $region28: #{discriminator_forward.8} parent=11 // pred_fallthru
        _
    $region12: #{discriminator_forward.8} parent=5 // pred_fallthru
      _
    %p173 = scmp.lt.s32.totalorder %s10, 2
    // Predicated region
    $region29: #{discriminator_forward.8} parent=5 // pred_check
      %p174 = pneg %p173
    $region30: #{discriminator_forward.8} parent=5 // pred_check_branch
      %176 = sbr.rel (%p174) target = $region32
    $region31: #{discriminator_forward.8} parent=5 // pred_region
      _
    $region32: #{discriminator_forward.8} parent=5 // pred_fallthru
      _
    %p177 = scmp.le.s32.totalorder 1, %s10
    %p178 = scmp.lt.s32.totalorder %s10, 3
    %p179 = pnand %p177, %p178
    %p180 = pneg %p179
    // Predicated region
    $region33: #{discriminator_forward.8} parent=5 // pred_check
      _
    $region34: #{discriminator_forward.8} parent=5 // pred_check_branch
      %182 = sbr.rel (%p179) target = $region36
    $region35: #{discriminator_forward.8} parent=5 // pred_region
      %s183 = ssub.s32 %s10, 1
      %s184 = smul.u32 4, %s20
      %p185 = scmp.lt.s32.totalorder %s184, 3
      %s186 = scalar_select %p185, %s184, 3
      %s187 = smul.addr %s186, 4
      %s188 = smul.addr %s187, 4
      %s189 = scalar_lea.vmem %s0, %s188
      %p190 = pneg %p48
      %p191 = pneg %p45
      %p192 = pneg %p69
      %p193 = pneg %p66
      %p194 = pneg %p90
      %p195 = pneg %p87
      %p196 = pneg %p111
      %p197 = pneg %p108
      %p198 = pneg %p139
      %p199 = pneg %p136
      %s200 = smul.u32 %s19, %s20
      %s201 = smul.u32 4, %s200
      %p202 = scmp.lt.s32.totalorder %s201, 3
      %s203 = scalar_select %p202, %s201, 3
      %s204 = smul.addr %s203, 8
      %s205 = scalar_lea.vmem %s4, %s204
      %s206 = smul.u32 4, %s20
      %p207 = scmp.lt.s32.totalorder %s206, 3
      %s208 = scalar_select %p207, %s206, 3
      %s209 = smul.addr %s208, 4
      %s210 = smul.addr %s209, 4
      %s211 = scalar_lea.vmem %s0, %s210
      %s212 = smul.u32 4, %s20
      %s213 = smul.u32 %s19, %s20
      %s214 = smul.u32 4, %s213
      %p215 = scmp.lt.s32.totalorder %s214, 3
      %s216 = scalar_select %p215, %s214, 3
      %s217 = smul.addr %s216, 8
      %s218 = scalar_lea.vmem %s4, %s217
      %s219 = smul.u32 %s19, %s20
      %s220 = smul.u32 4, %s219
      %v222 = vld [vmem:[%s211] sm:$0xff]
      %v223 = vld [vmem:[%s211 + $0x8] sm:$0xff]
      %v224 = vld [vmem:[%s211 + $0x10] sm:$0xff]
      %v225 = vld [vmem:[%s211 + $0x18] sm:$0xff]
      %v226 = vld [vmem:[%s211 + $0x20] sm:$0xff]
      %v227 = vld [vmem:[%s211 + $0x28] sm:$0xff]
      %v228 = vld [vmem:[%s211 + $0x30] sm:$0xff]
      %v229 = vld [vmem:[%s211 + $0x38] sm:$0xff]
      %v230 = vld [vmem:[%s1] sm:$0xf]
      %v231 = vld [vmem:[%s1 + $0x4] sm:$0xf]
      %v232 = vld [vmem:[%s1 + $0x8] sm:$0xf]
      %v233 = vld [vmem:[%s1 + $0xc] sm:$0xf]
      %v234 = vld [vmem:[%s1 + $0x10] sm:$0xf]
      %v235 = vld [vmem:[%s1 + $0x14] sm:$0xf]
      %v236 = vld [vmem:[%s1 + $0x18] sm:$0xf]
      %v237 = vld [vmem:[%s1 + $0x1c] sm:$0xf]
      %v238 = vld [vmem:[%s1 + $0x20] sm:$0xf]
      %v239 = vld [vmem:[%s1 + $0x24] sm:$0xf]
      %v240 = vld [vmem:[%s1 + $0x28] sm:$0xf]
      %v241 = vld [vmem:[%s1 + $0x2c] sm:$0xf]
      %v242 = vld [vmem:[%s1 + $0x30] sm:$0xf]
      %v243 = vld [vmem:[%s1 + $0x34] sm:$0xf]
      %v244 = vld [vmem:[%s1 + $0x38] sm:$0xf]
      %v245 = vld [vmem:[%s1 + $0x3c] sm:$0xf]
      %v246 = vld [vmem:[%s1 + $0x40] sm:$0xf]
      %v247 = vld [vmem:[%s1 + $0x44] sm:$0xf]
      %v248 = vld [vmem:[%s1 + $0x48] sm:$0xf]
      %v249 = vld [vmem:[%s1 + $0x4c] sm:$0xf]
      %v250 = vld [vmem:[%s1 + $0x50] sm:$0xf]
      %v251 = vld [vmem:[%s1 + $0x54] sm:$0xf]
      %v252 = vld [vmem:[%s1 + $0x58] sm:$0xf]
      %v253 = vld [vmem:[%s1 + $0x5c] sm:$0xf]
      %v254 = vld [vmem:[%s1 + $0x60] sm:$0xf]
      %v255 = vld [vmem:[%s1 + $0x64] sm:$0xf]
      %v256 = vld [vmem:[%s1 + $0x68] sm:$0xf]
      %v257 = vld [vmem:[%s1 + $0x6c] sm:$0xf]
      %v258 = vld [vmem:[%s1 + $0x70] sm:$0xf]
      %v259 = vld [vmem:[%s1 + $0x74] sm:$0xf]
      %v260 = vld [vmem:[%s1 + $0x78] sm:$0xf]
      %v261 = vld [vmem:[%s1 + $0x7c] sm:$0xf]
      %v262 = vld [vmem:[%s1 + $0x80] sm:$0xf]
      %v263 = vld [vmem:[%s1 + $0x84] sm:$0xf]
      %v264 = vld [vmem:[%s1 + $0x88] sm:$0xf]
      %v265 = vld [vmem:[%s1 + $0x8c] sm:$0xf]
      %v266 = vld [vmem:[%s1 + $0x90] sm:$0xf]
      %v267 = vld [vmem:[%s1 + $0x94] sm:$0xf]
      %v268 = vld [vmem:[%s1 + $0x98] sm:$0xf]
      %v269 = vld [vmem:[%s1 + $0x9c] sm:$0xf]
      %v270 = vld [vmem:[%s1 + $0xa0] sm:$0xf]
      %v271 = vld [vmem:[%s1 + $0xa4] sm:$0xf]
      %v272 = vld [vmem:[%s1 + $0xa8] sm:$0xf]
      %v273 = vld [vmem:[%s1 + $0xac] sm:$0xf]
      %v274 = vld [vmem:[%s1 + $0xb0] sm:$0xf]
      %v275 = vld [vmem:[%s1 + $0xb4] sm:$0xf]
      %v276 = vld [vmem:[%s1 + $0xb8] sm:$0xf]
      %v277 = vld [vmem:[%s1 + $0xbc] sm:$0xf]
      %v278 = vld [vmem:[%s1 + $0xc0] sm:$0xf]
      %v279 = vld [vmem:[%s1 + $0xc4] sm:$0xf]
      %v280 = vld [vmem:[%s1 + $0xc8] sm:$0xf]
      %v281 = vld [vmem:[%s1 + $0xcc] sm:$0xf]
      %v282 = vld [vmem:[%s1 + $0xd0] sm:$0xf]
      %v283 = vld [vmem:[%s1 + $0xd4] sm:$0xf]
      %v284 = vld [vmem:[%s1 + $0xd8] sm:$0xf]
      %v285 = vld [vmem:[%s1 + $0xdc] sm:$0xf]
      %v286 = vld [vmem:[%s1 + $0xe0] sm:$0xf]
      %v287 = vld [vmem:[%s1 + $0xe4] sm:$0xf]
      %v288 = vld [vmem:[%s1 + $0xe8] sm:$0xf]
      %v289 = vld [vmem:[%s1 + $0xec] sm:$0xf]
      %v290 = vld [vmem:[%s1 + $0xf0] sm:$0xf]
      %v291 = vld [vmem:[%s1 + $0xf4] sm:$0xf]
      %v292 = vld [vmem:[%s1 + $0xf8] sm:$0xf]
      %v293 = vld [vmem:[%s1 + $0xfc] sm:$0xf]
      %v302 = vunpack.c.l.b16 %v222
      %v303 = vunpack.c.h.b16 %v222
      %v304 = vunpack.c.l.b16 %v223
      %v305 = vunpack.c.h.b16 %v223
      %v306 = vunpack.c.l.b16 %v224
      %v307 = vunpack.c.h.b16 %v224
      %v308 = vunpack.c.l.b16 %v225
      %v309 = vunpack.c.h.b16 %v225
      %v310 = vunpack.c.l.b16 %v226
      %v311 = vunpack.c.h.b16 %v226
      %v312 = vunpack.c.l.b16 %v227
      %v313 = vunpack.c.h.b16 %v227
      %v314 = vunpack.c.l.b16 %v228
      %v315 = vunpack.c.h.b16 %v228
      %v316 = vunpack.c.l.b16 %v229
      %v317 = vunpack.c.h.b16 %v229
      %v318 = vpack.c.b16 %v306, %v302
      %v319 = vpack.c.b16 %v307, %v303
      %v320 = vpack.c.b16 %v308, %v304
      %v321 = vpack.c.b16 %v309, %v305
      %v322 = vpack.c.b16 %v314, %v310
      %v323 = vpack.c.b16 %v315, %v311
      %v324 = vpack.c.b16 %v316, %v312
      %v325 = vpack.c.b16 %v317, %v313
      %v398 = vunpack.c.l.b16 %v230
      %v399 = vunpack.c.l.b16 %v231
      %v400 = vunpack.c.l.b16 %v232
      %v401 = vunpack.c.l.b16 %v233
      %v402 = vunpack.c.l.b16 %v234
      %v403 = vunpack.c.l.b16 %v235
      %v404 = vunpack.c.l.b16 %v236
      %v405 = vunpack.c.l.b16 %v237
      %v406 = vunpack.c.l.b16 %v238
      %v407 = vunpack.c.l.b16 %v239
      %v408 = vunpack.c.l.b16 %v240
      %v409 = vunpack.c.l.b16 %v241
      %v410 = vunpack.c.l.b16 %v242
      %v411 = vunpack.c.l.b16 %v243
      %v412 = vunpack.c.l.b16 %v244
      %v413 = vunpack.c.l.b16 %v245
      %v414 = vunpack.c.l.b16 %v246
      %v415 = vunpack.c.l.b16 %v247
      %v416 = vunpack.c.l.b16 %v248
      %v417 = vunpack.c.l.b16 %v249
      %v418 = vunpack.c.l.b16 %v250
      %v419 = vunpack.c.l.b16 %v251
      %v420 = vunpack.c.l.b16 %v252
      %v421 = vunpack.c.l.b16 %v253
      %v422 = vunpack.c.l.b16 %v254
      %v423 = vunpack.c.l.b16 %v255
      %v424 = vunpack.c.l.b16 %v256
      %v425 = vunpack.c.l.b16 %v257
      %v426 = vunpack.c.l.b16 %v258
      %v427 = vunpack.c.l.b16 %v259
      %v428 = vunpack.c.l.b16 %v260
      %v429 = vunpack.c.l.b16 %v261
      %v430 = vunpack.c.l.b16 %v262
      %v431 = vunpack.c.l.b16 %v263
      %v432 = vunpack.c.l.b16 %v264
      %v433 = vunpack.c.l.b16 %v265
      %v434 = vunpack.c.l.b16 %v266
      %v435 = vunpack.c.l.b16 %v267
      %v436 = vunpack.c.l.b16 %v268
      %v437 = vunpack.c.l.b16 %v269
      %v438 = vunpack.c.l.b16 %v270
      %v439 = vunpack.c.l.b16 %v271
      %v440 = vunpack.c.l.b16 %v272
      %v441 = vunpack.c.l.b16 %v273
      %v442 = vunpack.c.l.b16 %v274
      %v443 = vunpack.c.l.b16 %v275
      %v444 = vunpack.c.l.b16 %v276
      %v445 = vunpack.c.l.b16 %v277
      %v446 = vunpack.c.l.b16 %v278
      %v447 = vunpack.c.l.b16 %v279
      %v448 = vunpack.c.l.b16 %v280
      %v449 = vunpack.c.l.b16 %v281
      %v450 = vunpack.c.l.b16 %v282
      %v451 = vunpack.c.l.b16 %v283
      %v452 = vunpack.c.l.b16 %v284
      %v453 = vunpack.c.l.b16 %v285
      %v454 = vunpack.c.l.b16 %v286
      %v455 = vunpack.c.l.b16 %v287
      %v456 = vunpack.c.l.b16 %v288
      %v457 = vunpack.c.l.b16 %v289
      %v458 = vunpack.c.l.b16 %v290
      %v459 = vunpack.c.l.b16 %v291
      %v460 = vunpack.c.l.b16 %v292
      %v461 = vunpack.c.l.b16 %v293
      %v462 = vpack.c.b16 %v399, %v398
      %v463 = vpack.c.b16 %v401, %v400
      %v464 = vpack.c.b16 %v403, %v402
      %v465 = vpack.c.b16 %v405, %v404
      %v466 = vpack.c.b16 %v407, %v406
      %v467 = vpack.c.b16 %v409, %v408
      %v468 = vpack.c.b16 %v411, %v410
      %v469 = vpack.c.b16 %v413, %v412
      %v470 = vpack.c.b16 %v415, %v414
      %v471 = vpack.c.b16 %v417, %v416
      %v472 = vpack.c.b16 %v419, %v418
      %v473 = vpack.c.b16 %v421, %v420
      %v474 = vpack.c.b16 %v423, %v422
      %v475 = vpack.c.b16 %v425, %v424
      %v476 = vpack.c.b16 %v427, %v426
      %v477 = vpack.c.b16 %v429, %v428
      %v478 = vpack.c.b16 %v431, %v430
      %v479 = vpack.c.b16 %v433, %v432
      %v480 = vpack.c.b16 %v435, %v434
      %v481 = vpack.c.b16 %v437, %v436
      %v482 = vpack.c.b16 %v439, %v438
      %v483 = vpack.c.b16 %v441, %v440
      %v484 = vpack.c.b16 %v443, %v442
      %v485 = vpack.c.b16 %v445, %v444
      %v486 = vpack.c.b16 %v447, %v446
      %v487 = vpack.c.b16 %v449, %v448
      %v488 = vpack.c.b16 %v451, %v450
      %v489 = vpack.c.b16 %v453, %v452
      %v490 = vpack.c.b16 %v455, %v454
      %v491 = vpack.c.b16 %v457, %v456
      %v492 = vpack.c.b16 %v459, %v458
      %v493 = vpack.c.b16 %v461, %v460
      %526 = vmatprep.subr.bf16.mxu0 0
      %527 = vmatpush1.bf16.msra.mxu0 %v462
      %528 = vmatprep.subr.bf16.mxu0 0
      %529 = vmatpush1.bf16.msra.mxu0 %v463
      %530 = vmatprep.subr.bf16.mxu0 0
      %531 = vmatpush1.bf16.msra.mxu0 %v464
      %532 = vmatprep.subr.bf16.mxu0 0
      %533 = vmatpush1.bf16.msra.mxu0 %v465
      %534 = vmatprep.subr.bf16.mxu0 0
      %535 = vmatpush1.bf16.msra.mxu0 %v466
      %536 = vmatprep.subr.bf16.mxu0 0
      %537 = vmatpush1.bf16.msra.mxu0 %v467
      %538 = vmatprep.subr.bf16.mxu0 0
      %539 = vmatpush1.bf16.msra.mxu0 %v468
      %540 = vmatprep.subr.bf16.mxu0 0
      %541 = vmatpush1.bf16.msra.mxu0 %v469
      %542 = vmatprep.subr.bf16.mxu0 0
      %543 = vmatpush1.bf16.msra.mxu0 %v470
      %544 = vmatprep.subr.bf16.mxu0 0
      %545 = vmatpush1.bf16.msra.mxu0 %v471
      %546 = vmatprep.subr.bf16.mxu0 0
      %547 = vmatpush1.bf16.msra.mxu0 %v472
      %548 = vmatprep.subr.bf16.mxu0 0
      %549 = vmatpush1.bf16.msra.mxu0 %v473
      %550 = vmatprep.subr.bf16.mxu0 0
      %551 = vmatpush1.bf16.msra.mxu0 %v474
      %552 = vmatprep.subr.bf16.mxu0 0
      %553 = vmatpush1.bf16.msra.mxu0 %v475
      %554 = vmatprep.subr.bf16.mxu0 0
      %555 = vmatpush1.bf16.msra.mxu0 %v476
      %556 = vmatprep.subr.bf16.mxu0 0
      %557 = vmatpush1.bf16.msra.mxu0 %v477
      %558 = vmatprep.mubr.bf16.mxu0 %v319
      %559 = vmatmul.mubr.bf16.gmra.mrb[0].mxu0 %v318
      %v560 = vpop.f32.mrb[0].mxu0
      %v561 = vadd.f32 0.0, %v560
      %v562 = vpop.f32.mrb[0].mxu0
      %v563 = vpop.f32.mrb[0].mxu0
      %v564 = vadd.f32 0.0, %v563
      %v565 = vpop.f32.mrb[0].mxu0
      %566 = vmatprep.mubr.bf16.mxu0 %v323
      %567 = vmatmul.mubr.bf16.gmra.mrb[0].mxu0 %v322
      %v568 = vpop.f32.mrb[0].mxu0
      %v569 = vadd.f32 0.0, %v568
      %v570 = vpop.f32.mrb[0].mxu0
      %v571 = vpop.f32.mrb[0].mxu0
      %v572 = vadd.f32 0.0, %v571
      %v573 = vpop.f32.mrb[0].mxu0
      %574 = vdwg.mxu0
      %575 = vmatprep.subr.bf16.mxu0 0
      %576 = vmatpush1.bf16.msra.mxu0 %v478
      %577 = vmatprep.subr.bf16.mxu0 0
      %578 = vmatpush1.bf16.msra.mxu0 %v479
      %579 = vmatprep.subr.bf16.mxu0 0
      %580 = vmatpush1.bf16.msra.mxu0 %v480
      %581 = vmatprep.subr.bf16.mxu0 0
      %582 = vmatpush1.bf16.msra.mxu0 %v481
      %583 = vmatprep.subr.bf16.mxu0 0
      %584 = vmatpush1.bf16.msra.mxu0 %v482
      %585 = vmatprep.subr.bf16.mxu0 0
      %586 = vmatpush1.bf16.msra.mxu0 %v483
      %587 = vmatprep.subr.bf16.mxu0 0
      %588 = vmatpush1.bf16.msra.mxu0 %v484
      %589 = vmatprep.subr.bf16.mxu0 0
      %590 = vmatpush1.bf16.msra.mxu0 %v485
      %591 = vmatprep.subr.bf16.mxu0 0
      %592 = vmatpush1.bf16.msra.mxu0 %v486
      %593 = vmatprep.subr.bf16.mxu0 0
      %594 = vmatpush1.bf16.msra.mxu0 %v487
      %595 = vmatprep.subr.bf16.mxu0 0
      %596 = vmatpush1.bf16.msra.mxu0 %v488
      %597 = vmatprep.subr.bf16.mxu0 0
      %598 = vmatpush1.bf16.msra.mxu0 %v489
      %599 = vmatprep.subr.bf16.mxu0 0
      %600 = vmatpush1.bf16.msra.mxu0 %v490
      %601 = vmatprep.subr.bf16.mxu0 0
      %602 = vmatpush1.bf16.msra.mxu0 %v491
      %603 = vmatprep.subr.bf16.mxu0 0
      %604 = vmatpush1.bf16.msra.mxu0 %v492
      %605 = vmatprep.subr.bf16.mxu0 0
      %606 = vmatpush1.bf16.msra.mxu0 %v493
      %607 = vmatprep.mubr.bf16.mxu0 %v321
      %608 = vmatmul.mubr.bf16.gmra.mrb[0].mxu0 %v320
      %v609 = vpop.f32.mrb[0].mxu0
      %v610 = vadd.f32 %v561, %v609
      %v611 = vpop.f32.mrb[0].mxu0
      %v612 = vpop.f32.mrb[0].mxu0
      %v613 = vadd.f32 %v564, %v612
      %v614 = vpop.f32.mrb[0].mxu0
      %615 = vmatprep.mubr.bf16.mxu0 %v325
      %616 = vmatmul.mubr.bf16.gmra.mrb[0].mxu0 %v324
      %v617 = vpop.f32.mrb[0].mxu0
      %v618 = vadd.f32 %v569, %v617
      %v619 = vpop.f32.mrb[0].mxu0
      %v620 = vpop.f32.mrb[0].mxu0
      %v621 = vadd.f32 %v572, %v620
      %v622 = vpop.f32.mrb[0].mxu0
      %623 = vdwg.mxu0
      %p624 = scmp.eq.s32.totalorder %s19, 0
      %p625 = scmp.eq.s32.totalorder %s20, 0
      %p626 = pnand %p624, %p625
      %p627 = pneg %p626
      // Predicated region
      $region37: #{discriminator_forward.8} parent=35 // pred_check
        _
      $region38: #{discriminator_forward.8} parent=35 // pred_check_branch
        %629 = sbr.rel (%p626) target = $region40
      $region39: #{discriminator_forward.8} parent=35 // pred_region
        %630 = vst [vmem:[#allocation2] sm:$0x1] 0.0
        %631 = vst [vmem:[#allocation3] sm:$0x1] 0.0
      $region40: #{discriminator_forward.8} parent=35 // pred_fallthru
        _
      // Predicated region
      $region41: #{discriminator_forward.8} parent=35 // pred_check
        %p632 = pneg %p624
      $region42: #{discriminator_forward.8} parent=35 // pred_check_branch
        %634 = sbr.rel (%p632) target = $region44
      $region43: #{discriminator_forward.8} parent=35 // pred_region
        %v635 = vld [vmem:[#allocation2] sm:$0x1]
        %v636 = vadd.f32 %v610, %v613
        %v637 = vadd.f32 %v636, %v618
        %v638 = vadd.f32 %v637, %v621
        %v639 = vrot.slane %v638, 4
        %v640 = vadd.f32 %v638, %v639
        %v641 = vrot.slane %v640, 2
        %v642 = vadd.f32 %v640, %v641
        %v643 = vrot.slane %v642, 1
        %v644 = vadd.f32 %v642, %v643
        %v645 = vadd.f32 %v635, %v644
        %646 = vst [vmem:[#allocation2] sm:$0x1] %v645
        %v647 = vld [vmem:[#allocation3] sm:$0x1]
        %v648 = vmul.f32 %v610, %v610
        %v649 = vmul.f32 %v613, %v613
        %v650 = vmul.f32 %v618, %v618
        %v651 = vmul.f32 %v621, %v621
        %v652 = vadd.f32 %v648, %v649
        %v653 = vadd.f32 %v652, %v650
        %v654 = vadd.f32 %v653, %v651
        %v655 = vrot.slane %v654, 4
        %v656 = vadd.f32 %v654, %v655
        %v657 = vrot.slane %v656, 2
        %v658 = vadd.f32 %v656, %v657
        %v659 = vrot.slane %v658, 1
        %v660 = vadd.f32 %v658, %v659
        %v661 = vadd.f32 %v647, %v660
        %662 = vst [vmem:[#allocation3] sm:$0x1] %v661
      $region44: #{discriminator_forward.8} parent=35 // pred_fallthru
        _
      %p663 = scmp.eq.s32.totalorder %s19, 1
      // Predicated region
      $region45: #{discriminator_forward.8} parent=35 // pred_check
        %p664 = pneg %p663
      $region46: #{discriminator_forward.8} parent=35 // pred_check_branch
        %666 = sbr.rel (%p664) target = $region48
      $region47: #{discriminator_forward.8} parent=35 // pred_region
        %v667 = vld [vmem:[#allocation2] sm:$0x1]
        %v668 = vmul.f32 %v667, 0.03125
        %v669 = vld [vmem:[#allocation3] sm:$0x1]
        %v670 = vmul.f32 %v669, 0.03125
        %v671 = vmul.f32 %v668, %v668
        %v672 = vsub.f32 %v670, %v671
        %v673 = vadd.f32 %v672, 1e-05
        %v674 = vrsqrt.pop %v673
        %v676 = vlaneseq
        %v677 = vshrl.u32 %v676, 7
        %v678 = vsub.s32 0, %v677
        %v679 = vrot.slane %v668, %v678
        %v681 = vsub.f32 %v610, %v679
        %v682 = vsub.f32 %v613, %v679
        %v683 = vsub.f32 %v618, %v679
        %v684 = vsub.f32 %v621, %v679
        %v685 = vld [vmem:[%s2] sm:$0x1]
        %v686 = vmul.f32 %v674, %v685
        %v688 = vlaneseq
        %v689 = vshrl.u32 %v688, 7
        %v690 = vsub.s32 0, %v689
        %v691 = vrot.slane %v686, %v690
        %v693 = vmul.f32 %v681, %v691
        %v694 = vmul.f32 %v682, %v691
        %v695 = vmul.f32 %v683, %v691
        %v696 = vmul.f32 %v684, %v691
        %v697 = vld [vmem:[%s3] sm:$0x1]
        %v699 = vlaneseq
        %v700 = vshrl.u32 %v699, 7
        %v701 = vsub.s32 0, %v700
        %v702 = vrot.slane %v697, %v701
        %v704 = vadd.f32 %v693, %v702
        %v705 = vadd.f32 %v694, %v702
        %v706 = vadd.f32 %v695, %v702
        %v707 = vadd.f32 %v696, %v702
        %vm708 = vcmp.ge.f32.partialorder %v704, 0.0
        %vm709 = vcmp.ge.f32.partialorder %v705, 0.0
        %vm710 = vcmp.ge.f32.partialorder %v706, 0.0
        %vm711 = vcmp.ge.f32.partialorder %v707, 0.0
        %v712 = vmul.f32 %v704, 0.2
        %v713 = vmul.f32 %v705, 0.2
        %v714 = vmul.f32 %v706, 0.2
        %v715 = vmul.f32 %v707, 0.2
        %v716 = vsel %vm708, %v704, %v712
        %v717 = vsel %vm709, %v705, %v713
        %v718 = vsel %vm710, %v706, %v714
        %v719 = vsel %vm711, %v707, %v715
        %720 = vst [vmem:[%s218] sm:$0xff] %v716
        %721 = vst [vmem:[%s218 + $0x8] sm:$0xff] %v717
        %722 = vst [vmem:[%s218 + $0x10] sm:$0xff] %v718
        %723 = vst [vmem:[%s218 + $0x18] sm:$0xff] %v719
      $region48: #{discriminator_forward.8} parent=35 // pred_fallthru
        _
      %s724 = smul.u32 %s19, %s20
      %s725 = smul.u32 4, %s724
      %p726 = scmp.lt.s32.totalorder %s725, 3
      %s727 = scalar_select %p726, %s725, 3
      %s728 = smul.addr %s727, 8
      %s729 = scalar_lea.vmem %s4, %s728
      // Predicated region
      $region49: #{discriminator_forward.8} parent=35 // pred_check
        %p730 = pneg %p136
      $region50: #{discriminator_forward.8} parent=35 // pred_check_branch
        %732 = sbr.rel (%p730) target = $region52
      $region51: #{discriminator_forward.8} parent=35 // pred_region
        %s733 = smul.u32 %s19, %s20
        %s734 = smul.u32 4, %s733
      $region52: #{discriminator_forward.8} parent=35 // pred_fallthru
        _
    $region36: #{discriminator_forward.8} parent=5 // pred_fallthru
      _
    %p735 = scmp.le.s32.totalorder 2, %s10
    // Predicated region
    $region53: #{discriminator_forward.8} parent=5 // pred_check
      %p736 = pneg %p735
    $region54: #{discriminator_forward.8} parent=5 // pred_check_branch
      %738 = sbr.rel (%p736) target = $region56
    $region55: #{discriminator_forward.8} parent=5 // pred_region
      %s739 = ssub.s32 %s10, 2
      // Predicated region
      $region57: #{discriminator_forward.8} parent=55 // pred_check
        %p740 = pneg %p142
      $region58: #{discriminator_forward.8} parent=55 // pred_check_branch
        %742 = sbr.rel (%p740) target = $region60
      $region59: #{discriminator_forward.8} parent=55 // pred_region
        %s743 = smul.u32 %s21, %s22
        %s744 = smul.u32 4, %s743
        %p745 = scmp.lt.s32.totalorder %s744, 3
        %s746 = scalar_select %p745, %s744, 3
        %s747 = smul.addr %s746, 8
        %s748 = scalar_lea.vmem %s4, %s747
      $region60: #{discriminator_forward.8} parent=55 // pred_fallthru
        _
    $region56: #{discriminator_forward.8} parent=5 // pred_fallthru
      _
  $region6: #{discriminator_forward.8} parent=0 // loop_footer
    %s14 = sadd.s32 1, %s10
  $region7: #{discriminator_forward.8} parent=0 // loop_footer_branch
    %9 = sbr.rel target = $region3
  $region8: #{discriminator_forward.8} parent=0 // loop_exit
    _

// kernel: discriminator_forward.9
$region0: #{discriminator_forward.9}
  #allocation0 [shape = 'u32[]', space=smem, size = 0x4, offset = 0x4, fixed_abs, tag = 'smem constant byte address 0x4 - core index']
  #allocation1 [shape = 'u32[144,128]{1,0:T(1,128)}', space=vmem, size = 0x12000, scoped, tag = 'internal scratch']
  %s0 = inlined_call_operand.vmem [shape: bf16[8,1024], index: 0, kind: input, shape index: {}]
  %s1 = inlined_call_operand.vmem [shape: bf16[1024,128], index: 1, kind: input, shape index: {}]
  %s2 = inlined_call_operand.vmem [shape: f32[8,128], index: 2, kind: output, shape index: {}]
  %s3 = sld [smem:[#allocation0]]
  $region18: #{discriminator_forward.9} parent=0
    _
  %s5 = ssub.s32 1, %s3
  %s6 = scalar_select 0, %s5, %s3
  // Predicated region
  $region2: #{discriminator_forward.9} parent=0 // pred_check
    _
  $region3: #{discriminator_forward.9} parent=0 // pred_check_branch
    %8 = sbr.rel (0) target = $region5
  $region4: #{discriminator_forward.9} parent=0 // pred_region
    _
  $region5: #{discriminator_forward.9} parent=0 // pred_fallthru
    _
  // Predicated region
  $region6: #{discriminator_forward.9} parent=0 // pred_check
    _
  $region7: #{discriminator_forward.9} parent=0 // pred_check_branch
    %10 = sbr.rel (0) target = $region9
  $region8: #{discriminator_forward.9} parent=0 // pred_region
    _
  $region9: #{discriminator_forward.9} parent=0 // pred_fallthru
    _
  %v12 = vld [vmem:[%s0] sm:$0xff]
  %v13 = vld [vmem:[%s0 + $0x8] sm:$0xff]
  %v14 = vld [vmem:[%s0 + $0x10] sm:$0xff]
  %v15 = vld [vmem:[%s0 + $0x18] sm:$0xff]
  %v16 = vld [vmem:[%s1] sm:$0xf]
  %v17 = vld [vmem:[%s1 + $0x4] sm:$0xf]
  %v18 = vld [vmem:[%s1 + $0x8] sm:$0xf]
  %v19 = vld [vmem:[%s1 + $0xc] sm:$0xf]
  %v20 = vld [vmem:[%s1 + $0x10] sm:$0xf]
  %v21 = vld [vmem:[%s1 + $0x14] sm:$0xf]
  %v22 = vld [vmem:[%s1 + $0x18] sm:$0xf]
  %v23 = vld [vmem:[%s1 + $0x1c] sm:$0xf]
  %v24 = vld [vmem:[%s1 + $0x20] sm:$0xf]
  %v25 = vld [vmem:[%s1 + $0x24] sm:$0xf]
  %v26 = vld [vmem:[%s1 + $0x28] sm:$0xf]
  %v27 = vld [vmem:[%s1 + $0x2c] sm:$0xf]
  %v28 = vld [vmem:[%s1 + $0x30] sm:$0xf]
  %v29 = vld [vmem:[%s1 + $0x34] sm:$0xf]
  %v30 = vld [vmem:[%s1 + $0x38] sm:$0xf]
  %v31 = vld [vmem:[%s1 + $0x3c] sm:$0xf]
  %v32 = vld [vmem:[%s1 + $0x40] sm:$0xf]
  %v33 = vld [vmem:[%s1 + $0x44] sm:$0xf]
  %v34 = vld [vmem:[%s1 + $0x48] sm:$0xf]
  %v35 = vld [vmem:[%s1 + $0x4c] sm:$0xf]
  %v36 = vld [vmem:[%s1 + $0x50] sm:$0xf]
  %v37 = vld [vmem:[%s1 + $0x54] sm:$0xf]
  %v38 = vld [vmem:[%s1 + $0x58] sm:$0xf]
  %v39 = vld [vmem:[%s1 + $0x5c] sm:$0xf]
  %v40 = vld [vmem:[%s1 + $0x60] sm:$0xf]
  %v41 = vld [vmem:[%s1 + $0x64] sm:$0xf]
  %v42 = vld [vmem:[%s1 + $0x68] sm:$0xf]
  %v43 = vld [vmem:[%s1 + $0x6c] sm:$0xf]
  %v44 = vld [vmem:[%s1 + $0x70] sm:$0xf]
  %v45 = vld [vmem:[%s1 + $0x74] sm:$0xf]
  %v46 = vld [vmem:[%s1 + $0x78] sm:$0xf]
  %v47 = vld [vmem:[%s1 + $0x7c] sm:$0xf]
  %v48 = vld [vmem:[%s1 + $0x80] sm:$0xf]
  %v49 = vld [vmem:[%s1 + $0x84] sm:$0xf]
  %v50 = vld [vmem:[%s1 + $0x88] sm:$0xf]
  %v51 = vld [vmem:[%s1 + $0x8c] sm:$0xf]
  %v52 = vld [vmem:[%s1 + $0x90] sm:$0xf]
  %v53 = vld [vmem:[%s1 + $0x94] sm:$0xf]
  %v54 = vld [vmem:[%s1 + $0x98] sm:$0xf]
  %v55 = vld [vmem:[%s1 + $0x9c] sm:$0xf]
  %v56 = vld [vmem:[%s1 + $0xa0] sm:$0xf]
  %v57 = vld [vmem:[%s1 + $0xa4] sm:$0xf]
  %v58 = vld [vmem:[%s1 + $0xa8] sm:$0xf]
  %v59 = vld [vmem:[%s1 + $0xac] sm:$0xf]
  %v60 = vld [vmem:[%s1 + $0xb0] sm:$0xf]
  %v61 = vld [vmem:[%s1 + $0xb4] sm:$0xf]
  %v62 = vld [vmem:[%s1 + $0xb8] sm:$0xf]
  %v63 = vld [vmem:[%s1 + $0xbc] sm:$0xf]
  %v64 = vld [vmem:[%s1 + $0xc0] sm:$0xf]
  %v65 = vld [vmem:[%s1 + $0xc4] sm:$0xf]
  %v66 = vld [vmem:[%s1 + $0xc8] sm:$0xf]
  %v67 = vld [vmem:[%s1 + $0xcc] sm:$0xf]
  %v68 = vld [vmem:[%s1 + $0xd0] sm:$0xf]
  %v69 = vld [vmem:[%s1 + $0xd4] sm:$0xf]
  %v70 = vld [vmem:[%s1 + $0xd8] sm:$0xf]
  %v71 = vld [vmem:[%s1 + $0xdc] sm:$0xf]
  %v72 = vld [vmem:[%s1 + $0xe0] sm:$0xf]
  %v73 = vld [vmem:[%s1 + $0xe4] sm:$0xf]
  %v74 = vld [vmem:[%s1 + $0xe8] sm:$0xf]
  %v75 = vld [vmem:[%s1 + $0xec] sm:$0xf]
  %v76 = vld [vmem:[%s1 + $0xf0] sm:$0xf]
  %v77 = vld [vmem:[%s1 + $0xf4] sm:$0xf]
  %v78 = vld [vmem:[%s1 + $0xf8] sm:$0xf]
  %v79 = vld [vmem:[%s1 + $0xfc] sm:$0xf]
  %v80 = vld [vmem:[%s1 + $0x100] sm:$0xf]
  %v81 = vld [vmem:[%s1 + $0x104] sm:$0xf]
  %v82 = vld [vmem:[%s1 + $0x108] sm:$0xf]
  %v83 = vld [vmem:[%s1 + $0x10c] sm:$0xf]
  %v84 = vld [vmem:[%s1 + $0x110] sm:$0xf]
  %v85 = vld [vmem:[%s1 + $0x114] sm:$0xf]
  %v86 = vld [vmem:[%s1 + $0x118] sm:$0xf]
  %v87 = vld [vmem:[%s1 + $0x11c] sm:$0xf]
  %v88 = vld [vmem:[%s1 + $0x120] sm:$0xf]
  %v89 = vld [vmem:[%s1 + $0x124] sm:$0xf]
  %v90 = vld [vmem:[%s1 + $0x128] sm:$0xf]
  %v91 = vld [vmem:[%s1 + $0x12c] sm:$0xf]
  %v92 = vld [vmem:[%s1 + $0x130] sm:$0xf]
  %v93 = vld [vmem:[%s1 + $0x134] sm:$0xf]
  %v94 = vld [vmem:[%s1 + $0x138] sm:$0xf]
  %v95 = vld [vmem:[%s1 + $0x13c] sm:$0xf]
  %v96 = vld [vmem:[%s1 + $0x140] sm:$0xf]
  %v97 = vld [vmem:[%s1 + $0x144] sm:$0xf]
  %v98 = vld [vmem:[%s1 + $0x148] sm:$0xf]
  %v99 = vld [vmem:[%s1 + $0x14c] sm:$0xf]
  %v100 = vld [vmem:[%s1 + $0x150] sm:$0xf]
  %v101 = vld [vmem:[%s1 + $0x154] sm:$0xf]
  %v102 = vld [vmem:[%s1 + $0x158] sm:$0xf]
  %v103 = vld [vmem:[%s1 + $0x15c] sm:$0xf]
  %v104 = vld [vmem:[%s1 + $0x160] sm:$0xf]
  %v105 = vld [vmem:[%s1 + $0x164] sm:$0xf]
  %v106 = vld [vmem:[%s1 + $0x168] sm:$0xf]
  %v107 = vld [vmem:[%s1 + $0x16c] sm:$0xf]
  %v108 = vld [vmem:[%s1 + $0x170] sm:$0xf]
  %v109 = vld [vmem:[%s1 + $0x174] sm:$0xf]
  %v110 = vld [vmem:[%s1 + $0x178] sm:$0xf]
  %v111 = vld [vmem:[%s1 + $0x17c] sm:$0xf]
  %v112 = vld [vmem:[%s1 + $0x180] sm:$0xf]
  %v113 = vld [vmem:[%s1 + $0x184] sm:$0xf]
  %v114 = vld [vmem:[%s1 + $0x188] sm:$0xf]
  %v115 = vld [vmem:[%s1 + $0x18c] sm:$0xf]
  %v116 = vld [vmem:[%s1 + $0x190] sm:$0xf]
  %v117 = vld [vmem:[%s1 + $0x194] sm:$0xf]
  %v118 = vld [vmem:[%s1 + $0x198] sm:$0xf]
  %v119 = vld [vmem:[%s1 + $0x19c] sm:$0xf]
  %v120 = vld [vmem:[%s1 + $0x1a0] sm:$0xf]
  %v121 = vld [vmem:[%s1 + $0x1a4] sm:$0xf]
  %v122 = vld [vmem:[%s1 + $0x1a8] sm:$0xf]
  %v123 = vld [vmem:[%s1 + $0x1ac] sm:$0xf]
  %v124 = vld [vmem:[%s1 + $0x1b0] sm:$0xf]
  %v125 = vld [vmem:[%s1 + $0x1b4] sm:$0xf]
  %v126 = vld [vmem:[%s1 + $0x1b8] sm:$0xf]
  %v127 = vld [vmem:[%s1 + $0x1bc] sm:$0xf]
  %v128 = vld [vmem:[%s1 + $0x1c0] sm:$0xf]
  %v129 = vld [vmem:[%s1 + $0x1c4] sm:$0xf]
  %v130 = vld [vmem:[%s1 + $0x1c8] sm:$0xf]
  %v131 = vld [vmem:[%s1 + $0x1cc] sm:$0xf]
  %v132 = vld [vmem:[%s1 + $0x1d0] sm:$0xf]
  %v133 = vld [vmem:[%s1 + $0x1d4] sm:$0xf]
  %v134 = vld [vmem:[%s1 + $0x1d8] sm:$0xf]
  %v135 = vld [vmem:[%s1 + $0x1dc] sm:$0xf]
  %v136 = vld [vmem:[%s1 + $0x1e0] sm:$0xf]
  %v137 = vld [vmem:[%s1 + $0x1e4] sm:$0xf]
  %v138 = vld [vmem:[%s1 + $0x1e8] sm:$0xf]
  %v139 = vld [vmem:[%s1 + $0x1ec] sm:$0xf]
  %v140 = vld [vmem:[%s1 + $0x1f0] sm:$0xf]
  %v141 = vld [vmem:[%s1 + $0x1f4] sm:$0xf]
  %v142 = vld [vmem:[%s1 + $0x1f8] sm:$0xf]
  %v143 = vld [vmem:[%s1 + $0x1fc] sm:$0xf]
  %v148 = vunpack.c.l.b16 %v12
  %v149 = vunpack.c.h.b16 %v12
  %v150 = vunpack.c.l.b16 %v13
  %v151 = vunpack.c.h.b16 %v13
  %v152 = vunpack.c.l.b16 %v14
  %v153 = vunpack.c.h.b16 %v14
  %v154 = vunpack.c.l.b16 %v15
  %v155 = vunpack.c.h.b16 %v15
  %v156 = vpack.c.b16 %v148, %v148
  %v157 = vpack.c.b16 %v149, %v149
  %v158 = vpack.c.b16 %v150, %v150
  %v159 = vpack.c.b16 %v151, %v151
  %v160 = vpack.c.b16 %v152, %v152
  %v161 = vpack.c.b16 %v153, %v153
  %v162 = vpack.c.b16 %v154, %v154
  %v163 = vpack.c.b16 %v155, %v155
  %v300 = vunpack.c.l.b16 %v16
  %v301 = vunpack.c.l.b16 %v17
  %v302 = vunpack.c.l.b16 %v18
  %v303 = vunpack.c.l.b16 %v19
  %v304 = vunpack.c.l.b16 %v20
  %v305 = vunpack.c.l.b16 %v21
  %v306 = vunpack.c.l.b16 %v22
  %v307 = vunpack.c.l.b16 %v23
  %v308 = vunpack.c.l.b16 %v24
  %v309 = vunpack.c.l.b16 %v25
  %v310 = vunpack.c.l.b16 %v26
  %v311 = vunpack.c.l.b16 %v27
  %v312 = vunpack.c.l.b16 %v28
  %v313 = vunpack.c.l.b16 %v29
  %v314 = vunpack.c.l.b16 %v30
  %v315 = vunpack.c.l.b16 %v31
  %v316 = vunpack.c.l.b16 %v32
  %v317 = vunpack.c.l.b16 %v33
  %v318 = vunpack.c.l.b16 %v34
  %v319 = vunpack.c.l.b16 %v35
  %v320 = vunpack.c.l.b16 %v36
  %v321 = vunpack.c.l.b16 %v37
  %v322 = vunpack.c.l.b16 %v38
  %v323 = vunpack.c.l.b16 %v39
  %v324 = vunpack.c.l.b16 %v40
  %v325 = vunpack.c.l.b16 %v41
  %v326 = vunpack.c.l.b16 %v42
  %v327 = vunpack.c.l.b16 %v43
  %v328 = vunpack.c.l.b16 %v44
  %v329 = vunpack.c.l.b16 %v45
  %v330 = vunpack.c.l.b16 %v46
  %v331 = vunpack.c.l.b16 %v47
  %v332 = vunpack.c.l.b16 %v48
  %v333 = vunpack.c.l.b16 %v49
  %v334 = vunpack.c.l.b16 %v50
  %v335 = vunpack.c.l.b16 %v51
  %v336 = vunpack.c.l.b16 %v52
  %v337 = vunpack.c.l.b16 %v53
  %v338 = vunpack.c.l.b16 %v54
  %v339 = vunpack.c.l.b16 %v55
  %v340 = vunpack.c.l.b16 %v56
  %v341 = vunpack.c.l.b16 %v57
  %v342 = vunpack.c.l.b16 %v58
  %v343 = vunpack.c.l.b16 %v59
  %v344 = vunpack.c.l.b16 %v60
  %v345 = vunpack.c.l.b16 %v61
  %v346 = vunpack.c.l.b16 %v62
  %v347 = vunpack.c.l.b16 %v63
  %v348 = vunpack.c.l.b16 %v64
  %v349 = vunpack.c.l.b16 %v65
  %v350 = vunpack.c.l.b16 %v66
  %v351 = vunpack.c.l.b16 %v67
  %v352 = vunpack.c.l.b16 %v68
  %v353 = vunpack.c.l.b16 %v69
  %v354 = vunpack.c.l.b16 %v70
  %v355 = vunpack.c.l.b16 %v71
  %v356 = vunpack.c.l.b16 %v72
  %v357 = vunpack.c.l.b16 %v73
  %v358 = vunpack.c.l.b16 %v74
  %v359 = vunpack.c.l.b16 %v75
  %v360 = vunpack.c.l.b16 %v76
  %v361 = vunpack.c.l.b16 %v77
  %v362 = vunpack.c.l.b16 %v78
  %v363 = vunpack.c.l.b16 %v79
  %v364 = vunpack.c.l.b16 %v80
  %v365 = vunpack.c.l.b16 %v81
  %v366 = vunpack.c.l.b16 %v82
  %v367 = vunpack.c.l.b16 %v83
  %v368 = vunpack.c.l.b16 %v84
  %v369 = vunpack.c.l.b16 %v85
  %v370 = vunpack.c.l.b16 %v86
  %v371 = vunpack.c.l.b16 %v87
  %v372 = vunpack.c.l.b16 %v88
  %v373 = vunpack.c.l.b16 %v89
  %v374 = vunpack.c.l.b16 %v90
  %v375 = vunpack.c.l.b16 %v91
  %v376 = vunpack.c.l.b16 %v92
  %v377 = vunpack.c.l.b16 %v93
  %v378 = vunpack.c.l.b16 %v94
  %v379 = vunpack.c.l.b16 %v95
  %v380 = vunpack.c.l.b16 %v96
  %v381 = vunpack.c.l.b16 %v97
  %v382 = vunpack.c.l.b16 %v98
  %v383 = vunpack.c.l.b16 %v99
  %v384 = vunpack.c.l.b16 %v100
  %v385 = vunpack.c.l.b16 %v101
  %v386 = vunpack.c.l.b16 %v102
  %v387 = vunpack.c.l.b16 %v103
  %v388 = vunpack.c.l.b16 %v104
  %v389 = vunpack.c.l.b16 %v105
  %v390 = vunpack.c.l.b16 %v106
  %v391 = vunpack.c.l.b16 %v107
  %v392 = vunpack.c.l.b16 %v108
  %v393 = vunpack.c.l.b16 %v109
  %v394 = vunpack.c.l.b16 %v110
  %v395 = vunpack.c.l.b16 %v111
  %v396 = vunpack.c.l.b16 %v112
  %v397 = vunpack.c.l.b16 %v113
  %v398 = vunpack.c.l.b16 %v114
  %v399 = vunpack.c.l.b16 %v115
  %v400 = vunpack.c.l.b16 %v116
  %v401 = vunpack.c.l.b16 %v117
  %v402 = vunpack.c.l.b16 %v118
  %v403 = vunpack.c.l.b16 %v119
  %v404 = vunpack.c.l.b16 %v120
  %v405 = vunpack.c.l.b16 %v121
  %v406 = vunpack.c.l.b16 %v122
  %v407 = vunpack.c.l.b16 %v123
  %v408 = vunpack.c.l.b16 %v124
  %v409 = vunpack.c.l.b16 %v125
  %v410 = vunpack.c.l.b16 %v126
  %v411 = vunpack.c.l.b16 %v127
  %v412 = vunpack.c.l.b16 %v128
  %v413 = vunpack.c.l.b16 %v129
  %v414 = vunpack.c.l.b16 %v130
  %v415 = vunpack.c.l.b16 %v131
  %v416 = vunpack.c.l.b16 %v132
  %v417 = vunpack.c.l.b16 %v133
  %v418 = vunpack.c.l.b16 %v134
  %v419 = vunpack.c.l.b16 %v135
  %v420 = vunpack.c.l.b16 %v136
  %v421 = vunpack.c.l.b16 %v137
  %v422 = vunpack.c.l.b16 %v138
  %v423 = vunpack.c.l.b16 %v139
  %v424 = vunpack.c.l.b16 %v140
  %v425 = vunpack.c.l.b16 %v141
  %v426 = vunpack.c.l.b16 %v142
  %v427 = vunpack.c.l.b16 %v143
  %v428 = vpack.c.b16 %v301, %v300
  %v429 = vpack.c.b16 %v303, %v302
  %v430 = vpack.c.b16 %v305, %v304
  %v431 = vpack.c.b16 %v307, %v306
  %v432 = vpack.c.b16 %v309, %v308
  %v433 = vpack.c.b16 %v311, %v310
  %v434 = vpack.c.b16 %v313, %v312
  %v435 = vpack.c.b16 %v315, %v314
  %v436 = vpack.c.b16 %v317, %v316
  %v437 = vpack.c.b16 %v319, %v318
  %v438 = vpack.c.b16 %v321, %v320
  %v439 = vpack.c.b16 %v323, %v322
  %v440 = vpack.c.b16 %v325, %v324
  %v441 = vpack.c.b16 %v327, %v326
  %v442 = vpack.c.b16 %v329, %v328
  %v443 = vpack.c.b16 %v331, %v330
  %v444 = vpack.c.b16 %v333, %v332
  %v445 = vpack.c.b16 %v335, %v334
  %v446 = vpack.c.b16 %v337, %v336
  %v447 = vpack.c.b16 %v339, %v338
  %v448 = vpack.c.b16 %v341, %v340
  %v449 = vpack.c.b16 %v343, %v342
  %v450 = vpack.c.b16 %v345, %v344
  %v451 = vpack.c.b16 %v347, %v346
  %v452 = vpack.c.b16 %v349, %v348
  %v453 = vpack.c.b16 %v351, %v350
  %v454 = vpack.c.b16 %v353, %v352
  %v455 = vpack.c.b16 %v355, %v354
  %v456 = vpack.c.b16 %v357, %v356
  %v457 = vpack.c.b16 %v359, %v358
  %v458 = vpack.c.b16 %v361, %v360
  %v459 = vpack.c.b16 %v363, %v362
  %v460 = vpack.c.b16 %v365, %v364
  %v461 = vpack.c.b16 %v367, %v366
  %v462 = vpack.c.b16 %v369, %v368
  %v463 = vpack.c.b16 %v371, %v370
  %v464 = vpack.c.b16 %v373, %v372
  %v465 = vpack.c.b16 %v375, %v374
  %v466 = vpack.c.b16 %v377, %v376
  %v467 = vpack.c.b16 %v379, %v378
  %v468 = vpack.c.b16 %v381, %v380
  %v469 = vpack.c.b16 %v383, %v382
  %v470 = vpack.c.b16 %v385, %v384
  %v471 = vpack.c.b16 %v387, %v386
  %v472 = vpack.c.b16 %v389, %v388
  %v473 = vpack.c.b16 %v391, %v390
  %v474 = vpack.c.b16 %v393, %v392
  %v475 = vpack.c.b16 %v395, %v394
  %v476 = vpack.c.b16 %v397, %v396
  %v477 = vpack.c.b16 %v399, %v398
  %v478 = vpack.c.b16 %v401, %v400
  %v479 = vpack.c.b16 %v403, %v402
  %v480 = vpack.c.b16 %v405, %v404
  %v481 = vpack.c.b16 %v407, %v406
  %v482 = vpack.c.b16 %v409, %v408
  %v483 = vpack.c.b16 %v411, %v410
  %v484 = vpack.c.b16 %v413, %v412
  %v485 = vpack.c.b16 %v415, %v414
  %v486 = vpack.c.b16 %v417, %v416
  %v487 = vpack.c.b16 %v419, %v418
  %v488 = vpack.c.b16 %v421, %v420
  %v489 = vpack.c.b16 %v423, %v422
  %v490 = vpack.c.b16 %v425, %v424
  %v491 = vpack.c.b16 %v427, %v426
  %556 = vmatprep.subr.bf16.mxu0 0
  %557 = vmatpush1.bf16.msra.mxu0 %v428
  %558 = vmatprep.subr.bf16.mxu0 0
  %559 = vmatpush1.bf16.msra.mxu0 %v429
  %560 = vmatprep.subr.bf16.mxu0 0
  %561 = vmatpush1.bf16.msra.mxu0 %v430
  %562 = vmatprep.subr.bf16.mxu0 0
  %563 = vmatpush1.bf16.msra.mxu0 %v431
  %564 = vmatprep.subr.bf16.mxu0 0
  %565 = vmatpush1.bf16.msra.mxu0 %v432
  %566 = vmatprep.subr.bf16.mxu0 0
  %567 = vmatpush1.bf16.msra.mxu0 %v433
  %568 = vmatprep.subr.bf16.mxu0 0
  %569 = vmatpush1.bf16.msra.mxu0 %v434
  %570 = vmatprep.subr.bf16.mxu0 0
  %571 = vmatpush1.bf16.msra.mxu0 %v435
  %572 = vmatprep.subr.bf16.mxu0 0
  %573 = vmatpush1.bf16.msra.mxu0 %v436
  %574 = vmatprep.subr.bf16.mxu0 0
  %575 = vmatpush1.bf16.msra.mxu0 %v437
  %576 = vmatprep.subr.bf16.mxu0 0
  %577 = vmatpush1.bf16.msra.mxu0 %v438
  %578 = vmatprep.subr.bf16.mxu0 0
  %579 = vmatpush1.bf16.msra.mxu0 %v439
  %580 = vmatprep.subr.bf16.mxu0 0
  %581 = vmatpush1.bf16.msra.mxu0 %v440
  %582 = vmatprep.subr.bf16.mxu0 0
  %583 = vmatpush1.bf16.msra.mxu0 %v441
  %584 = vmatprep.subr.bf16.mxu0 0
  %585 = vmatpush1.bf16.msra.mxu0 %v442
  %586 = vmatprep.subr.bf16.mxu0 0
  %587 = vmatpush1.bf16.msra.mxu0 %v443
  %588 = vmatprep.mubr.bf16.mxu0 %v157
  %589 = vmatmul.mubr.bf16.gmra.mrb[0].mxu0 %v156
  %v590 = vpop.f32.mrb[0].mxu0
  %v591 = vadd.f32 0.0, %v590
  %v592 = vpop.f32.mrb[0].mxu0
  %v593 = vpop.f32.mrb[0].mxu0
  %v594 = vpop.f32.mrb[0].mxu0
  %595 = vdwg.mxu0
  %596 = vmatprep.subr.bf16.mxu0 0
  %597 = vmatpush1.bf16.msra.mxu0 %v444
  %598 = vmatprep.subr.bf16.mxu0 0
  %599 = vmatpush1.bf16.msra.mxu0 %v445
  %600 = vmatprep.subr.bf16.mxu0 0
  %601 = vmatpush1.bf16.msra.mxu0 %v446
  %602 = vmatprep.subr.bf16.mxu0 0
  %603 = vmatpush1.bf16.msra.mxu0 %v447
  %604 = vmatprep.subr.bf16.mxu0 0
  %605 = vmatpush1.bf16.msra.mxu0 %v448
  %606 = vmatprep.subr.bf16.mxu0 0
  %607 = vmatpush1.bf16.msra.mxu0 %v449
  %608 = vmatprep.subr.bf16.mxu0 0
  %609 = vmatpush1.bf16.msra.mxu0 %v450
  %610 = vmatprep.subr.bf16.mxu0 0
  %611 = vmatpush1.bf16.msra.mxu0 %v451
  %612 = vmatprep.subr.bf16.mxu0 0
  %613 = vmatpush1.bf16.msra.mxu0 %v452
  %614 = vmatprep.subr.bf16.mxu0 0
  %615 = vmatpush1.bf16.msra.mxu0 %v453
  %616 = vmatprep.subr.bf16.mxu0 0
  %617 = vmatpush1.bf16.msra.mxu0 %v454
  %618 = vmatprep.subr.bf16.mxu0 0
  %619 = vmatpush1.bf16.msra.mxu0 %v455
  %620 = vmatprep.subr.bf16.mxu0 0
  %621 = vmatpush1.bf16.msra.mxu0 %v456
  %622 = vmatprep.subr.bf16.mxu0 0
  %623 = vmatpush1.bf16.msra.mxu0 %v457
  %624 = vmatprep.subr.bf16.mxu0 0
  %625 = vmatpush1.bf16.msra.mxu0 %v458
  %626 = vmatprep.subr.bf16.mxu0 0
  %627 = vmatpush1.bf16.msra.mxu0 %v459
  %628 = vmatprep.mubr.bf16.mxu0 %v159
  %629 = vmatmul.mubr.bf16.gmra.mrb[0].mxu0 %v158
  %v630 = vpop.f32.mrb[0].mxu0
  %v631 = vadd.f32 %v591, %v630
  %v632 = vpop.f32.mrb[0].mxu0
  %v633 = vpop.f32.mrb[0].mxu0
  %v634 = vpop.f32.mrb[0].mxu0
  %635 = vdwg.mxu0
  %636 = vmatprep.subr.bf16.mxu0 0
  %637 = vmatpush1.bf16.msra.mxu0 %v460
  %638 = vmatprep.subr.bf16.mxu0 0
  %639 = vmatpush1.bf16.msra.mxu0 %v461
  %640 = vmatprep.subr.bf16.mxu0 0
  %641 = vmatpush1.bf16.msra.mxu0 %v462
  %642 = vmatprep.subr.bf16.mxu0 0
  %643 = vmatpush1.bf16.msra.mxu0 %v463
  %644 = vmatprep.subr.bf16.mxu0 0
  %645 = vmatpush1.bf16.msra.mxu0 %v464
  %646 = vmatprep.subr.bf16.mxu0 0
  %647 = vmatpush1.bf16.msra.mxu0 %v465
  %648 = vmatprep.subr.bf16.mxu0 0
  %649 = vmatpush1.bf16.msra.mxu0 %v466
  %650 = vmatprep.subr.bf16.mxu0 0
  %651 = vmatpush1.bf16.msra.mxu0 %v467
  %652 = vmatprep.subr.bf16.mxu0 0
  %653 = vmatpush1.bf16.msra.mxu0 %v468
  %654 = vmatprep.subr.bf16.mxu0 0
  %655 = vmatpush1.bf16.msra.mxu0 %v469
  %656 = vmatprep.subr.bf16.mxu0 0
  %657 = vmatpush1.bf16.msra.mxu0 %v470
  %658 = vmatprep.subr.bf16.mxu0 0
  %659 = vmatpush1.bf16.msra.mxu0 %v471
  %660 = vmatprep.subr.bf16.mxu0 0
  %661 = vmatpush1.bf16.msra.mxu0 %v472
  %662 = vmatprep.subr.bf16.mxu0 0
  %663 = vmatpush1.bf16.msra.mxu0 %v473
  %664 = vmatprep.subr.bf16.mxu0 0
  %665 = vmatpush1.bf16.msra.mxu0 %v474
  %666 = vmatprep.subr.bf16.mxu0 0
  %667 = vmatpush1.bf16.msra.mxu0 %v475
  %668 = vmatprep.mubr.bf16.mxu0 %v161
  %669 = vmatmul.mubr.bf16.gmra.mrb[0].mxu0 %v160
  %v670 = vpop.f32.mrb[0].mxu0
  %v671 = vadd.f32 %v631, %v670
  %v672 = vpop.f32.mrb[0].mxu0
  %v673 = vpop.f32.mrb[0].mxu0
  %v674 = vpop.f32.mrb[0].mxu0
  %675 = vdwg.mxu0
  %676 = vmatprep.subr.bf16.mxu0 0
  %677 = vmatpush1.bf16.msra.mxu0 %v476
  %678 = vmatprep.subr.bf16.mxu0 0
  %679 = vmatpush1.bf16.msra.mxu0 %v477
  %680 = vmatprep.subr.bf16.mxu0 0
  %681 = vmatpush1.bf16.msra.mxu0 %v478
  %682 = vmatprep.subr.bf16.mxu0 0
  %683 = vmatpush1.bf16.msra.mxu0 %v479
  %684 = vmatprep.subr.bf16.mxu0 0
  %685 = vmatpush1.bf16.msra.mxu0 %v480
  %686 = vmatprep.subr.bf16.mxu0 0
  %687 = vmatpush1.bf16.msra.mxu0 %v481
  %688 = vmatprep.subr.bf16.mxu0 0
  %689 = vmatpush1.bf16.msra.mxu0 %v482
  %690 = vmatprep.subr.bf16.mxu0 0
  %691 = vmatpush1.bf16.msra.mxu0 %v483
  %692 = vmatprep.subr.bf16.mxu0 0
  %693 = vmatpush1.bf16.msra.mxu0 %v484
  %694 = vmatprep.subr.bf16.mxu0 0
  %695 = vmatpush1.bf16.msra.mxu0 %v485
  %696 = vmatprep.subr.bf16.mxu0 0
  %697 = vmatpush1.bf16.msra.mxu0 %v486
  %698 = vmatprep.subr.bf16.mxu0 0
  %699 = vmatpush1.bf16.msra.mxu0 %v487
  %700 = vmatprep.subr.bf16.mxu0 0
  %701 = vmatpush1.bf16.msra.mxu0 %v488
  %702 = vmatprep.subr.bf16.mxu0 0
  %703 = vmatpush1.bf16.msra.mxu0 %v489
  %704 = vmatprep.subr.bf16.mxu0 0
  %705 = vmatpush1.bf16.msra.mxu0 %v490
  %706 = vmatprep.subr.bf16.mxu0 0
  %707 = vmatpush1.bf16.msra.mxu0 %v491
  %708 = vmatprep.mubr.bf16.mxu0 %v163
  %709 = vmatmul.mubr.bf16.gmra.mrb[0].mxu0 %v162
  %v710 = vpop.f32.mrb[0].mxu0
  %v711 = vadd.f32 %v671, %v710
  %v712 = vpop.f32.mrb[0].mxu0
  %v713 = vpop.f32.mrb[0].mxu0
  %v714 = vpop.f32.mrb[0].mxu0
  %715 = vdwg.mxu0
  %v716 = vsub.f32 0.0, %v711
  %v717 = vmul.f32 %v716, 1.442695
  %v718 = vpow.pop %v717
  %v719 = vadd.f32 %v718, 1.0
  %v720 = vrcp.pop %v719
  %v721 = vmul.f32 1.0, %v720
  %722 = vst [vmem:[%s2] sm:$0xff] %v721
  // Predicated region
  $region10: #{discriminator_forward.9} parent=0 // pred_check
    _
  $region11: #{discriminator_forward.9} parent=0 // pred_check_branch
    %724 = sbr.rel (0) target = $region13
  $region12: #{discriminator_forward.9} parent=0 // pred_region
    _
  $region13: #{discriminator_forward.9} parent=0 // pred_fallthru
    _
  // Predicated region
  $region14: #{discriminator_forward.9} parent=0 // pred_check
    _
  $region15: #{discriminator_forward.9} parent=0 // pred_check_branch
    %726 = sbr.rel (0) target = $region17
  $region16: #{discriminator_forward.9} parent=0 // pred_region
    _
  $region17: #{discriminator_forward.9} parent=0 // pred_fallthru
    _

</llo_original>
